<compile_context>
chip_gen: v7x
topology: tpu7x:2x2x1
jax: 0.10.0
libtpu: 0.0.40
codegen_flags: <defaults>
</compile_context>

<pallas_src>
import numpy as np
import jax
import jax.numpy as jnp
from jax import lax
from jax.experimental import pallas as pl
from jax.experimental.pallas import tpu as pltpu

MASKID = 0

# ---------------- configuration (small shapes consistent with the module) -----------
B, L = 2, 8                 # batch, sequence length
VOCAB = 16                  # vocab of the synthetic src word embedding
D_WORD = 24                 # word-embedding dim
D_POS = 8                   # d_pos_vec
D_MODEL = D_WORD + D_POS    # 32  (cat_pos_enc=True => d_word + d_pos == d_model)
N_HEAD = 2
D_K = 16
D_V = 16
D_INNER = 64                # d_inner_hid
N_LAYERS = 2
N_MAX_SEQ = 16
LN_EPS = 1e-6
ATTN_SCALE = float(D_MODEL) ** 0.5   # the module scales scores by 1/d_model**0.5

LANE = 128                  # all feature dims lane-padded to a full vreg width
BL = B * L
HK = N_HEAD * D_K           # 32 (q / k widths)
HV = N_HEAD * D_V           # 32 (v width)
INV_D = 1.0 / D_MODEL


# ---------------- sinusoid position table (exact port of position_encoding_init) -----
def position_encoding_init(n_position, d_pos_vec):
    position_enc = np.array(
        [[pos / np.power(10000, 2 * i / d_pos_vec) for i in range(d_pos_vec)]
         if pos != 0 else np.zeros(d_pos_vec)
         for pos in range(n_position)])
    position_enc[1:, 0::2] = np.sin(position_enc[1:, 0::2])
    position_enc[1:, 1::2] = np.cos(position_enc[1:, 1::2])
    return jnp.asarray(position_enc, dtype=jnp.float32)


# ---------------- Pallas kernel: full encoder stack (all layers fused) ---------------
def make_encoder_kernel(bb):
    """Encoder stack over a block of `bb` batch elements (bb*L activation rows)."""
    rows = bb * L

    def layer_norm(z, gain, bias):
        # z's pad lanes are zero, so full-lane sums divided by D_MODEL give the
        # true mean / second moment; gain/bias pad lanes are zero, so pad lanes
        # of the result stay zero (no explicit validity mask needed).
        # TODO(synk): q.LayerNormalization may use unbiased std with eps added to
        #             sigma; this uses biased variance with eps inside rsqrt.
        mu = jnp.sum(z, axis=-1, keepdims=True) * INV_D
        var = jnp.sum(z * z, axis=-1, keepdims=True) * INV_D - mu * mu
        return (z - mu) * lax.rsqrt(var + LN_EPS) * gain + bias

    def kernel(x_ref, w_ref, b_ref, out_ref):
        # x_ref:  (rows, LANE) f32            activation, lanes >= D_MODEL are zero
        # w_ref:  (N_LAYERS, 4, LANE, LANE) bf16  [0]=Wqkv (scaled Q), [1]=Wproj,
        #                                         [2]=W1, [3]=W2
        # b_ref:  (N_LAYERS, 8, LANE) f32     rows: bp, g1, bn1, bf1, bf2, g2, bn2, pad
        x2 = x_ref[...]                                   # (rows, LANE) f32

        for l in range(N_LAYERS):                         # static unroll: fused layers
            bl = b_ref[l]                                 # (8, LANE)
            bp, g1, bn1 = bl[0:1, :], bl[1:2, :], bl[2:3, :]
            bf1, bf2 = bl[3:4, :], bl[4:5, :]
            g2, bn2 = bl[5:6, :], bl[6:7, :]

            # ---- fused QKV projection (1/sqrt(d_model) pre-folded into Q cols) ----
            x_bf = x2.astype(jnp.bfloat16)
            qkv = jnp.dot(x_bf, w_ref[l, 0],
                          preferred_element_type=jnp.float32)   # (rows, LANE) f32
            qkv3 = qkv.reshape(bb, L, LANE)

            # ---- multi-head attention, heads batched into one dot_general --------
            qh = qkv3[:, :, 0:HK].reshape(bb, L, N_HEAD, D_K) \
                     .transpose(0, 2, 1, 3).reshape(bb * N_HEAD, L, D_K)
            kh = qkv3[:, :, HK:2 * HK].reshape(bb, L, N_HEAD, D_K) \
                     .transpose(0, 2, 1, 3).reshape(bb * N_HEAD, L, D_K)
            vh = qkv3[:, :, 2 * HK:2 * HK + HV].reshape(bb, L, N_HEAD, D_V) \
                     .transpose(0, 2, 1, 3).reshape(bb * N_HEAD, L, D_V)

            s = jnp.einsum('bqd,bkd->bqk', qh, kh,
                           preferred_element_type=jnp.float32)  # (bb*H, L, L)
            s = s - jnp.max(s, axis=-1, keepdims=True)
            p = jnp.exp(s)
            p = p * pl.reciprocal(jnp.sum(p, axis=-1, keepdims=True), approx=True)
            ctx = jnp.einsum('bqk,bkd->bqd', p, vh,
                             preferred_element_type=jnp.float32)  # (bb*H, L, D_V)

            # ---- head-major concat + ONE output projection matmul -----------------
            # == torch.cat(torch.split(outputs, mb, 0), -1) @ Wproj
            ctx_all = ctx.reshape(bb, N_HEAD, L, D_V) \
                         .transpose(0, 2, 1, 3).reshape(rows, HV)
            proj = jnp.dot(ctx_all.astype(jnp.bfloat16), w_ref[l, 1, 0:HV, :],
                           preferred_element_type=jnp.float32)   # (rows, LANE)

            # ---- proj bias + residual + LayerNorm ---------------------------------
            y = layer_norm(proj + bp + x2, g1, bn1)

            # ---- position-wise FFN (1x1 convs == matmuls) + residual + LayerNorm --
            y_bf = y.astype(jnp.bfloat16)
            h1 = jnp.maximum(
                jnp.dot(y_bf, w_ref[l, 2],
                        preferred_element_type=jnp.float32) + bf1, 0.0)
            h2 = jnp.dot(h1.astype(jnp.bfloat16), w_ref[l, 3],
                         preferred_element_type=jnp.float32) + bf2
            x2 = layer_norm(h2 + y, g2, bn2)

        out_ref[...] = x2                                 # lane-dense (rows, 128) store

    return kernel


def _cost_estimate():
    mm = 2 * BL * LANE * LANE * 3            # qkv + ffn1 + ffn2 (padded widths)
    mm += 2 * BL * HV * LANE                 # output projection
    attn = 2 * (B * N_HEAD) * L * L * (D_K + D_V)
    flops = N_LAYERS * (mm + attn)
    trans = N_LAYERS * ((B * N_HEAD) * L * L + 3 * BL)   # exp + rsqrt/recip
    bytes_accessed = (4 * BL * LANE * 2                  # x in + out (f32)
                      + 2 * N_LAYERS * 4 * LANE * LANE   # bf16 weight slab
                      + 4 * N_LAYERS * 8 * LANE)         # f32 bias/gain slab
    return pl.CostEstimate(flops=flops, transcendentals=trans,
                           bytes_accessed=bytes_accessed)


def _num_tensorcores_per_chip():
    try:
        kind = jax.devices()[0].device_kind.lower()
    except Exception:
        return 1
    return 2 if ("v7" in kind or "7x" in kind) else 1


def encoder_layers(x_pad, w_slab, b_slab):
    ce = _cost_estimate()
    if _num_tensorcores_per_chip() >= 2 and B > 1:
        # Batch-parallel grid: each TensorCore (v7x megacore) takes half the batch.
        return pl.pallas_call(
            make_encoder_kernel(1),
            out_shape=jax.ShapeDtypeStruct((BL, LANE), jnp.float32),
            grid=(B,),
            in_specs=[pl.BlockSpec((L, LANE), lambda b: (b, 0)),
                      pl.BlockSpec((N_LAYERS, 4, LANE, LANE),
                                   lambda b: (0, 0, 0, 0)),
                      pl.BlockSpec((N_LAYERS, 8, LANE), lambda b: (0, 0, 0))],
            out_specs=pl.BlockSpec((L, LANE), lambda b: (b, 0)),
            compiler_params=pltpu.CompilerParams(
                dimension_semantics=("parallel",)),
            cost_estimate=ce,
        )(x_pad, w_slab, b_slab)
    # Single-TensorCore chips (v5e/v6e): grid-less, everything resident in VMEM
    # (avoids per-step grid overhead at these tiny shapes).
    vmem = pl.BlockSpec(memory_space=pltpu.MemorySpace.VMEM)
    return pl.pallas_call(
        make_encoder_kernel(B),
        out_shape=jax.ShapeDtypeStruct((BL, LANE), jnp.float32),
        in_specs=[vmem, vmem, vmem],
        out_specs=vmem,
        cost_estimate=ce,
    )(x_pad, w_slab, b_slab)


# ---------------- parameter construction (deterministic, in-script) ------------------
def _xavier_normal(key, shape):
    fan_in, fan_out = shape
    std = (2.0 / (fan_in + fan_out)) ** 0.5
    return std * jax.random.normal(key, shape, dtype=jnp.float32)


def init_layer_params(key):
    ks = jax.random.split(key, 6)
    wq = _xavier_normal(ks[0], (D_MODEL, N_HEAD * D_K))
    wk = _xavier_normal(ks[1], (D_MODEL, N_HEAD * D_K))
    wv = _xavier_normal(ks[2], (D_MODEL, N_HEAD * D_V))
    wp = _xavier_normal(ks[3], (N_HEAD * D_V, D_MODEL))
    bp = jnp.zeros((1, D_MODEL), jnp.float32)
    g1 = jnp.ones((1, D_MODEL), jnp.float32)
    bn1 = jnp.zeros((1, D_MODEL), jnp.float32)
    w1 = _xavier_normal(ks[4], (D_MODEL, D_INNER))
    bf1 = jnp.zeros((1, D_INNER), jnp.float32)
    w2 = _xavier_normal(ks[5], (D_INNER, D_MODEL))
    bf2 = jnp.zeros((1, D_MODEL), jnp.float32)
    g2 = jnp.ones((1, D_MODEL), jnp.float32)
    bn2 = jnp.zeros((1, D_MODEL), jnp.float32)
    return (wq, wk, wv, wp, bp, g1, bn1, w1, bf1, w2, bf2, g2, bn2)


def pack_params(layer_params):
    """Pack per-layer params into two lane-padded slabs (host-side, one time).

    Weights go to bf16 (halves the dominant HBM->VMEM DMA; matmuls accumulate in
    f32 via preferred_element_type). Bias/gain slab stays f32 for the VPU math.
    """
    w_slabs, b_slabs = [], []
    for (wq, wk, wv, wp, bp, g1, bn1, w1, bf1, w2, bf2, g2, bn2) in layer_params:
        W = jnp.zeros((4, LANE, LANE), jnp.float32)
        W = W.at[0, :D_MODEL, 0:HK].set(wq / ATTN_SCALE)     # Q (score scale folded in)
        W = W.at[0, :D_MODEL, HK:2 * HK].set(wk)             # K
        W = W.at[0, :D_MODEL, 2 * HK:2 * HK + HV].set(wv)    # V
        W = W.at[1, :HV, :D_MODEL].set(wp)                   # output projection
        W = W.at[2, :D_MODEL, :D_INNER].set(w1)              # FFN layer 1
        W = W.at[3, :D_INNER, :D_MODEL].set(w2)              # FFN layer 2
        Bm = jnp.zeros((8, LANE), jnp.float32)
        Bm = Bm.at[0, :D_MODEL].set(bp[0])
        Bm = Bm.at[1, :D_MODEL].set(g1[0])
        Bm = Bm.at[2, :D_MODEL].set(bn1[0])
        Bm = Bm.at[3, :D_INNER].set(bf1[0])
        Bm = Bm.at[4, :D_MODEL].set(bf2[0])
        Bm = Bm.at[5, :D_MODEL].set(g2[0])
        Bm = Bm.at[6, :D_MODEL].set(bn2[0])
        w_slabs.append(W)
        b_slabs.append(Bm)
    return (jnp.stack(w_slabs).astype(jnp.bfloat16),
            jnp.stack(b_slabs))


# ---------------- full Encoder forward (embedding glue in JAX, hot path in Pallas) ---
@jax.jit
def encoder_forward(src_seq, word_emb_table, w_slab, b_slab):
    pos_table = position_encoding_init(N_MAX_SEQ + 1, D_POS)          # (n_max_seq+1, d_pos)
    enc_input = jnp.take(word_emb_table, src_seq, axis=0)             # (B, L, D_WORD)
    src_pos = jnp.broadcast_to(jnp.arange(src_seq.shape[1]), src_seq.shape)
    pos_input = jnp.take(pos_table, src_pos, axis=0)                  # (B, L, D_POS)
    x = jnp.concatenate([enc_input, pos_input], axis=2)               # (B, L, D_MODEL)
    x_pad = jnp.zeros((BL, LANE), jnp.float32).at[:, :D_MODEL].set(
        x.reshape(BL, D_MODEL))                                       # lane-dense input
    out = encoder_layers(x_pad, w_slab, b_slab)                       # (BL, LANE)
    return out[:, :D_MODEL].reshape(B, L, D_MODEL)


if __name__ == "__main__":
    key = jax.random.PRNGKey(0)
    k_emb, k_seq, k_params = jax.random.split(key, 3)

    # synthetic src word embedding (row MASKID zeroed, like padding_idx)
    word_emb_table = jax.random.normal(k_emb, (VOCAB, D_WORD), dtype=jnp.float32)
    word_emb_table = word_emb_table.at[MASKID].set(0.0)

    src_seq = jax.random.randint(k_seq, (B, L), 1, VOCAB)             # (B, L) int ids
    layer_params = [init_layer_params(k) for k in jax.random.split(k_params, N_LAYERS)]
    w_slab, b_slab = pack_params(layer_params)

    out = encoder_forward(src_seq, word_emb_table, w_slab, b_slab)
    jax.block_until_ready(out)
    assert out.shape == (B, L, D_MODEL) and out.dtype == jnp.float32
    assert bool(jnp.all(jnp.isfinite(out)))
    print("KERNEL_OK")
</pallas_src>

<mosaic_0001>
module attributes {stable_mosaic.version = 11 : i64} {
  func.func @kernel(%arg0: memref<16x128xf32, #tpu.memory_space<vmem>>, %arg1: memref<2x4x128x128xbf16, #tpu.memory_space<vmem>>, %arg2: memref<2x8x128xf32, #tpu.memory_space<vmem>>, %arg3: memref<16x128xf32, #tpu.memory_space<vmem>>) attributes {dimension_semantics = [], scalar_prefetch = 0 : i64, scratch_operands = 0 : i64, tpu.core_type = #tpu.core_type<tc>} {
    %c0 = arith.constant 0 : index
    %c0_0 = arith.constant 0 : index
    %0 = vector.load %arg0[%c0, %c0_0] : memref<16x128xf32, #tpu.memory_space<vmem>>, vector<16x128xf32>
    %c0_1 = arith.constant 0 : index
    %c0_2 = arith.constant 0 : index
    %c0_3 = arith.constant 0 : index
    %1 = vector.load %arg2[%c0_1, %c0_2, %c0_3] : memref<2x8x128xf32, #tpu.memory_space<vmem>>, vector<1x8x128xf32>
    %2 = vector.shape_cast %1 : vector<1x8x128xf32> to vector<8x128xf32>
    %3 = vector.extract_strided_slice %2 {offsets = [0, 0], sizes = [1, 128], strides = [1, 1]} : vector<8x128xf32> to vector<1x128xf32>
    %4 = vector.extract_strided_slice %2 {offsets = [1, 0], sizes = [1, 128], strides = [1, 1]} : vector<8x128xf32> to vector<1x128xf32>
    %5 = vector.extract_strided_slice %2 {offsets = [2, 0], sizes = [1, 128], strides = [1, 1]} : vector<8x128xf32> to vector<1x128xf32>
    %6 = vector.extract_strided_slice %2 {offsets = [3, 0], sizes = [1, 128], strides = [1, 1]} : vector<8x128xf32> to vector<1x128xf32>
    %7 = vector.extract_strided_slice %2 {offsets = [4, 0], sizes = [1, 128], strides = [1, 1]} : vector<8x128xf32> to vector<1x128xf32>
    %8 = vector.extract_strided_slice %2 {offsets = [5, 0], sizes = [1, 128], strides = [1, 1]} : vector<8x128xf32> to vector<1x128xf32>
    %9 = vector.extract_strided_slice %2 {offsets = [6, 0], sizes = [1, 128], strides = [1, 1]} : vector<8x128xf32> to vector<1x128xf32>
    %10 = arith.truncf %0 : vector<16x128xf32> to vector<16x128xbf16>
    %c0_4 = arith.constant 0 : index
    %c0_5 = arith.constant 0 : index
    %c0_6 = arith.constant 0 : index
    %c0_7 = arith.constant 0 : index
    %11 = vector.load %arg1[%c0_4, %c0_5, %c0_6, %c0_7] : memref<2x4x128x128xbf16, #tpu.memory_space<vmem>>, vector<1x1x128x128xbf16>
    %12 = vector.shape_cast %11 : vector<1x1x128x128xbf16> to vector<128x128xbf16>
    %cst = arith.constant dense<0.000000e+00> : vector<16x128xf32>
    %13 = tpu.matmul %10, %12, %cst {dimension_numbers = #tpu.dot_dimension_numbers<[1], [0], [0], [1], [0, 0, 1, 1], [], []>} : vector<16x128xbf16>, vector<128x128xbf16>, vector<16x128xf32> -> vector<16x128xf32>
    %14 = vector.shape_cast %13 : vector<16x128xf32> to vector<2x8x128xf32>
    %15 = vector.extract_strided_slice %14 {offsets = [0, 0, 0], sizes = [2, 8, 32], strides = [1, 1, 1]} : vector<2x8x128xf32> to vector<2x8x32xf32>
    %16 = vector.shape_cast %15 : vector<2x8x32xf32> to vector<2x8x2x16xf32>
    %17 = tpu.transpose %16, [0, 2, 1, 3] : vector<2x8x2x16xf32> -> vector<2x2x8x16xf32>
    %18 = vector.shape_cast %17 : vector<2x2x8x16xf32> to vector<4x8x16xf32>
    %19 = vector.extract_strided_slice %14 {offsets = [0, 0, 32], sizes = [2, 8, 32], strides = [1, 1, 1]} : vector<2x8x128xf32> to vector<2x8x32xf32>
    %20 = vector.shape_cast %19 : vector<2x8x32xf32> to vector<2x8x2x16xf32>
    %21 = tpu.transpose %20, [0, 2, 1, 3] : vector<2x8x2x16xf32> -> vector<2x2x8x16xf32>
    %22 = vector.shape_cast %21 : vector<2x2x8x16xf32> to vector<4x8x16xf32>
    %23 = vector.extract_strided_slice %14 {offsets = [0, 0, 64], sizes = [2, 8, 32], strides = [1, 1, 1]} : vector<2x8x128xf32> to vector<2x8x32xf32>
    %24 = vector.shape_cast %23 : vector<2x8x32xf32> to vector<2x8x2x16xf32>
    %25 = tpu.transpose %24, [0, 2, 1, 3] : vector<2x8x2x16xf32> -> vector<2x2x8x16xf32>
    %26 = vector.shape_cast %25 : vector<2x2x8x16xf32> to vector<4x8x16xf32>
    "tpu.trace_start"() <{level = 10 : i32, message = "bqd,bkd->bqk"}> : () -> ()
    %cst_8 = arith.constant dense<0.000000e+00> : vector<4x8x8xf32>
    %27 = tpu.matmul %18, %22, %cst_8 {dimension_numbers = #tpu.dot_dimension_numbers<[2], [2], [1], [1], [0, 0, 0, 1, 1, 1], [0], [0]>} : vector<4x8x16xf32>, vector<4x8x16xf32>, vector<4x8x8xf32> -> vector<4x8x8xf32>
    "tpu.trace_stop"() : () -> ()
    %cst_9 = arith.constant dense<0xFF800000> : vector<4x8xf32>
    %28 = vector.multi_reduction <maximumf>, %27, %cst_9 [2] : vector<4x8x8xf32> to vector<4x8xf32>
    %29 = vector.shape_cast %28 : vector<4x8xf32> to vector<4x8x1xf32>
    %30 = vector.broadcast %29 : vector<4x8x1xf32> to vector<4x8x8xf32>
    %31 = arith.subf %27, %30 : vector<4x8x8xf32>
    %32 = math.exp %31 : vector<4x8x8xf32>
    %cst_10 = arith.constant dense<0.000000e+00> : vector<4x8xf32>
    %33 = vector.multi_reduction <add>, %32, %cst_10 [2] : vector<4x8x8xf32> to vector<4x8xf32>
    %34 = vector.shape_cast %33 : vector<4x8xf32> to vector<4x8x1xf32>
    %35 = tpu.reciprocal %34 {approx = true} : vector<4x8x1xf32> -> vector<4x8x1xf32>
    %36 = vector.broadcast %35 : vector<4x8x1xf32> to vector<4x8x8xf32>
    %37 = arith.mulf %32, %36 : vector<4x8x8xf32>
    "tpu.trace_start"() <{level = 10 : i32, message = "bqk,bkd->bqd"}> : () -> ()
    %cst_11 = arith.constant dense<0.000000e+00> : vector<4x8x16xf32>
    %38 = tpu.matmul %37, %26, %cst_11 {dimension_numbers = #tpu.dot_dimension_numbers<[2], [1], [1], [2], [0, 0, 0, 1, 1, 2], [0], [0]>} : vector<4x8x8xf32>, vector<4x8x16xf32>, vector<4x8x16xf32> -> vector<4x8x16xf32>
    "tpu.trace_stop"() : () -> ()
    %39 = vector.shape_cast %38 : vector<4x8x16xf32> to vector<2x2x8x16xf32>
    %40 = tpu.transpose %39, [0, 2, 1, 3] : vector<2x2x8x16xf32> -> vector<2x8x2x16xf32>
    %41 = vector.shape_cast %40 : vector<2x8x2x16xf32> to vector<16x32xf32>
    %42 = arith.truncf %41 : vector<16x32xf32> to vector<16x32xbf16>
    %c0_12 = arith.constant 0 : index
    %c1 = arith.constant 1 : index
    %c0_13 = arith.constant 0 : index
    %c0_14 = arith.constant 0 : index
    %43 = vector.load %arg1[%c0_12, %c1, %c0_13, %c0_14] : memref<2x4x128x128xbf16, #tpu.memory_space<vmem>>, vector<1x1x32x128xbf16>
    %44 = vector.shape_cast %43 : vector<1x1x32x128xbf16> to vector<32x128xbf16>
    %cst_15 = arith.constant dense<0.000000e+00> : vector<16x128xf32>
    %45 = tpu.matmul %42, %44, %cst_15 {dimension_numbers = #tpu.dot_dimension_numbers<[1], [0], [0], [1], [0, 0, 1, 1], [], []>} : vector<16x32xbf16>, vector<32x128xbf16>, vector<16x128xf32> -> vector<16x128xf32>
    %46 = vector.broadcast %3 : vector<1x128xf32> to vector<16x128xf32>
    %47 = arith.addf %45, %46 : vector<16x128xf32>
    %48 = arith.addf %47, %0 : vector<16x128xf32>
    %cst_16 = arith.constant dense<0.000000e+00> : vector<16xf32>
    %49 = vector.multi_reduction <add>, %48, %cst_16 [1] : vector<16x128xf32> to vector<16xf32>
    %50 = vector.shape_cast %49 : vector<16xf32> to vector<16x1xf32>
    %cst_17 = arith.constant 3.125000e-02 : f32
    %51 = vector.broadcast %cst_17 : f32 to vector<16x1xf32>
    %52 = arith.mulf %50, %51 : vector<16x1xf32>
    %53 = arith.mulf %48, %48 : vector<16x128xf32>
    %cst_18 = arith.constant dense<0.000000e+00> : vector<16xf32>
    %54 = vector.multi_reduction <add>, %53, %cst_18 [1] : vector<16x128xf32> to vector<16xf32>
    %55 = vector.shape_cast %54 : vector<16xf32> to vector<16x1xf32>
    %cst_19 = arith.constant 3.125000e-02 : f32
    %56 = vector.broadcast %cst_19 : f32 to vector<16x1xf32>
    %57 = arith.mulf %55, %56 : vector<16x1xf32>
    %58 = arith.mulf %52, %52 : vector<16x1xf32>
    %59 = arith.subf %57, %58 : vector<16x1xf32>
    %60 = vector.broadcast %52 : vector<16x1xf32> to vector<16x128xf32>
    %61 = arith.subf %48, %60 : vector<16x128xf32>
    %cst_20 = arith.constant 9.99999997E-7 : f32
    %62 = vector.broadcast %cst_20 : f32 to vector<16x1xf32>
    %63 = arith.addf %59, %62 : vector<16x1xf32>
    %64 = math.rsqrt %63 : vector<16x1xf32>
    %65 = vector.broadcast %64 : vector<16x1xf32> to vector<16x128xf32>
    %66 = arith.mulf %61, %65 : vector<16x128xf32>
    %67 = vector.broadcast %4 : vector<1x128xf32> to vector<16x128xf32>
    %68 = arith.mulf %66, %67 : vector<16x128xf32>
    %69 = vector.broadcast %5 : vector<1x128xf32> to vector<16x128xf32>
    %70 = arith.addf %68, %69 : vector<16x128xf32>
    %71 = arith.truncf %70 : vector<16x128xf32> to vector<16x128xbf16>
    %c0_21 = arith.constant 0 : index
    %c2 = arith.constant 2 : index
    %c0_22 = arith.constant 0 : index
    %c0_23 = arith.constant 0 : index
    %72 = vector.load %arg1[%c0_21, %c2, %c0_22, %c0_23] : memref<2x4x128x128xbf16, #tpu.memory_space<vmem>>, vector<1x1x128x128xbf16>
    %73 = vector.shape_cast %72 : vector<1x1x128x128xbf16> to vector<128x128xbf16>
    %cst_24 = arith.constant dense<0.000000e+00> : vector<16x128xf32>
    %74 = tpu.matmul %71, %73, %cst_24 {dimension_numbers = #tpu.dot_dimension_numbers<[1], [0], [0], [1], [0, 0, 1, 1], [], []>} : vector<16x128xbf16>, vector<128x128xbf16>, vector<16x128xf32> -> vector<16x128xf32>
    %75 = vector.broadcast %6 : vector<1x128xf32> to vector<16x128xf32>
    %76 = arith.addf %74, %75 : vector<16x128xf32>
    %cst_25 = arith.constant 0.000000e+00 : f32
    %77 = vector.broadcast %cst_25 : f32 to vector<16x128xf32>
    %78 = arith.maximumf %76, %77 : vector<16x128xf32>
    %79 = arith.truncf %78 : vector<16x128xf32> to vector<16x128xbf16>
    %c0_26 = arith.constant 0 : index
    %c3 = arith.constant 3 : index
    %c0_27 = arith.constant 0 : index
    %c0_28 = arith.constant 0 : index
    %80 = vector.load %arg1[%c0_26, %c3, %c0_27, %c0_28] : memref<2x4x128x128xbf16, #tpu.memory_space<vmem>>, vector<1x1x128x128xbf16>
    %81 = vector.shape_cast %80 : vector<1x1x128x128xbf16> to vector<128x128xbf16>
    %cst_29 = arith.constant dense<0.000000e+00> : vector<16x128xf32>
    %82 = tpu.matmul %79, %81, %cst_29 {dimension_numbers = #tpu.dot_dimension_numbers<[1], [0], [0], [1], [0, 0, 1, 1], [], []>} : vector<16x128xbf16>, vector<128x128xbf16>, vector<16x128xf32> -> vector<16x128xf32>
    %83 = vector.broadcast %7 : vector<1x128xf32> to vector<16x128xf32>
    %84 = arith.addf %82, %83 : vector<16x128xf32>
    %85 = arith.addf %84, %70 : vector<16x128xf32>
    %cst_30 = arith.constant dense<0.000000e+00> : vector<16xf32>
    %86 = vector.multi_reduction <add>, %85, %cst_30 [1] : vector<16x128xf32> to vector<16xf32>
    %87 = vector.shape_cast %86 : vector<16xf32> to vector<16x1xf32>
    %cst_31 = arith.constant 3.125000e-02 : f32
    %88 = vector.broadcast %cst_31 : f32 to vector<16x1xf32>
    %89 = arith.mulf %87, %88 : vector<16x1xf32>
    %90 = arith.mulf %85, %85 : vector<16x128xf32>
    %cst_32 = arith.constant dense<0.000000e+00> : vector<16xf32>
    %91 = vector.multi_reduction <add>, %90, %cst_32 [1] : vector<16x128xf32> to vector<16xf32>
    %92 = vector.shape_cast %91 : vector<16xf32> to vector<16x1xf32>
    %cst_33 = arith.constant 3.125000e-02 : f32
    %93 = vector.broadcast %cst_33 : f32 to vector<16x1xf32>
    %94 = arith.mulf %92, %93 : vector<16x1xf32>
    %95 = arith.mulf %89, %89 : vector<16x1xf32>
    %96 = arith.subf %94, %95 : vector<16x1xf32>
    %97 = vector.broadcast %89 : vector<16x1xf32> to vector<16x128xf32>
    %98 = arith.subf %85, %97 : vector<16x128xf32>
    %cst_34 = arith.constant 9.99999997E-7 : f32
    %99 = vector.broadcast %cst_34 : f32 to vector<16x1xf32>
    %100 = arith.addf %96, %99 : vector<16x1xf32>
    %101 = math.rsqrt %100 : vector<16x1xf32>
    %102 = vector.broadcast %101 : vector<16x1xf32> to vector<16x128xf32>
    %103 = arith.mulf %98, %102 : vector<16x128xf32>
    %104 = vector.broadcast %8 : vector<1x128xf32> to vector<16x128xf32>
    %105 = arith.mulf %103, %104 : vector<16x128xf32>
    %106 = vector.broadcast %9 : vector<1x128xf32> to vector<16x128xf32>
    %107 = arith.addf %105, %106 : vector<16x128xf32>
    %c1_35 = arith.constant 1 : index
    %c0_36 = arith.constant 0 : index
    %c0_37 = arith.constant 0 : index
    %108 = vector.load %arg2[%c1_35, %c0_36, %c0_37] : memref<2x8x128xf32, #tpu.memory_space<vmem>>, vector<1x8x128xf32>
    %109 = vector.shape_cast %108 : vector<1x8x128xf32> to vector<8x128xf32>
    %110 = vector.extract_strided_slice %109 {offsets = [0, 0], sizes = [1, 128], strides = [1, 1]} : vector<8x128xf32> to vector<1x128xf32>
    %111 = vector.extract_strided_slice %109 {offsets = [1, 0], sizes = [1, 128], strides = [1, 1]} : vector<8x128xf32> to vector<1x128xf32>
    %112 = vector.extract_strided_slice %109 {offsets = [2, 0], sizes = [1, 128], strides = [1, 1]} : vector<8x128xf32> to vector<1x128xf32>
    %113 = vector.extract_strided_slice %109 {offsets = [3, 0], sizes = [1, 128], strides = [1, 1]} : vector<8x128xf32> to vector<1x128xf32>
    %114 = vector.extract_strided_slice %109 {offsets = [4, 0], sizes = [1, 128], strides = [1, 1]} : vector<8x128xf32> to vector<1x128xf32>
    %115 = vector.extract_strided_slice %109 {offsets = [5, 0], sizes = [1, 128], strides = [1, 1]} : vector<8x128xf32> to vector<1x128xf32>
    %116 = vector.extract_strided_slice %109 {offsets = [6, 0], sizes = [1, 128], strides = [1, 1]} : vector<8x128xf32> to vector<1x128xf32>
    %117 = arith.truncf %107 : vector<16x128xf32> to vector<16x128xbf16>
    %c1_38 = arith.constant 1 : index
    %c0_39 = arith.constant 0 : index
    %c0_40 = arith.constant 0 : index
    %c0_41 = arith.constant 0 : index
    %118 = vector.load %arg1[%c1_38, %c0_39, %c0_40, %c0_41] : memref<2x4x128x128xbf16, #tpu.memory_space<vmem>>, vector<1x1x128x128xbf16>
    %119 = vector.shape_cast %118 : vector<1x1x128x128xbf16> to vector<128x128xbf16>
    %cst_42 = arith.constant dense<0.000000e+00> : vector<16x128xf32>
    %120 = tpu.matmul %117, %119, %cst_42 {dimension_numbers = #tpu.dot_dimension_numbers<[1], [0], [0], [1], [0, 0, 1, 1], [], []>} : vector<16x128xbf16>, vector<128x128xbf16>, vector<16x128xf32> -> vector<16x128xf32>
    %121 = vector.shape_cast %120 : vector<16x128xf32> to vector<2x8x128xf32>
    %122 = vector.extract_strided_slice %121 {offsets = [0, 0, 0], sizes = [2, 8, 32], strides = [1, 1, 1]} : vector<2x8x128xf32> to vector<2x8x32xf32>
    %123 = vector.shape_cast %122 : vector<2x8x32xf32> to vector<2x8x2x16xf32>
    %124 = tpu.transpose %123, [0, 2, 1, 3] : vector<2x8x2x16xf32> -> vector<2x2x8x16xf32>
    %125 = vector.shape_cast %124 : vector<2x2x8x16xf32> to vector<4x8x16xf32>
    %126 = vector.extract_strided_slice %121 {offsets = [0, 0, 32], sizes = [2, 8, 32], strides = [1, 1, 1]} : vector<2x8x128xf32> to vector<2x8x32xf32>
    %127 = vector.shape_cast %126 : vector<2x8x32xf32> to vector<2x8x2x16xf32>
    %128 = tpu.transpose %127, [0, 2, 1, 3] : vector<2x8x2x16xf32> -> vector<2x2x8x16xf32>
    %129 = vector.shape_cast %128 : vector<2x2x8x16xf32> to vector<4x8x16xf32>
    %130 = vector.extract_strided_slice %121 {offsets = [0, 0, 64], sizes = [2, 8, 32], strides = [1, 1, 1]} : vector<2x8x128xf32> to vector<2x8x32xf32>
    %131 = vector.shape_cast %130 : vector<2x8x32xf32> to vector<2x8x2x16xf32>
    %132 = tpu.transpose %131, [0, 2, 1, 3] : vector<2x8x2x16xf32> -> vector<2x2x8x16xf32>
    %133 = vector.shape_cast %132 : vector<2x2x8x16xf32> to vector<4x8x16xf32>
    "tpu.trace_start"() <{level = 10 : i32, message = "bqd,bkd->bqk"}> : () -> ()
    %cst_43 = arith.constant dense<0.000000e+00> : vector<4x8x8xf32>
    %134 = tpu.matmul %125, %129, %cst_43 {dimension_numbers = #tpu.dot_dimension_numbers<[2], [2], [1], [1], [0, 0, 0, 1, 1, 1], [0], [0]>} : vector<4x8x16xf32>, vector<4x8x16xf32>, vector<4x8x8xf32> -> vector<4x8x8xf32>
    "tpu.trace_stop"() : () -> ()
    %cst_44 = arith.constant dense<0xFF800000> : vector<4x8xf32>
    %135 = vector.multi_reduction <maximumf>, %134, %cst_44 [2] : vector<4x8x8xf32> to vector<4x8xf32>
    %136 = vector.shape_cast %135 : vector<4x8xf32> to vector<4x8x1xf32>
    %137 = vector.broadcast %136 : vector<4x8x1xf32> to vector<4x8x8xf32>
    %138 = arith.subf %134, %137 : vector<4x8x8xf32>
    %139 = math.exp %138 : vector<4x8x8xf32>
    %cst_45 = arith.constant dense<0.000000e+00> : vector<4x8xf32>
    %140 = vector.multi_reduction <add>, %139, %cst_45 [2] : vector<4x8x8xf32> to vector<4x8xf32>
    %141 = vector.shape_cast %140 : vector<4x8xf32> to vector<4x8x1xf32>
    %142 = tpu.reciprocal %141 {approx = true} : vector<4x8x1xf32> -> vector<4x8x1xf32>
    %143 = vector.broadcast %142 : vector<4x8x1xf32> to vector<4x8x8xf32>
    %144 = arith.mulf %139, %143 : vector<4x8x8xf32>
    "tpu.trace_start"() <{level = 10 : i32, message = "bqk,bkd->bqd"}> : () -> ()
    %cst_46 = arith.constant dense<0.000000e+00> : vector<4x8x16xf32>
    %145 = tpu.matmul %144, %133, %cst_46 {dimension_numbers = #tpu.dot_dimension_numbers<[2], [1], [1], [2], [0, 0, 0, 1, 1, 2], [0], [0]>} : vector<4x8x8xf32>, vector<4x8x16xf32>, vector<4x8x16xf32> -> vector<4x8x16xf32>
    "tpu.trace_stop"() : () -> ()
    %146 = vector.shape_cast %145 : vector<4x8x16xf32> to vector<2x2x8x16xf32>
    %147 = tpu.transpose %146, [0, 2, 1, 3] : vector<2x2x8x16xf32> -> vector<2x8x2x16xf32>
    %148 = vector.shape_cast %147 : vector<2x8x2x16xf32> to vector<16x32xf32>
    %149 = arith.truncf %148 : vector<16x32xf32> to vector<16x32xbf16>
    %c1_47 = arith.constant 1 : index
    %c1_48 = arith.constant 1 : index
    %c0_49 = arith.constant 0 : index
    %c0_50 = arith.constant 0 : index
    %150 = vector.load %arg1[%c1_47, %c1_48, %c0_49, %c0_50] : memref<2x4x128x128xbf16, #tpu.memory_space<vmem>>, vector<1x1x32x128xbf16>
    %151 = vector.shape_cast %150 : vector<1x1x32x128xbf16> to vector<32x128xbf16>
    %cst_51 = arith.constant dense<0.000000e+00> : vector<16x128xf32>
    %152 = tpu.matmul %149, %151, %cst_51 {dimension_numbers = #tpu.dot_dimension_numbers<[1], [0], [0], [1], [0, 0, 1, 1], [], []>} : vector<16x32xbf16>, vector<32x128xbf16>, vector<16x128xf32> -> vector<16x128xf32>
    %153 = vector.broadcast %110 : vector<1x128xf32> to vector<16x128xf32>
    %154 = arith.addf %152, %153 : vector<16x128xf32>
    %155 = arith.addf %154, %107 : vector<16x128xf32>
    %cst_52 = arith.constant dense<0.000000e+00> : vector<16xf32>
    %156 = vector.multi_reduction <add>, %155, %cst_52 [1] : vector<16x128xf32> to vector<16xf32>
    %157 = vector.shape_cast %156 : vector<16xf32> to vector<16x1xf32>
    %cst_53 = arith.constant 3.125000e-02 : f32
    %158 = vector.broadcast %cst_53 : f32 to vector<16x1xf32>
    %159 = arith.mulf %157, %158 : vector<16x1xf32>
    %160 = arith.mulf %155, %155 : vector<16x128xf32>
    %cst_54 = arith.constant dense<0.000000e+00> : vector<16xf32>
    %161 = vector.multi_reduction <add>, %160, %cst_54 [1] : vector<16x128xf32> to vector<16xf32>
    %162 = vector.shape_cast %161 : vector<16xf32> to vector<16x1xf32>
    %cst_55 = arith.constant 3.125000e-02 : f32
    %163 = vector.broadcast %cst_55 : f32 to vector<16x1xf32>
    %164 = arith.mulf %162, %163 : vector<16x1xf32>
    %165 = arith.mulf %159, %159 : vector<16x1xf32>
    %166 = arith.subf %164, %165 : vector<16x1xf32>
    %167 = vector.broadcast %159 : vector<16x1xf32> to vector<16x128xf32>
    %168 = arith.subf %155, %167 : vector<16x128xf32>
    %cst_56 = arith.constant 9.99999997E-7 : f32
    %169 = vector.broadcast %cst_56 : f32 to vector<16x1xf32>
    %170 = arith.addf %166, %169 : vector<16x1xf32>
    %171 = math.rsqrt %170 : vector<16x1xf32>
    %172 = vector.broadcast %171 : vector<16x1xf32> to vector<16x128xf32>
    %173 = arith.mulf %168, %172 : vector<16x128xf32>
    %174 = vector.broadcast %111 : vector<1x128xf32> to vector<16x128xf32>
    %175 = arith.mulf %173, %174 : vector<16x128xf32>
    %176 = vector.broadcast %112 : vector<1x128xf32> to vector<16x128xf32>
    %177 = arith.addf %175, %176 : vector<16x128xf32>
    %178 = arith.truncf %177 : vector<16x128xf32> to vector<16x128xbf16>
    %c1_57 = arith.constant 1 : index
    %c2_58 = arith.constant 2 : index
    %c0_59 = arith.constant 0 : index
    %c0_60 = arith.constant 0 : index
    %179 = vector.load %arg1[%c1_57, %c2_58, %c0_59, %c0_60] : memref<2x4x128x128xbf16, #tpu.memory_space<vmem>>, vector<1x1x128x128xbf16>
    %180 = vector.shape_cast %179 : vector<1x1x128x128xbf16> to vector<128x128xbf16>
    %cst_61 = arith.constant dense<0.000000e+00> : vector<16x128xf32>
    %181 = tpu.matmul %178, %180, %cst_61 {dimension_numbers = #tpu.dot_dimension_numbers<[1], [0], [0], [1], [0, 0, 1, 1], [], []>} : vector<16x128xbf16>, vector<128x128xbf16>, vector<16x128xf32> -> vector<16x128xf32>
    %182 = vector.broadcast %113 : vector<1x128xf32> to vector<16x128xf32>
    %183 = arith.addf %181, %182 : vector<16x128xf32>
    %cst_62 = arith.constant 0.000000e+00 : f32
    %184 = vector.broadcast %cst_62 : f32 to vector<16x128xf32>
    %185 = arith.maximumf %183, %184 : vector<16x128xf32>
    %186 = arith.truncf %185 : vector<16x128xf32> to vector<16x128xbf16>
    %c1_63 = arith.constant 1 : index
    %c3_64 = arith.constant 3 : index
    %c0_65 = arith.constant 0 : index
    %c0_66 = arith.constant 0 : index
    %187 = vector.load %arg1[%c1_63, %c3_64, %c0_65, %c0_66] : memref<2x4x128x128xbf16, #tpu.memory_space<vmem>>, vector<1x1x128x128xbf16>
    %188 = vector.shape_cast %187 : vector<1x1x128x128xbf16> to vector<128x128xbf16>
    %cst_67 = arith.constant dense<0.000000e+00> : vector<16x128xf32>
    %189 = tpu.matmul %186, %188, %cst_67 {dimension_numbers = #tpu.dot_dimension_numbers<[1], [0], [0], [1], [0, 0, 1, 1], [], []>} : vector<16x128xbf16>, vector<128x128xbf16>, vector<16x128xf32> -> vector<16x128xf32>
    %190 = vector.broadcast %114 : vector<1x128xf32> to vector<16x128xf32>
    %191 = arith.addf %189, %190 : vector<16x128xf32>
    %192 = arith.addf %191, %177 : vector<16x128xf32>
    %cst_68 = arith.constant dense<0.000000e+00> : vector<16xf32>
    %193 = vector.multi_reduction <add>, %192, %cst_68 [1] : vector<16x128xf32> to vector<16xf32>
    %194 = vector.shape_cast %193 : vector<16xf32> to vector<16x1xf32>
    %cst_69 = arith.constant 3.125000e-02 : f32
    %195 = vector.broadcast %cst_69 : f32 to vector<16x1xf32>
    %196 = arith.mulf %194, %195 : vector<16x1xf32>
    %197 = arith.mulf %192, %192 : vector<16x128xf32>
    %cst_70 = arith.constant dense<0.000000e+00> : vector<16xf32>
    %198 = vector.multi_reduction <add>, %197, %cst_70 [1] : vector<16x128xf32> to vector<16xf32>
    %199 = vector.shape_cast %198 : vector<16xf32> to vector<16x1xf32>
    %cst_71 = arith.constant 3.125000e-02 : f32
    %200 = vector.broadcast %cst_71 : f32 to vector<16x1xf32>
    %201 = arith.mulf %199, %200 : vector<16x1xf32>
    %202 = arith.mulf %196, %196 : vector<16x1xf32>
    %203 = arith.subf %201, %202 : vector<16x1xf32>
    %204 = vector.broadcast %196 : vector<16x1xf32> to vector<16x128xf32>
    %205 = arith.subf %192, %204 : vector<16x128xf32>
    %cst_72 = arith.constant 9.99999997E-7 : f32
    %206 = vector.broadcast %cst_72 : f32 to vector<16x1xf32>
    %207 = arith.addf %203, %206 : vector<16x1xf32>
    %208 = math.rsqrt %207 : vector<16x1xf32>
    %209 = vector.broadcast %208 : vector<16x1xf32> to vector<16x128xf32>
    %210 = arith.mulf %205, %209 : vector<16x128xf32>
    %211 = vector.broadcast %115 : vector<1x128xf32> to vector<16x128xf32>
    %212 = arith.mulf %210, %211 : vector<16x128xf32>
    %213 = vector.broadcast %116 : vector<1x128xf32> to vector<16x128xf32>
    %214 = arith.addf %212, %213 : vector<16x128xf32>
    %c0_73 = arith.constant 0 : index
    %c0_74 = arith.constant 0 : index
    %215 = vector.load %arg3[%c0_73, %c0_74] : memref<16x128xf32, #tpu.memory_space<vmem>>, vector<16x128xf32>
    tpu.vector_store %arg3[%c0_73, %c0_74], %214 {strides = array<i32>} : memref<16x128xf32, #tpu.memory_space<vmem>>, vector<16x128xf32>,
    return
  }
}

</mosaic_0001>

<llo_original>
// kernel: encoder_forward.1
$region0: #{encoder_forward.1}
  #allocation0 [shape = 'u32[]', space=smem, size = 0x4, offset = 0x4, fixed_abs, tag = 'smem constant byte address 0x4 - core index']
  #allocation1 [shape = 'u32[144,128]{1,0:T(1,128)}', space=vmem, size = 0x12000, scoped, tag = 'internal scratch']
  %s0 = inlined_call_operand.vmem [shape: f32[16,128], index: 0, kind: input, shape index: {}]
  %s1 = inlined_call_operand.hbm [shape: bf16[2,4,128,128], index: 1, kind: input, shape index: {}]
  %s2 = inlined_call_operand.vmem [shape: f32[2,8,128], index: 2, kind: input, shape index: {}]
  %s3 = inlined_call_operand.vmem [shape: f32[16,128], index: 3, kind: output, shape index: {}]
  %s4 = sld [smem:[#allocation0]]
  $region26: #{encoder_forward.1} parent=0
    _
  %s6 = ssub.s32 1, %s4
  %s7 = scalar_select 0, %s6, %s4
  $region1: #{encoder_forward.1} parent=0
    #allocation2 [shape = 'u8[262144]{0}', space=vmem, size = 0x40000, scoped, tag = 'input window, operand 1, single buffered']
    #allocation3 [shape = 's32[1]{0}', space=sflag, size = 0x4, scoped, tag = 'scoped memory for encoder_forward.1']
    %8 = vsyncpa [#allocation3], 0
    // Predicated region
    $region2: #{encoder_forward.1} parent=1 // pred_check
      _
    $region3: #{encoder_forward.1} parent=1 // pred_check_branch
      %10 = sbr.rel (0) target = $region5
    $region4: #{encoder_forward.1} parent=1 // pred_region
      _
    $region5: #{encoder_forward.1} parent=1 // pred_fallthru
      _
    // Predicated region
    $region6: #{encoder_forward.1} parent=1 // pred_check
      _
    $region7: #{encoder_forward.1} parent=1 // pred_check_branch
      %12 = sbr.rel (0) target = $region9
    $region8: #{encoder_forward.1} parent=1 // pred_region
      %s14 = ssub.s32 8192, 8192
      %15 = vsyncadd [#allocation3], %s14
      %s16 = sshll.u32 [#allocation2], 4
      %s17 = int_to_ptr.vmem [resolvable:$true] %s16
      %22 = dma.hbm_to_vmem [thread:$0]  %s1, 8192, %s17, [#allocation3], 64, 64, 4
    $region9: #{encoder_forward.1} parent=1 // pred_fallthru
      _
    // Predicated region
    $region10: #{encoder_forward.1} parent=1 // pred_check
      _
    $region11: #{encoder_forward.1} parent=1 // pred_check_branch
      %24 = sbr.rel (0) target = $region13
    $region12: #{encoder_forward.1} parent=1 // pred_region
      _
    $region13: #{encoder_forward.1} parent=1 // pred_fallthru
      _
    // Predicated region
    $region14: #{encoder_forward.1} parent=1 // pred_check
      _
    $region15: #{encoder_forward.1} parent=1 // pred_check_branch
      %26 = sbr.rel (0) target = $region17
    $region16: #{encoder_forward.1} parent=1 // pred_region
      %27 = dma.done [#allocation3], 8192
    $region17: #{encoder_forward.1} parent=1 // pred_fallthru
      _
    %v29 = vld [vmem:[%s0] sm:$0xff]
    %v30 = vld [vmem:[%s0 + $0x8] sm:$0xff]
    %v31 = vld [vmem:[%s2] sm:$0xff]
    %v32 = vpack.c.bf16 %v30, %v29
    %v33 = vld [vmem:[#allocation2] sm:$0xf]
    %v34 = vld [vmem:[#allocation2 + $0x4] sm:$0xf]
    %v35 = vld [vmem:[#allocation2 + $0x8] sm:$0xf]
    %v36 = vld [vmem:[#allocation2 + $0xc] sm:$0xf]
    %v37 = vld [vmem:[#allocation2 + $0x10] sm:$0xf]
    %v38 = vld [vmem:[#allocation2 + $0x14] sm:$0xf]
    %v39 = vld [vmem:[#allocation2 + $0x18] sm:$0xf]
    %v40 = vld [vmem:[#allocation2 + $0x1c] sm:$0xf]
    %v41 = vld [vmem:[#allocation2 + $0x20] sm:$0xf]
    %v42 = vld [vmem:[#allocation2 + $0x24] sm:$0xf]
    %v43 = vld [vmem:[#allocation2 + $0x28] sm:$0xf]
    %v44 = vld [vmem:[#allocation2 + $0x2c] sm:$0xf]
    %v45 = vld [vmem:[#allocation2 + $0x30] sm:$0xf]
    %v46 = vld [vmem:[#allocation2 + $0x34] sm:$0xf]
    %v47 = vld [vmem:[#allocation2 + $0x38] sm:$0xf]
    %v48 = vld [vmem:[#allocation2 + $0x3c] sm:$0xf]
    %v65 = vunpack.c.l.b16 %v33
    %v66 = vunpack.c.l.b16 %v34
    %v67 = vunpack.c.l.b16 %v35
    %v68 = vunpack.c.l.b16 %v36
    %v69 = vunpack.c.l.b16 %v37
    %v70 = vunpack.c.l.b16 %v38
    %v71 = vunpack.c.l.b16 %v39
    %v72 = vunpack.c.l.b16 %v40
    %v73 = vunpack.c.l.b16 %v41
    %v74 = vunpack.c.l.b16 %v42
    %v75 = vunpack.c.l.b16 %v43
    %v76 = vunpack.c.l.b16 %v44
    %v77 = vunpack.c.l.b16 %v45
    %v78 = vunpack.c.l.b16 %v46
    %v79 = vunpack.c.l.b16 %v47
    %v80 = vunpack.c.l.b16 %v48
    %v81 = vpack.c.b16 %v66, %v65
    %v82 = vpack.c.b16 %v68, %v67
    %v83 = vpack.c.b16 %v70, %v69
    %v84 = vpack.c.b16 %v72, %v71
    %v85 = vpack.c.b16 %v74, %v73
    %v86 = vpack.c.b16 %v76, %v75
    %v87 = vpack.c.b16 %v78, %v77
    %v88 = vpack.c.b16 %v80, %v79
    %97 = vmatprep.subr.bf16.mxu0 0
    %98 = vmatpush1.bf16.msra.mxu0 %v81
    %99 = vmatprep.subr.bf16.mxu0 0
    %100 = vmatpush1.bf16.msra.mxu0 %v82
    %101 = vmatprep.subr.bf16.mxu0 0
    %102 = vmatpush1.bf16.msra.mxu0 %v83
    %103 = vmatprep.subr.bf16.mxu0 0
    %104 = vmatpush1.bf16.msra.mxu0 %v84
    %105 = vmatprep.subr.bf16.mxu0 0
    %106 = vmatpush1.bf16.msra.mxu0 %v85
    %107 = vmatprep.subr.bf16.mxu0 0
    %108 = vmatpush1.bf16.msra.mxu0 %v86
    %109 = vmatprep.subr.bf16.mxu0 0
    %110 = vmatpush1.bf16.msra.mxu0 %v87
    %111 = vmatprep.subr.bf16.mxu0 0
    %112 = vmatpush1.bf16.msra.mxu0 %v88
    %113 = vmatprep.subr.bf16.mxu0 0
    %114 = vmatpush1.bf16.msra.mxu0 0
    %115 = vmatprep.subr.bf16.mxu0 0
    %116 = vmatpush1.bf16.msra.mxu0 0
    %117 = vmatprep.subr.bf16.mxu0 0
    %118 = vmatpush1.bf16.msra.mxu0 0
    %119 = vmatprep.subr.bf16.mxu0 0
    %120 = vmatpush1.bf16.msra.mxu0 0
    %121 = vmatprep.subr.bf16.mxu0 0
    %122 = vmatpush1.bf16.msra.mxu0 0
    %123 = vmatprep.subr.bf16.mxu0 0
    %124 = vmatpush1.bf16.msra.mxu0 0
    %125 = vmatprep.subr.bf16.mxu0 0
    %126 = vmatpush1.bf16.msra.mxu0 0
    %127 = vmatprep.subr.bf16.mxu0 0
    %128 = vmatpush1.bf16.msra.mxu0 0
    %129 = vmatprep.mubr.bf16.mxu0 0
    %130 = vmatmul.mubr.bf16.gmra.mrb[0].mxu0 %v32
    %v131 = vpop.f32.mrb[0].mxu0
    %v132 = vadd.f32 0.0, %v131
    %v133 = vpop.f32.mrb[0].mxu0
    %v134 = vpop.f32.mrb[0].mxu0
    %v135 = vadd.f32 0.0, %v134
    %v136 = vpop.f32.mrb[0].mxu0
    %137 = vdwg.mxu0
    %140 = vrot.lane.b32.xlu0 %v132, 112
    %v141 = vpop.permute.xlu0 %140
    %142 = vrot.lane.b32.xlu0 %v135, 112
    %v143 = vpop.permute.xlu0 %142
    %v146 = vcombine.high %v132, 0.0
    %v148 = vunpack.c.l.s4 1983009808
    %v149 = vunpack.c.0.s8 %v148
    %v150 = vlaneseq
    %v151 = vshrl.u32 %v150, 7
    %v152 = vsub.s32 %v149, %v151
    %v153 = vrot.slane %v132, %v152
    %v155 = vunpack.c.l.s4 1983009808
    %v156 = vunpack.c.0.s8 %v155
    %v157 = vlaneseq
    %v158 = vshrl.u32 %v157, 7
    %v159 = vsub.s32 %v156, %v158
    %v160 = vrot.slane %v146, %v159
    %v161 = vcombine.high %v141, 0.0
    %v163 = vunpack.c.l.s4 1983009808
    %v164 = vunpack.c.0.s8 %v163
    %v165 = vlaneseq
    %v166 = vshrl.u32 %v165, 7
    %v167 = vsub.s32 %v164, %v166
    %v168 = vrot.slane %v141, %v167
    %v170 = vunpack.c.l.s4 1983009808
    %v171 = vunpack.c.0.s8 %v170
    %v172 = vlaneseq
    %v173 = vshrl.u32 %v172, 7
    %v174 = vsub.s32 %v171, %v173
    %v175 = vrot.slane %v161, %v174
    %v176 = vcombine.low %v153, %v168
    %v177 = vcombine.high %v153, %v168
    %v179 = vunpack.c.l.s4 1934713408
    %v180 = vunpack.c.0.s8 %v179
    %v181 = vlaneseq
    %v182 = vshrl.u32 %v181, 7
    %v183 = vsub.s32 %v180, %v182
    %v184 = vrot.slane %v176, %v183
    %v186 = vunpack.c.l.s4 1934713408
    %v187 = vunpack.c.0.s8 %v186
    %v188 = vlaneseq
    %v189 = vshrl.u32 %v188, 7
    %v190 = vsub.s32 %v187, %v189
    %v191 = vrot.slane %v177, %v190
    %v192 = vcombine.low %v160, %v175
    %v193 = vcombine.high %v160, %v175
    %v195 = vunpack.c.l.s4 1934713408
    %v196 = vunpack.c.0.s8 %v195
    %v197 = vlaneseq
    %v198 = vshrl.u32 %v197, 7
    %v199 = vsub.s32 %v196, %v198
    %v200 = vrot.slane %v192, %v199
    %v202 = vunpack.c.l.s4 1934713408
    %v203 = vunpack.c.0.s8 %v202
    %v204 = vlaneseq
    %v205 = vshrl.u32 %v204, 7
    %v206 = vsub.s32 %v203, %v205
    %v207 = vrot.slane %v193, %v206
    %v208 = vcombine.high %v184, 0.0
    %v209 = vcombine.high %v191, 0.0
    %v210 = vcombine.high %v200, 0.0
    %v211 = vcombine.high %v207, 0.0
    %v212 = vcombine.high %v135, 0.0
    %v214 = vunpack.c.l.s4 1983009808
    %v215 = vunpack.c.0.s8 %v214
    %v216 = vlaneseq
    %v217 = vshrl.u32 %v216, 7
    %v218 = vsub.s32 %v215, %v217
    %v219 = vrot.slane %v135, %v218
    %v221 = vunpack.c.l.s4 1983009808
    %v222 = vunpack.c.0.s8 %v221
    %v223 = vlaneseq
    %v224 = vshrl.u32 %v223, 7
    %v225 = vsub.s32 %v222, %v224
    %v226 = vrot.slane %v212, %v225
    %v227 = vcombine.high %v143, 0.0
    %v229 = vunpack.c.l.s4 1983009808
    %v230 = vunpack.c.0.s8 %v229
    %v231 = vlaneseq
    %v232 = vshrl.u32 %v231, 7
    %v233 = vsub.s32 %v230, %v232
    %v234 = vrot.slane %v143, %v233
    %v236 = vunpack.c.l.s4 1983009808
    %v237 = vunpack.c.0.s8 %v236
    %v238 = vlaneseq
    %v239 = vshrl.u32 %v238, 7
    %v240 = vsub.s32 %v237, %v239
    %v241 = vrot.slane %v227, %v240
    %v242 = vcombine.low %v219, %v234
    %v243 = vcombine.high %v219, %v234
    %v245 = vunpack.c.l.s4 1934713408
    %v246 = vunpack.c.0.s8 %v245
    %v247 = vlaneseq
    %v248 = vshrl.u32 %v247, 7
    %v249 = vsub.s32 %v246, %v248
    %v250 = vrot.slane %v242, %v249
    %v252 = vunpack.c.l.s4 1934713408
    %v253 = vunpack.c.0.s8 %v252
    %v254 = vlaneseq
    %v255 = vshrl.u32 %v254, 7
    %v256 = vsub.s32 %v253, %v255
    %v257 = vrot.slane %v243, %v256
    %v258 = vcombine.low %v226, %v241
    %v259 = vcombine.high %v226, %v241
    %v261 = vunpack.c.l.s4 1934713408
    %v262 = vunpack.c.0.s8 %v261
    %v263 = vlaneseq
    %v264 = vshrl.u32 %v263, 7
    %v265 = vsub.s32 %v262, %v264
    %v266 = vrot.slane %v258, %v265
    %v268 = vunpack.c.l.s4 1934713408
    %v269 = vunpack.c.0.s8 %v268
    %v270 = vlaneseq
    %v271 = vshrl.u32 %v270, 7
    %v272 = vsub.s32 %v269, %v271
    %v273 = vrot.slane %v259, %v272
    %v274 = vcombine.high %v250, 0.0
    %v275 = vcombine.high %v257, 0.0
    %v276 = vcombine.high %v266, 0.0
    %v277 = vcombine.high %v273, 0.0
    %v278 = vcombine.low %v184, %v191
    %v280 = vunpack.c.l.s4 1983009808
    %v281 = vunpack.c.0.s8 %v280
    %v282 = vlaneseq
    %v283 = vshrl.u32 %v282, 7
    %v284 = vsub.s32 %v281, %v283
    %v285 = vrot.slane %v278, %v284
    %v286 = vcombine.low %v208, %v209
    %v288 = vunpack.c.l.s4 1983009808
    %v289 = vunpack.c.0.s8 %v288
    %v290 = vlaneseq
    %v291 = vshrl.u32 %v290, 7
    %v292 = vsub.s32 %v289, %v291
    %v293 = vrot.slane %v286, %v292
    %v294 = vcombine.low %v200, %v207
    %v296 = vunpack.c.l.s4 1983009808
    %v297 = vunpack.c.0.s8 %v296
    %v298 = vlaneseq
    %v299 = vshrl.u32 %v298, 7
    %v300 = vsub.s32 %v297, %v299
    %v301 = vrot.slane %v294, %v300
    %v302 = vcombine.low %v210, %v211
    %v304 = vunpack.c.l.s4 1983009808
    %v305 = vunpack.c.0.s8 %v304
    %v306 = vlaneseq
    %v307 = vshrl.u32 %v306, 7
    %v308 = vsub.s32 %v305, %v307
    %v309 = vrot.slane %v302, %v308
    %v310 = vcombine.low %v285, %v293
    %v312 = vunpack.c.l.s4 1934713408
    %v313 = vunpack.c.0.s8 %v312
    %v314 = vlaneseq
    %v315 = vshrl.u32 %v314, 7
    %v316 = vsub.s32 %v313, %v315
    %v317 = vrot.slane %v310, %v316
    %v318 = vcombine.low %v301, %v309
    %v320 = vunpack.c.l.s4 1934713408
    %v321 = vunpack.c.0.s8 %v320
    %v322 = vlaneseq
    %v323 = vshrl.u32 %v322, 7
    %v324 = vsub.s32 %v321, %v323
    %v325 = vrot.slane %v318, %v324
    %v326 = vcombine.low %v317, %v325
    %v327 = vcombine.high %v317, %v325
    %v328 = vcombine.low %v250, %v257
    %v330 = vunpack.c.l.s4 1983009808
    %v331 = vunpack.c.0.s8 %v330
    %v332 = vlaneseq
    %v333 = vshrl.u32 %v332, 7
    %v334 = vsub.s32 %v331, %v333
    %v335 = vrot.slane %v328, %v334
    %v336 = vcombine.low %v274, %v275
    %v338 = vunpack.c.l.s4 1983009808
    %v339 = vunpack.c.0.s8 %v338
    %v340 = vlaneseq
    %v341 = vshrl.u32 %v340, 7
    %v342 = vsub.s32 %v339, %v341
    %v343 = vrot.slane %v336, %v342
    %v344 = vcombine.low %v266, %v273
    %v346 = vunpack.c.l.s4 1983009808
    %v347 = vunpack.c.0.s8 %v346
    %v348 = vlaneseq
    %v349 = vshrl.u32 %v348, 7
    %v350 = vsub.s32 %v347, %v349
    %v351 = vrot.slane %v344, %v350
    %v352 = vcombine.low %v276, %v277
    %v354 = vunpack.c.l.s4 1983009808
    %v355 = vunpack.c.0.s8 %v354
    %v356 = vlaneseq
    %v357 = vshrl.u32 %v356, 7
    %v358 = vsub.s32 %v355, %v357
    %v359 = vrot.slane %v352, %v358
    %v360 = vcombine.low %v335, %v343
    %v362 = vunpack.c.l.s4 1934713408
    %v363 = vunpack.c.0.s8 %v362
    %v364 = vlaneseq
    %v365 = vshrl.u32 %v364, 7
    %v366 = vsub.s32 %v363, %v365
    %v367 = vrot.slane %v360, %v366
    %v368 = vcombine.low %v351, %v359
    %v370 = vunpack.c.l.s4 1934713408
    %v371 = vunpack.c.0.s8 %v370
    %v372 = vlaneseq
    %v373 = vshrl.u32 %v372, 7
    %v374 = vsub.s32 %v371, %v373
    %v375 = vrot.slane %v368, %v374
    %v376 = vcombine.low %v367, %v375
    %v377 = vcombine.high %v367, %v375
    %378 = vrot.lane.b32.xlu0 %v132, 96
    %v379 = vpop.permute.xlu0 %378
    %380 = vrot.lane.b32.xlu0 %v141, 96
    %v381 = vpop.permute.xlu0 %380
    %382 = vrot.lane.b32.xlu0 %v135, 96
    %v383 = vpop.permute.xlu0 %382
    %384 = vrot.lane.b32.xlu0 %v143, 96
    %v385 = vpop.permute.xlu0 %384
    %v390 = vcombine.high %v379, 0.0
    %v392 = vunpack.c.l.s4 1983009808
    %v393 = vunpack.c.0.s8 %v392
    %v394 = vlaneseq
    %v395 = vshrl.u32 %v394, 7
    %v396 = vsub.s32 %v393, %v395
    %v397 = vrot.slane %v379, %v396
    %v399 = vunpack.c.l.s4 1983009808
    %v400 = vunpack.c.0.s8 %v399
    %v401 = vlaneseq
    %v402 = vshrl.u32 %v401, 7
    %v403 = vsub.s32 %v400, %v402
    %v404 = vrot.slane %v390, %v403
    %v405 = vcombine.high %v381, 0.0
    %v407 = vunpack.c.l.s4 1983009808
    %v408 = vunpack.c.0.s8 %v407
    %v409 = vlaneseq
    %v410 = vshrl.u32 %v409, 7
    %v411 = vsub.s32 %v408, %v410
    %v412 = vrot.slane %v381, %v411
    %v414 = vunpack.c.l.s4 1983009808
    %v415 = vunpack.c.0.s8 %v414
    %v416 = vlaneseq
    %v417 = vshrl.u32 %v416, 7
    %v418 = vsub.s32 %v415, %v417
    %v419 = vrot.slane %v405, %v418
    %v420 = vcombine.low %v397, %v412
    %v421 = vcombine.high %v397, %v412
    %v423 = vunpack.c.l.s4 1934713408
    %v424 = vunpack.c.0.s8 %v423
    %v425 = vlaneseq
    %v426 = vshrl.u32 %v425, 7
    %v427 = vsub.s32 %v424, %v426
    %v428 = vrot.slane %v420, %v427
    %v430 = vunpack.c.l.s4 1934713408
    %v431 = vunpack.c.0.s8 %v430
    %v432 = vlaneseq
    %v433 = vshrl.u32 %v432, 7
    %v434 = vsub.s32 %v431, %v433
    %v435 = vrot.slane %v421, %v434
    %v436 = vcombine.low %v404, %v419
    %v437 = vcombine.high %v404, %v419
    %v439 = vunpack.c.l.s4 1934713408
    %v440 = vunpack.c.0.s8 %v439
    %v441 = vlaneseq
    %v442 = vshrl.u32 %v441, 7
    %v443 = vsub.s32 %v440, %v442
    %v444 = vrot.slane %v436, %v443
    %v446 = vunpack.c.l.s4 1934713408
    %v447 = vunpack.c.0.s8 %v446
    %v448 = vlaneseq
    %v449 = vshrl.u32 %v448, 7
    %v450 = vsub.s32 %v447, %v449
    %v451 = vrot.slane %v437, %v450
    %v452 = vcombine.high %v428, 0.0
    %v453 = vcombine.high %v435, 0.0
    %v454 = vcombine.high %v444, 0.0
    %v455 = vcombine.high %v451, 0.0
    %v456 = vcombine.high %v383, 0.0
    %v458 = vunpack.c.l.s4 1983009808
    %v459 = vunpack.c.0.s8 %v458
    %v460 = vlaneseq
    %v461 = vshrl.u32 %v460, 7
    %v462 = vsub.s32 %v459, %v461
    %v463 = vrot.slane %v383, %v462
    %v465 = vunpack.c.l.s4 1983009808
    %v466 = vunpack.c.0.s8 %v465
    %v467 = vlaneseq
    %v468 = vshrl.u32 %v467, 7
    %v469 = vsub.s32 %v466, %v468
    %v470 = vrot.slane %v456, %v469
    %v471 = vcombine.high %v385, 0.0
    %v473 = vunpack.c.l.s4 1983009808
    %v474 = vunpack.c.0.s8 %v473
    %v475 = vlaneseq
    %v476 = vshrl.u32 %v475, 7
    %v477 = vsub.s32 %v474, %v476
    %v478 = vrot.slane %v385, %v477
    %v480 = vunpack.c.l.s4 1983009808
    %v481 = vunpack.c.0.s8 %v480
    %v482 = vlaneseq
    %v483 = vshrl.u32 %v482, 7
    %v484 = vsub.s32 %v481, %v483
    %v485 = vrot.slane %v471, %v484
    %v486 = vcombine.low %v463, %v478
    %v487 = vcombine.high %v463, %v478
    %v489 = vunpack.c.l.s4 1934713408
    %v490 = vunpack.c.0.s8 %v489
    %v491 = vlaneseq
    %v492 = vshrl.u32 %v491, 7
    %v493 = vsub.s32 %v490, %v492
    %v494 = vrot.slane %v486, %v493
    %v496 = vunpack.c.l.s4 1934713408
    %v497 = vunpack.c.0.s8 %v496
    %v498 = vlaneseq
    %v499 = vshrl.u32 %v498, 7
    %v500 = vsub.s32 %v497, %v499
    %v501 = vrot.slane %v487, %v500
    %v502 = vcombine.low %v470, %v485
    %v503 = vcombine.high %v470, %v485
    %v505 = vunpack.c.l.s4 1934713408
    %v506 = vunpack.c.0.s8 %v505
    %v507 = vlaneseq
    %v508 = vshrl.u32 %v507, 7
    %v509 = vsub.s32 %v506, %v508
    %v510 = vrot.slane %v502, %v509
    %v512 = vunpack.c.l.s4 1934713408
    %v513 = vunpack.c.0.s8 %v512
    %v514 = vlaneseq
    %v515 = vshrl.u32 %v514, 7
    %v516 = vsub.s32 %v513, %v515
    %v517 = vrot.slane %v503, %v516
    %v518 = vcombine.high %v494, 0.0
    %v519 = vcombine.high %v501, 0.0
    %v520 = vcombine.high %v510, 0.0
    %v521 = vcombine.high %v517, 0.0
    %v522 = vcombine.low %v428, %v435
    %v524 = vunpack.c.l.s4 1983009808
    %v525 = vunpack.c.0.s8 %v524
    %v526 = vlaneseq
    %v527 = vshrl.u32 %v526, 7
    %v528 = vsub.s32 %v525, %v527
    %v529 = vrot.slane %v522, %v528
    %v530 = vcombine.low %v452, %v453
    %v532 = vunpack.c.l.s4 1983009808
    %v533 = vunpack.c.0.s8 %v532
    %v534 = vlaneseq
    %v535 = vshrl.u32 %v534, 7
    %v536 = vsub.s32 %v533, %v535
    %v537 = vrot.slane %v530, %v536
    %v538 = vcombine.low %v444, %v451
    %v540 = vunpack.c.l.s4 1983009808
    %v541 = vunpack.c.0.s8 %v540
    %v542 = vlaneseq
    %v543 = vshrl.u32 %v542, 7
    %v544 = vsub.s32 %v541, %v543
    %v545 = vrot.slane %v538, %v544
    %v546 = vcombine.low %v454, %v455
    %v548 = vunpack.c.l.s4 1983009808
    %v549 = vunpack.c.0.s8 %v548
    %v550 = vlaneseq
    %v551 = vshrl.u32 %v550, 7
    %v552 = vsub.s32 %v549, %v551
    %v553 = vrot.slane %v546, %v552
    %v554 = vcombine.low %v529, %v537
    %v556 = vunpack.c.l.s4 1934713408
    %v557 = vunpack.c.0.s8 %v556
    %v558 = vlaneseq
    %v559 = vshrl.u32 %v558, 7
    %v560 = vsub.s32 %v557, %v559
    %v561 = vrot.slane %v554, %v560
    %v562 = vcombine.low %v545, %v553
    %v564 = vunpack.c.l.s4 1934713408
    %v565 = vunpack.c.0.s8 %v564
    %v566 = vlaneseq
    %v567 = vshrl.u32 %v566, 7
    %v568 = vsub.s32 %v565, %v567
    %v569 = vrot.slane %v562, %v568
    %v570 = vcombine.low %v561, %v569
    %v571 = vcombine.high %v561, %v569
    %v572 = vcombine.low %v494, %v501
    %v574 = vunpack.c.l.s4 1983009808
    %v575 = vunpack.c.0.s8 %v574
    %v576 = vlaneseq
    %v577 = vshrl.u32 %v576, 7
    %v578 = vsub.s32 %v575, %v577
    %v579 = vrot.slane %v572, %v578
    %v580 = vcombine.low %v518, %v519
    %v582 = vunpack.c.l.s4 1983009808
    %v583 = vunpack.c.0.s8 %v582
    %v584 = vlaneseq
    %v585 = vshrl.u32 %v584, 7
    %v586 = vsub.s32 %v583, %v585
    %v587 = vrot.slane %v580, %v586
    %v588 = vcombine.low %v510, %v517
    %v590 = vunpack.c.l.s4 1983009808
    %v591 = vunpack.c.0.s8 %v590
    %v592 = vlaneseq
    %v593 = vshrl.u32 %v592, 7
    %v594 = vsub.s32 %v591, %v593
    %v595 = vrot.slane %v588, %v594
    %v596 = vcombine.low %v520, %v521
    %v598 = vunpack.c.l.s4 1983009808
    %v599 = vunpack.c.0.s8 %v598
    %v600 = vlaneseq
    %v601 = vshrl.u32 %v600, 7
    %v602 = vsub.s32 %v599, %v601
    %v603 = vrot.slane %v596, %v602
    %v604 = vcombine.low %v579, %v587
    %v606 = vunpack.c.l.s4 1934713408
    %v607 = vunpack.c.0.s8 %v606
    %v608 = vlaneseq
    %v609 = vshrl.u32 %v608, 7
    %v610 = vsub.s32 %v607, %v609
    %v611 = vrot.slane %v604, %v610
    %v612 = vcombine.low %v595, %v603
    %v614 = vunpack.c.l.s4 1934713408
    %v615 = vunpack.c.0.s8 %v614
    %v616 = vlaneseq
    %v617 = vshrl.u32 %v616, 7
    %v618 = vsub.s32 %v615, %v617
    %v619 = vrot.slane %v612, %v618
    %v620 = vcombine.low %v611, %v619
    %v621 = vcombine.high %v611, %v619
    %622 = vrot.lane.b32.xlu0 %v132, 64
    %v623 = vpop.permute.xlu0 %622
    %624 = vrot.lane.b32.xlu0 %v141, 64
    %v625 = vpop.permute.xlu0 %624
    %626 = vrot.lane.b32.xlu0 %v135, 64
    %v627 = vpop.permute.xlu0 %626
    %628 = vrot.lane.b32.xlu0 %v143, 64
    %v629 = vpop.permute.xlu0 %628
    %v634 = vcombine.high %v623, 0.0
    %v636 = vunpack.c.l.s4 1983009808
    %v637 = vunpack.c.0.s8 %v636
    %v638 = vlaneseq
    %v639 = vshrl.u32 %v638, 7
    %v640 = vsub.s32 %v637, %v639
    %v641 = vrot.slane %v623, %v640
    %v643 = vunpack.c.l.s4 1983009808
    %v644 = vunpack.c.0.s8 %v643
    %v645 = vlaneseq
    %v646 = vshrl.u32 %v645, 7
    %v647 = vsub.s32 %v644, %v646
    %v648 = vrot.slane %v634, %v647
    %v649 = vcombine.high %v625, 0.0
    %v651 = vunpack.c.l.s4 1983009808
    %v652 = vunpack.c.0.s8 %v651
    %v653 = vlaneseq
    %v654 = vshrl.u32 %v653, 7
    %v655 = vsub.s32 %v652, %v654
    %v656 = vrot.slane %v625, %v655
    %v658 = vunpack.c.l.s4 1983009808
    %v659 = vunpack.c.0.s8 %v658
    %v660 = vlaneseq
    %v661 = vshrl.u32 %v660, 7
    %v662 = vsub.s32 %v659, %v661
    %v663 = vrot.slane %v649, %v662
    %v664 = vcombine.low %v641, %v656
    %v665 = vcombine.high %v641, %v656
    %v667 = vunpack.c.l.s4 1934713408
    %v668 = vunpack.c.0.s8 %v667
    %v669 = vlaneseq
    %v670 = vshrl.u32 %v669, 7
    %v671 = vsub.s32 %v668, %v670
    %v672 = vrot.slane %v664, %v671
    %v674 = vunpack.c.l.s4 1934713408
    %v675 = vunpack.c.0.s8 %v674
    %v676 = vlaneseq
    %v677 = vshrl.u32 %v676, 7
    %v678 = vsub.s32 %v675, %v677
    %v679 = vrot.slane %v665, %v678
    %v680 = vcombine.low %v648, %v663
    %v681 = vcombine.high %v648, %v663
    %v683 = vunpack.c.l.s4 1934713408
    %v684 = vunpack.c.0.s8 %v683
    %v685 = vlaneseq
    %v686 = vshrl.u32 %v685, 7
    %v687 = vsub.s32 %v684, %v686
    %v688 = vrot.slane %v680, %v687
    %v690 = vunpack.c.l.s4 1934713408
    %v691 = vunpack.c.0.s8 %v690
    %v692 = vlaneseq
    %v693 = vshrl.u32 %v692, 7
    %v694 = vsub.s32 %v691, %v693
    %v695 = vrot.slane %v681, %v694
    %v696 = vcombine.high %v672, 0.0
    %v697 = vcombine.high %v679, 0.0
    %v698 = vcombine.high %v688, 0.0
    %v699 = vcombine.high %v695, 0.0
    %v700 = vcombine.high %v627, 0.0
    %v702 = vunpack.c.l.s4 1983009808
    %v703 = vunpack.c.0.s8 %v702
    %v704 = vlaneseq
    %v705 = vshrl.u32 %v704, 7
    %v706 = vsub.s32 %v703, %v705
    %v707 = vrot.slane %v627, %v706
    %v709 = vunpack.c.l.s4 1983009808
    %v710 = vunpack.c.0.s8 %v709
    %v711 = vlaneseq
    %v712 = vshrl.u32 %v711, 7
    %v713 = vsub.s32 %v710, %v712
    %v714 = vrot.slane %v700, %v713
    %v715 = vcombine.high %v629, 0.0
    %v717 = vunpack.c.l.s4 1983009808
    %v718 = vunpack.c.0.s8 %v717
    %v719 = vlaneseq
    %v720 = vshrl.u32 %v719, 7
    %v721 = vsub.s32 %v718, %v720
    %v722 = vrot.slane %v629, %v721
    %v724 = vunpack.c.l.s4 1983009808
    %v725 = vunpack.c.0.s8 %v724
    %v726 = vlaneseq
    %v727 = vshrl.u32 %v726, 7
    %v728 = vsub.s32 %v725, %v727
    %v729 = vrot.slane %v715, %v728
    %v730 = vcombine.low %v707, %v722
    %v731 = vcombine.high %v707, %v722
    %v733 = vunpack.c.l.s4 1934713408
    %v734 = vunpack.c.0.s8 %v733
    %v735 = vlaneseq
    %v736 = vshrl.u32 %v735, 7
    %v737 = vsub.s32 %v734, %v736
    %v738 = vrot.slane %v730, %v737
    %v740 = vunpack.c.l.s4 1934713408
    %v741 = vunpack.c.0.s8 %v740
    %v742 = vlaneseq
    %v743 = vshrl.u32 %v742, 7
    %v744 = vsub.s32 %v741, %v743
    %v745 = vrot.slane %v731, %v744
    %v746 = vcombine.low %v714, %v729
    %v747 = vcombine.high %v714, %v729
    %v749 = vunpack.c.l.s4 1934713408
    %v750 = vunpack.c.0.s8 %v749
    %v751 = vlaneseq
    %v752 = vshrl.u32 %v751, 7
    %v753 = vsub.s32 %v750, %v752
    %v754 = vrot.slane %v746, %v753
    %v756 = vunpack.c.l.s4 1934713408
    %v757 = vunpack.c.0.s8 %v756
    %v758 = vlaneseq
    %v759 = vshrl.u32 %v758, 7
    %v760 = vsub.s32 %v757, %v759
    %v761 = vrot.slane %v747, %v760
    %v762 = vcombine.high %v738, 0.0
    %v763 = vcombine.high %v745, 0.0
    %v764 = vcombine.high %v754, 0.0
    %v765 = vcombine.high %v761, 0.0
    %v766 = vcombine.low %v672, %v679
    %v768 = vunpack.c.l.s4 1983009808
    %v769 = vunpack.c.0.s8 %v768
    %v770 = vlaneseq
    %v771 = vshrl.u32 %v770, 7
    %v772 = vsub.s32 %v769, %v771
    %v773 = vrot.slane %v766, %v772
    %v774 = vcombine.low %v696, %v697
    %v776 = vunpack.c.l.s4 1983009808
    %v777 = vunpack.c.0.s8 %v776
    %v778 = vlaneseq
    %v779 = vshrl.u32 %v778, 7
    %v780 = vsub.s32 %v777, %v779
    %v781 = vrot.slane %v774, %v780
    %v782 = vcombine.low %v688, %v695
    %v784 = vunpack.c.l.s4 1983009808
    %v785 = vunpack.c.0.s8 %v784
    %v786 = vlaneseq
    %v787 = vshrl.u32 %v786, 7
    %v788 = vsub.s32 %v785, %v787
    %v789 = vrot.slane %v782, %v788
    %v790 = vcombine.low %v698, %v699
    %v792 = vunpack.c.l.s4 1983009808
    %v793 = vunpack.c.0.s8 %v792
    %v794 = vlaneseq
    %v795 = vshrl.u32 %v794, 7
    %v796 = vsub.s32 %v793, %v795
    %v797 = vrot.slane %v790, %v796
    %v798 = vcombine.low %v773, %v781
    %v800 = vunpack.c.l.s4 1934713408
    %v801 = vunpack.c.0.s8 %v800
    %v802 = vlaneseq
    %v803 = vshrl.u32 %v802, 7
    %v804 = vsub.s32 %v801, %v803
    %v805 = vrot.slane %v798, %v804
    %v806 = vcombine.low %v789, %v797
    %v808 = vunpack.c.l.s4 1934713408
    %v809 = vunpack.c.0.s8 %v808
    %v810 = vlaneseq
    %v811 = vshrl.u32 %v810, 7
    %v812 = vsub.s32 %v809, %v811
    %v813 = vrot.slane %v806, %v812
    %v814 = vcombine.low %v805, %v813
    %v815 = vcombine.high %v805, %v813
    %v816 = vcombine.low %v738, %v745
    %v818 = vunpack.c.l.s4 1983009808
    %v819 = vunpack.c.0.s8 %v818
    %v820 = vlaneseq
    %v821 = vshrl.u32 %v820, 7
    %v822 = vsub.s32 %v819, %v821
    %v823 = vrot.slane %v816, %v822
    %v824 = vcombine.low %v762, %v763
    %v826 = vunpack.c.l.s4 1983009808
    %v827 = vunpack.c.0.s8 %v826
    %v828 = vlaneseq
    %v829 = vshrl.u32 %v828, 7
    %v830 = vsub.s32 %v827, %v829
    %v831 = vrot.slane %v824, %v830
    %v832 = vcombine.low %v754, %v761
    %v834 = vunpack.c.l.s4 1983009808
    %v835 = vunpack.c.0.s8 %v834
    %v836 = vlaneseq
    %v837 = vshrl.u32 %v836, 7
    %v838 = vsub.s32 %v835, %v837
    %v839 = vrot.slane %v832, %v838
    %v840 = vcombine.low %v764, %v765
    %v842 = vunpack.c.l.s4 1983009808
    %v843 = vunpack.c.0.s8 %v842
    %v844 = vlaneseq
    %v845 = vshrl.u32 %v844, 7
    %v846 = vsub.s32 %v843, %v845
    %v847 = vrot.slane %v840, %v846
    %v848 = vcombine.low %v823, %v831
    %v850 = vunpack.c.l.s4 1934713408
    %v851 = vunpack.c.0.s8 %v850
    %v852 = vlaneseq
    %v853 = vshrl.u32 %v852, 7
    %v854 = vsub.s32 %v851, %v853
    %v855 = vrot.slane %v848, %v854
    %v856 = vcombine.low %v839, %v847
    %v858 = vunpack.c.l.s4 1934713408
    %v859 = vunpack.c.0.s8 %v858
    %v860 = vlaneseq
    %v861 = vshrl.u32 %v860, 7
    %v862 = vsub.s32 %v859, %v861
    %v863 = vrot.slane %v856, %v862
    %v864 = vcombine.low %v855, %v863
    %v865 = vcombine.high %v855, %v863
    %vm866 = vcmask 130048
    %v868 = vsel %vm866, %v326, 0
    %v871 = vsel %vm866, %v570, 0
    %873 = vmatprep.subr.mxu0 0.0
    %874 = vmatpush1.xpose.msra.mxu0 %v871
    %875 = vmatprep.subr.mxu0 0.0
    %876 = vmatpush1.xpose.msra.mxu0 0.0
    %877 = vmatprep.subr.mxu0 0.0
    %878 = vmatpush1.xpose.msra.mxu0 0.0
    %879 = vmatprep.subr.mxu0 0.0
    %880 = vmatpush1.xpose.msra.mxu0 0.0
    %881 = vmatprep.subr.mxu0 0.0
    %882 = vmatpush1.xpose.msra.mxu0 0.0
    %883 = vmatprep.subr.mxu0 0.0
    %884 = vmatpush1.xpose.msra.mxu0 0.0
    %885 = vmatprep.subr.mxu0 0.0
    %886 = vmatpush1.xpose.msra.mxu0 0.0
    %887 = vmatprep.subr.mxu0 0.0
    %888 = vmatpush1.xpose.msra.mxu0 0.0
    %889 = vmatprep.subr.mxu0 0.0
    %890 = vmatpush1.xpose.msra.mxu0 0.0
    %891 = vmatprep.subr.mxu0 0.0
    %892 = vmatpush1.xpose.msra.mxu0 0.0
    %893 = vmatprep.subr.mxu0 0.0
    %894 = vmatpush1.xpose.msra.mxu0 0.0
    %895 = vmatprep.subr.mxu0 0.0
    %896 = vmatpush1.xpose.msra.mxu0 0.0
    %897 = vmatprep.subr.mxu0 0.0
    %898 = vmatpush1.xpose.msra.mxu0 0.0
    %899 = vmatprep.subr.mxu0 0.0
    %900 = vmatpush1.xpose.msra.mxu0 0.0
    %901 = vmatprep.subr.mxu0 0.0
    %902 = vmatpush1.xpose.msra.mxu0 0.0
    %903 = vmatprep.subr.mxu0 0.0
    %904 = vmatpush1.xpose.msra.mxu0 0.0
    %905 = vmatprep.subr.mxu0 0.0
    %906 = vmatpush1.xpose.msra.mxu0 0.0
    %907 = vmatprep.subr.mxu0 0.0
    %908 = vmatpush1.xpose.msra.mxu0 0.0
    %909 = vmatprep.subr.mxu0 0.0
    %910 = vmatpush1.xpose.msra.mxu0 0.0
    %911 = vmatprep.subr.mxu0 0.0
    %912 = vmatpush1.xpose.msra.mxu0 0.0
    %913 = vmatprep.subr.mxu0 0.0
    %914 = vmatpush1.xpose.msra.mxu0 0.0
    %915 = vmatprep.subr.mxu0 0.0
    %916 = vmatpush1.xpose.msra.mxu0 0.0
    %917 = vmatprep.subr.mxu0 0.0
    %918 = vmatpush1.xpose.msra.mxu0 0.0
    %919 = vmatprep.subr.mxu0 0.0
    %920 = vmatpush1.xpose.msra.mxu0 0.0
    %921 = vmatprep.subr.mxu0 0.0
    %922 = vmatpush1.xpose.msra.mxu0 0.0
    %923 = vmatprep.subr.mxu0 0.0
    %924 = vmatpush1.xpose.msra.mxu0 0.0
    %925 = vmatprep.subr.mxu0 0.0
    %926 = vmatpush1.xpose.msra.mxu0 0.0
    %927 = vmatprep.subr.mxu0 0.0
    %928 = vmatpush1.xpose.msra.mxu0 0.0
    %929 = vmatprep.subr.mxu0 0.0
    %930 = vmatpush1.xpose.msra.mxu0 0.0
    %931 = vmatprep.subr.mxu0 0.0
    %932 = vmatpush1.xpose.msra.mxu0 0.0
    %933 = vmatprep.subr.mxu0 0.0
    %934 = vmatpush1.xpose.msra.mxu0 0.0
    %935 = vmatprep.subr.mxu0 0.0
    %936 = vmatpush1.xpose.msra.mxu0 0.0
    %937 = vmatprep.mubr.f32.mxu0 0.0
    %938 = vmatmul.mubr.f32.gmra.mrb[0].mxu0 %v868
    %v939 = vpop.f32.mrb[0].mxu0
    %v940 = vadd.f32 0.0, %v939
    %v941 = vpop.f32.mrb[0].mxu0
    %942 = vdwg.mxu0
    %v944 = vsel %vm866, %v327, 0
    %v947 = vsel %vm866, %v571, 0
    %949 = vmatprep.subr.mxu0 0.0
    %950 = vmatpush1.xpose.msra.mxu0 %v947
    %951 = vmatprep.subr.mxu0 0.0
    %952 = vmatpush1.xpose.msra.mxu0 0.0
    %953 = vmatprep.subr.mxu0 0.0
    %954 = vmatpush1.xpose.msra.mxu0 0.0
    %955 = vmatprep.subr.mxu0 0.0
    %956 = vmatpush1.xpose.msra.mxu0 0.0
    %957 = vmatprep.subr.mxu0 0.0
    %958 = vmatpush1.xpose.msra.mxu0 0.0
    %959 = vmatprep.subr.mxu0 0.0
    %960 = vmatpush1.xpose.msra.mxu0 0.0
    %961 = vmatprep.subr.mxu0 0.0
    %962 = vmatpush1.xpose.msra.mxu0 0.0
    %963 = vmatprep.subr.mxu0 0.0
    %964 = vmatpush1.xpose.msra.mxu0 0.0
    %965 = vmatprep.subr.mxu0 0.0
    %966 = vmatpush1.xpose.msra.mxu0 0.0
    %967 = vmatprep.subr.mxu0 0.0
    %968 = vmatpush1.xpose.msra.mxu0 0.0
    %969 = vmatprep.subr.mxu0 0.0
    %970 = vmatpush1.xpose.msra.mxu0 0.0
    %971 = vmatprep.subr.mxu0 0.0
    %972 = vmatpush1.xpose.msra.mxu0 0.0
    %973 = vmatprep.subr.mxu0 0.0
    %974 = vmatpush1.xpose.msra.mxu0 0.0
    %975 = vmatprep.subr.mxu0 0.0
    %976 = vmatpush1.xpose.msra.mxu0 0.0
    %977 = vmatprep.subr.mxu0 0.0
    %978 = vmatpush1.xpose.msra.mxu0 0.0
    %979 = vmatprep.subr.mxu0 0.0
    %980 = vmatpush1.xpose.msra.mxu0 0.0
    %981 = vmatprep.subr.mxu0 0.0
    %982 = vmatpush1.xpose.msra.mxu0 0.0
    %983 = vmatprep.subr.mxu0 0.0
    %984 = vmatpush1.xpose.msra.mxu0 0.0
    %985 = vmatprep.subr.mxu0 0.0
    %986 = vmatpush1.xpose.msra.mxu0 0.0
    %987 = vmatprep.subr.mxu0 0.0
    %988 = vmatpush1.xpose.msra.mxu0 0.0
    %989 = vmatprep.subr.mxu0 0.0
    %990 = vmatpush1.xpose.msra.mxu0 0.0
    %991 = vmatprep.subr.mxu0 0.0
    %992 = vmatpush1.xpose.msra.mxu0 0.0
    %993 = vmatprep.subr.mxu0 0.0
    %994 = vmatpush1.xpose.msra.mxu0 0.0
    %995 = vmatprep.subr.mxu0 0.0
    %996 = vmatpush1.xpose.msra.mxu0 0.0
    %997 = vmatprep.subr.mxu0 0.0
    %998 = vmatpush1.xpose.msra.mxu0 0.0
    %999 = vmatprep.subr.mxu0 0.0
    %1000 = vmatpush1.xpose.msra.mxu0 0.0
    %1001 = vmatprep.subr.mxu0 0.0
    %1002 = vmatpush1.xpose.msra.mxu0 0.0
    %1003 = vmatprep.subr.mxu0 0.0
    %1004 = vmatpush1.xpose.msra.mxu0 0.0
    %1005 = vmatprep.subr.mxu0 0.0
    %1006 = vmatpush1.xpose.msra.mxu0 0.0
    %1007 = vmatprep.subr.mxu0 0.0
    %1008 = vmatpush1.xpose.msra.mxu0 0.0
    %1009 = vmatprep.subr.mxu0 0.0
    %1010 = vmatpush1.xpose.msra.mxu0 0.0
    %1011 = vmatprep.subr.mxu0 0.0
    %1012 = vmatpush1.xpose.msra.mxu0 0.0
    %1013 = vmatprep.mubr.f32.mxu0 0.0
    %1014 = vmatmul.mubr.f32.gmra.mrb[0].mxu0 %v944
    %v1015 = vpop.f32.mrb[0].mxu0
    %v1016 = vadd.f32 0.0, %v1015
    %v1017 = vpop.f32.mrb[0].mxu0
    %1018 = vdwg.mxu0
    %v1020 = vsel %vm866, %v376, 0
    %v1023 = vsel %vm866, %v620, 0
    %1025 = vmatprep.subr.mxu0 0.0
    %1026 = vmatpush1.xpose.msra.mxu0 %v1023
    %1027 = vmatprep.subr.mxu0 0.0
    %1028 = vmatpush1.xpose.msra.mxu0 0.0
    %1029 = vmatprep.subr.mxu0 0.0
    %1030 = vmatpush1.xpose.msra.mxu0 0.0
    %1031 = vmatprep.subr.mxu0 0.0
    %1032 = vmatpush1.xpose.msra.mxu0 0.0
    %1033 = vmatprep.subr.mxu0 0.0
    %1034 = vmatpush1.xpose.msra.mxu0 0.0
    %1035 = vmatprep.subr.mxu0 0.0
    %1036 = vmatpush1.xpose.msra.mxu0 0.0
    %1037 = vmatprep.subr.mxu0 0.0
    %1038 = vmatpush1.xpose.msra.mxu0 0.0
    %1039 = vmatprep.subr.mxu0 0.0
    %1040 = vmatpush1.xpose.msra.mxu0 0.0
    %1041 = vmatprep.subr.mxu0 0.0
    %1042 = vmatpush1.xpose.msra.mxu0 0.0
    %1043 = vmatprep.subr.mxu0 0.0
    %1044 = vmatpush1.xpose.msra.mxu0 0.0
    %1045 = vmatprep.subr.mxu0 0.0
    %1046 = vmatpush1.xpose.msra.mxu0 0.0
    %1047 = vmatprep.subr.mxu0 0.0
    %1048 = vmatpush1.xpose.msra.mxu0 0.0
    %1049 = vmatprep.subr.mxu0 0.0
    %1050 = vmatpush1.xpose.msra.mxu0 0.0
    %1051 = vmatprep.subr.mxu0 0.0
    %1052 = vmatpush1.xpose.msra.mxu0 0.0
    %1053 = vmatprep.subr.mxu0 0.0
    %1054 = vmatpush1.xpose.msra.mxu0 0.0
    %1055 = vmatprep.subr.mxu0 0.0
    %1056 = vmatpush1.xpose.msra.mxu0 0.0
    %1057 = vmatprep.subr.mxu0 0.0
    %1058 = vmatpush1.xpose.msra.mxu0 0.0
    %1059 = vmatprep.subr.mxu0 0.0
    %1060 = vmatpush1.xpose.msra.mxu0 0.0
    %1061 = vmatprep.subr.mxu0 0.0
    %1062 = vmatpush1.xpose.msra.mxu0 0.0
    %1063 = vmatprep.subr.mxu0 0.0
    %1064 = vmatpush1.xpose.msra.mxu0 0.0
    %1065 = vmatprep.subr.mxu0 0.0
    %1066 = vmatpush1.xpose.msra.mxu0 0.0
    %1067 = vmatprep.subr.mxu0 0.0
    %1068 = vmatpush1.xpose.msra.mxu0 0.0
    %1069 = vmatprep.subr.mxu0 0.0
    %1070 = vmatpush1.xpose.msra.mxu0 0.0
    %1071 = vmatprep.subr.mxu0 0.0
    %1072 = vmatpush1.xpose.msra.mxu0 0.0
    %1073 = vmatprep.subr.mxu0 0.0
    %1074 = vmatpush1.xpose.msra.mxu0 0.0
    %1075 = vmatprep.subr.mxu0 0.0
    %1076 = vmatpush1.xpose.msra.mxu0 0.0
    %1077 = vmatprep.subr.mxu0 0.0
    %1078 = vmatpush1.xpose.msra.mxu0 0.0
    %1079 = vmatprep.subr.mxu0 0.0
    %1080 = vmatpush1.xpose.msra.mxu0 0.0
    %1081 = vmatprep.subr.mxu0 0.0
    %1082 = vmatpush1.xpose.msra.mxu0 0.0
    %1083 = vmatprep.subr.mxu0 0.0
    %1084 = vmatpush1.xpose.msra.mxu0 0.0
    %1085 = vmatprep.subr.mxu0 0.0
    %1086 = vmatpush1.xpose.msra.mxu0 0.0
    %1087 = vmatprep.subr.mxu0 0.0
    %1088 = vmatpush1.xpose.msra.mxu0 0.0
    %1089 = vmatprep.mubr.f32.mxu0 0.0
    %1090 = vmatmul.mubr.f32.gmra.mrb[0].mxu0 %v1020
    %v1091 = vpop.f32.mrb[0].mxu0
    %v1092 = vadd.f32 0.0, %v1091
    %v1093 = vpop.f32.mrb[0].mxu0
    %1094 = vdwg.mxu0
    %v1096 = vsel %vm866, %v377, 0
    %v1099 = vsel %vm866, %v621, 0
    %1101 = vmatprep.subr.mxu0 0.0
    %1102 = vmatpush1.xpose.msra.mxu0 %v1099
    %1103 = vmatprep.subr.mxu0 0.0
    %1104 = vmatpush1.xpose.msra.mxu0 0.0
    %1105 = vmatprep.subr.mxu0 0.0
    %1106 = vmatpush1.xpose.msra.mxu0 0.0
    %1107 = vmatprep.subr.mxu0 0.0
    %1108 = vmatpush1.xpose.msra.mxu0 0.0
    %1109 = vmatprep.subr.mxu0 0.0
    %1110 = vmatpush1.xpose.msra.mxu0 0.0
    %1111 = vmatprep.subr.mxu0 0.0
    %1112 = vmatpush1.xpose.msra.mxu0 0.0
    %1113 = vmatprep.subr.mxu0 0.0
    %1114 = vmatpush1.xpose.msra.mxu0 0.0
    %1115 = vmatprep.subr.mxu0 0.0
    %1116 = vmatpush1.xpose.msra.mxu0 0.0
    %1117 = vmatprep.subr.mxu0 0.0
    %1118 = vmatpush1.xpose.msra.mxu0 0.0
    %1119 = vmatprep.subr.mxu0 0.0
    %1120 = vmatpush1.xpose.msra.mxu0 0.0
    %1121 = vmatprep.subr.mxu0 0.0
    %1122 = vmatpush1.xpose.msra.mxu0 0.0
    %1123 = vmatprep.subr.mxu0 0.0
    %1124 = vmatpush1.xpose.msra.mxu0 0.0
    %1125 = vmatprep.subr.mxu0 0.0
    %1126 = vmatpush1.xpose.msra.mxu0 0.0
    %1127 = vmatprep.subr.mxu0 0.0
    %1128 = vmatpush1.xpose.msra.mxu0 0.0
    %1129 = vmatprep.subr.mxu0 0.0
    %1130 = vmatpush1.xpose.msra.mxu0 0.0
    %1131 = vmatprep.subr.mxu0 0.0
    %1132 = vmatpush1.xpose.msra.mxu0 0.0
    %1133 = vmatprep.subr.mxu0 0.0
    %1134 = vmatpush1.xpose.msra.mxu0 0.0
    %1135 = vmatprep.subr.mxu0 0.0
    %1136 = vmatpush1.xpose.msra.mxu0 0.0
    %1137 = vmatprep.subr.mxu0 0.0
    %1138 = vmatpush1.xpose.msra.mxu0 0.0
    %1139 = vmatprep.subr.mxu0 0.0
    %1140 = vmatpush1.xpose.msra.mxu0 0.0
    %1141 = vmatprep.subr.mxu0 0.0
    %1142 = vmatpush1.xpose.msra.mxu0 0.0
    %1143 = vmatprep.subr.mxu0 0.0
    %1144 = vmatpush1.xpose.msra.mxu0 0.0
    %1145 = vmatprep.subr.mxu0 0.0
    %1146 = vmatpush1.xpose.msra.mxu0 0.0
    %1147 = vmatprep.subr.mxu0 0.0
    %1148 = vmatpush1.xpose.msra.mxu0 0.0
    %1149 = vmatprep.subr.mxu0 0.0
    %1150 = vmatpush1.xpose.msra.mxu0 0.0
    %1151 = vmatprep.subr.mxu0 0.0
    %1152 = vmatpush1.xpose.msra.mxu0 0.0
    %1153 = vmatprep.subr.mxu0 0.0
    %1154 = vmatpush1.xpose.msra.mxu0 0.0
    %1155 = vmatprep.subr.mxu0 0.0
    %1156 = vmatpush1.xpose.msra.mxu0 0.0
    %1157 = vmatprep.subr.mxu0 0.0
    %1158 = vmatpush1.xpose.msra.mxu0 0.0
    %1159 = vmatprep.subr.mxu0 0.0
    %1160 = vmatpush1.xpose.msra.mxu0 0.0
    %1161 = vmatprep.subr.mxu0 0.0
    %1162 = vmatpush1.xpose.msra.mxu0 0.0
    %1163 = vmatprep.subr.mxu0 0.0
    %1164 = vmatpush1.xpose.msra.mxu0 0.0
    %1165 = vmatprep.mubr.f32.mxu0 0.0
    %1166 = vmatmul.mubr.f32.gmra.mrb[0].mxu0 %v1096
    %v1167 = vpop.f32.mrb[0].mxu0
    %v1168 = vadd.f32 0.0, %v1167
    %v1169 = vpop.f32.mrb[0].mxu0
    %1170 = vdwg.mxu0
    %vm1171 = vcmask 64512
    %v1172 = vsel %vm1171, %v940, -inf
    %1173 = vmax.xlane.f32.xlu0 %v1172
    %v1174 = vpop.xlane.xlu0 %1173
    %v1175 = vsel %vm1171, %v1016, -inf
    %1176 = vmax.xlane.f32.xlu0 %v1175
    %v1177 = vpop.xlane.xlu0 %1176
    %v1178 = vsel %vm1171, %v1092, -inf
    %1179 = vmax.xlane.f32.xlu0 %v1178
    %v1180 = vpop.xlane.xlu0 %1179
    %v1181 = vsel %vm1171, %v1168, -inf
    %1182 = vmax.xlane.f32.xlu0 %v1181
    %v1183 = vpop.xlane.xlu0 %1182
    %v1184 = vsub.f32 %v940, %v1174
    %v1185 = vsub.f32 %v1016, %v1177
    %v1186 = vsub.f32 %v1092, %v1180
    %v1187 = vsub.f32 %v1168, %v1183
    %v1188 = vmul.f32 %v1184, 1.442695
    %v1189 = vpow.pop %v1188
    %v1190 = vmul.f32 %v1185, 1.442695
    %v1191 = vpow.pop %v1190
    %v1192 = vmul.f32 %v1186, 1.442695
    %v1193 = vpow.pop %v1192
    %v1194 = vmul.f32 %v1187, 1.442695
    %v1195 = vpow.pop %v1194
    %v1196 = vsel %vm1171, %v1189, 0.0
    %1197 = vadd.xlane.f32.xlu0 %v1196
    %v1198 = vpop.xlane.xlu0 %1197
    %v1199 = vsel %vm1171, %v1191, 0.0
    %1200 = vadd.xlane.f32.xlu0 %v1199
    %v1201 = vpop.xlane.xlu0 %1200
    %v1202 = vsel %vm1171, %v1193, 0.0
    %1203 = vadd.xlane.f32.xlu0 %v1202
    %v1204 = vpop.xlane.xlu0 %1203
    %v1205 = vsel %vm1171, %v1195, 0.0
    %1206 = vadd.xlane.f32.xlu0 %v1205
    %v1207 = vpop.xlane.xlu0 %1206
    %v1208 = vrcp.pop %v1198
    %v1209 = vrcp.pop %v1201
    %v1210 = vrcp.pop %v1204
    %v1211 = vrcp.pop %v1207
    %v1212 = vmul.f32 %v1189, %v1208
    %v1213 = vmul.f32 %v1191, %v1209
    %v1214 = vmul.f32 %v1193, %v1210
    %v1215 = vmul.f32 %v1195, %v1211
    %v1217 = vsel %vm1171, %v1212, 0
    %1219 = vmatprep.subr.mxu0 0.0
    %1220 = vmatpush1.msra.mxu0 %v814
    %1221 = vmatprep.subr.mxu0 0.0
    %1222 = vmatpush1.msra.mxu0 0.0
    %1223 = vmatprep.subr.mxu0 0.0
    %1224 = vmatpush1.msra.mxu0 0.0
    %1225 = vmatprep.subr.mxu0 0.0
    %1226 = vmatpush1.msra.mxu0 0.0
    %1227 = vmatprep.subr.mxu0 0.0
    %1228 = vmatpush1.msra.mxu0 0.0
    %1229 = vmatprep.subr.mxu0 0.0
    %1230 = vmatpush1.msra.mxu0 0.0
    %1231 = vmatprep.subr.mxu0 0.0
    %1232 = vmatpush1.msra.mxu0 0.0
    %1233 = vmatprep.subr.mxu0 0.0
    %1234 = vmatpush1.msra.mxu0 0.0
    %1235 = vmatprep.subr.mxu0 0.0
    %1236 = vmatpush1.msra.mxu0 0.0
    %1237 = vmatprep.subr.mxu0 0.0
    %1238 = vmatpush1.msra.mxu0 0.0
    %1239 = vmatprep.subr.mxu0 0.0
    %1240 = vmatpush1.msra.mxu0 0.0
    %1241 = vmatprep.subr.mxu0 0.0
    %1242 = vmatpush1.msra.mxu0 0.0
    %1243 = vmatprep.subr.mxu0 0.0
    %1244 = vmatpush1.msra.mxu0 0.0
    %1245 = vmatprep.subr.mxu0 0.0
    %1246 = vmatpush1.msra.mxu0 0.0
    %1247 = vmatprep.subr.mxu0 0.0
    %1248 = vmatpush1.msra.mxu0 0.0
    %1249 = vmatprep.subr.mxu0 0.0
    %1250 = vmatpush1.msra.mxu0 0.0
    %1251 = vmatprep.subr.mxu0 0.0
    %1252 = vmatpush1.msra.mxu0 0.0
    %1253 = vmatprep.subr.mxu0 0.0
    %1254 = vmatpush1.msra.mxu0 0.0
    %1255 = vmatprep.subr.mxu0 0.0
    %1256 = vmatpush1.msra.mxu0 0.0
    %1257 = vmatprep.subr.mxu0 0.0
    %1258 = vmatpush1.msra.mxu0 0.0
    %1259 = vmatprep.subr.mxu0 0.0
    %1260 = vmatpush1.msra.mxu0 0.0
    %1261 = vmatprep.subr.mxu0 0.0
    %1262 = vmatpush1.msra.mxu0 0.0
    %1263 = vmatprep.subr.mxu0 0.0
    %1264 = vmatpush1.msra.mxu0 0.0
    %1265 = vmatprep.subr.mxu0 0.0
    %1266 = vmatpush1.msra.mxu0 0.0
    %1267 = vmatprep.subr.mxu0 0.0
    %1268 = vmatpush1.msra.mxu0 0.0
    %1269 = vmatprep.subr.mxu0 0.0
    %1270 = vmatpush1.msra.mxu0 0.0
    %1271 = vmatprep.subr.mxu0 0.0
    %1272 = vmatpush1.msra.mxu0 0.0
    %1273 = vmatprep.subr.mxu0 0.0
    %1274 = vmatpush1.msra.mxu0 0.0
    %1275 = vmatprep.subr.mxu0 0.0
    %1276 = vmatpush1.msra.mxu0 0.0
    %1277 = vmatprep.subr.mxu0 0.0
    %1278 = vmatpush1.msra.mxu0 0.0
    %1279 = vmatprep.subr.mxu0 0.0
    %1280 = vmatpush1.msra.mxu0 0.0
    %1281 = vmatprep.subr.mxu0 0.0
    %1282 = vmatpush1.msra.mxu0 0.0
    %1283 = vmatprep.mubr.f32.mxu0 0.0
    %1284 = vmatmul.mubr.f32.gmra.mrb[0].mxu0 %v1217
    %v1285 = vpop.f32.mrb[0].mxu0
    %v1286 = vadd.f32 0.0, %v1285
    %v1287 = vpop.f32.mrb[0].mxu0
    %1288 = vdwg.mxu0
    %v1290 = vsel %vm1171, %v1213, 0
    %1292 = vmatprep.subr.mxu0 0.0
    %1293 = vmatpush1.msra.mxu0 %v815
    %1294 = vmatprep.subr.mxu0 0.0
    %1295 = vmatpush1.msra.mxu0 0.0
    %1296 = vmatprep.subr.mxu0 0.0
    %1297 = vmatpush1.msra.mxu0 0.0
    %1298 = vmatprep.subr.mxu0 0.0
    %1299 = vmatpush1.msra.mxu0 0.0
    %1300 = vmatprep.subr.mxu0 0.0
    %1301 = vmatpush1.msra.mxu0 0.0
    %1302 = vmatprep.subr.mxu0 0.0
    %1303 = vmatpush1.msra.mxu0 0.0
    %1304 = vmatprep.subr.mxu0 0.0
    %1305 = vmatpush1.msra.mxu0 0.0
    %1306 = vmatprep.subr.mxu0 0.0
    %1307 = vmatpush1.msra.mxu0 0.0
    %1308 = vmatprep.subr.mxu0 0.0
    %1309 = vmatpush1.msra.mxu0 0.0
    %1310 = vmatprep.subr.mxu0 0.0
    %1311 = vmatpush1.msra.mxu0 0.0
    %1312 = vmatprep.subr.mxu0 0.0
    %1313 = vmatpush1.msra.mxu0 0.0
    %1314 = vmatprep.subr.mxu0 0.0
    %1315 = vmatpush1.msra.mxu0 0.0
    %1316 = vmatprep.subr.mxu0 0.0
    %1317 = vmatpush1.msra.mxu0 0.0
    %1318 = vmatprep.subr.mxu0 0.0
    %1319 = vmatpush1.msra.mxu0 0.0
    %1320 = vmatprep.subr.mxu0 0.0
    %1321 = vmatpush1.msra.mxu0 0.0
    %1322 = vmatprep.subr.mxu0 0.0
    %1323 = vmatpush1.msra.mxu0 0.0
    %1324 = vmatprep.subr.mxu0 0.0
    %1325 = vmatpush1.msra.mxu0 0.0
    %1326 = vmatprep.subr.mxu0 0.0
    %1327 = vmatpush1.msra.mxu0 0.0
    %1328 = vmatprep.subr.mxu0 0.0
    %1329 = vmatpush1.msra.mxu0 0.0
    %1330 = vmatprep.subr.mxu0 0.0
    %1331 = vmatpush1.msra.mxu0 0.0
    %1332 = vmatprep.subr.mxu0 0.0
    %1333 = vmatpush1.msra.mxu0 0.0
    %1334 = vmatprep.subr.mxu0 0.0
    %1335 = vmatpush1.msra.mxu0 0.0
    %1336 = vmatprep.subr.mxu0 0.0
    %1337 = vmatpush1.msra.mxu0 0.0
    %1338 = vmatprep.subr.mxu0 0.0
    %1339 = vmatpush1.msra.mxu0 0.0
    %1340 = vmatprep.subr.mxu0 0.0
    %1341 = vmatpush1.msra.mxu0 0.0
    %1342 = vmatprep.subr.mxu0 0.0
    %1343 = vmatpush1.msra.mxu0 0.0
    %1344 = vmatprep.subr.mxu0 0.0
    %1345 = vmatpush1.msra.mxu0 0.0
    %1346 = vmatprep.subr.mxu0 0.0
    %1347 = vmatpush1.msra.mxu0 0.0
    %1348 = vmatprep.subr.mxu0 0.0
    %1349 = vmatpush1.msra.mxu0 0.0
    %1350 = vmatprep.subr.mxu0 0.0
    %1351 = vmatpush1.msra.mxu0 0.0
    %1352 = vmatprep.subr.mxu0 0.0
    %1353 = vmatpush1.msra.mxu0 0.0
    %1354 = vmatprep.subr.mxu0 0.0
    %1355 = vmatpush1.msra.mxu0 0.0
    %1356 = vmatprep.mubr.f32.mxu0 0.0
    %1357 = vmatmul.mubr.f32.gmra.mrb[0].mxu0 %v1290
    %v1358 = vpop.f32.mrb[0].mxu0
    %v1359 = vadd.f32 0.0, %v1358
    %v1360 = vpop.f32.mrb[0].mxu0
    %1361 = vdwg.mxu0
    %v1363 = vsel %vm1171, %v1214, 0
    %1365 = vmatprep.subr.mxu0 0.0
    %1366 = vmatpush1.msra.mxu0 %v864
    %1367 = vmatprep.subr.mxu0 0.0
    %1368 = vmatpush1.msra.mxu0 0.0
    %1369 = vmatprep.subr.mxu0 0.0
    %1370 = vmatpush1.msra.mxu0 0.0
    %1371 = vmatprep.subr.mxu0 0.0
    %1372 = vmatpush1.msra.mxu0 0.0
    %1373 = vmatprep.subr.mxu0 0.0
    %1374 = vmatpush1.msra.mxu0 0.0
    %1375 = vmatprep.subr.mxu0 0.0
    %1376 = vmatpush1.msra.mxu0 0.0
    %1377 = vmatprep.subr.mxu0 0.0
    %1378 = vmatpush1.msra.mxu0 0.0
    %1379 = vmatprep.subr.mxu0 0.0
    %1380 = vmatpush1.msra.mxu0 0.0
    %1381 = vmatprep.subr.mxu0 0.0
    %1382 = vmatpush1.msra.mxu0 0.0
    %1383 = vmatprep.subr.mxu0 0.0
    %1384 = vmatpush1.msra.mxu0 0.0
    %1385 = vmatprep.subr.mxu0 0.0
    %1386 = vmatpush1.msra.mxu0 0.0
    %1387 = vmatprep.subr.mxu0 0.0
    %1388 = vmatpush1.msra.mxu0 0.0
    %1389 = vmatprep.subr.mxu0 0.0
    %1390 = vmatpush1.msra.mxu0 0.0
    %1391 = vmatprep.subr.mxu0 0.0
    %1392 = vmatpush1.msra.mxu0 0.0
    %1393 = vmatprep.subr.mxu0 0.0
    %1394 = vmatpush1.msra.mxu0 0.0
    %1395 = vmatprep.subr.mxu0 0.0
    %1396 = vmatpush1.msra.mxu0 0.0
    %1397 = vmatprep.subr.mxu0 0.0
    %1398 = vmatpush1.msra.mxu0 0.0
    %1399 = vmatprep.subr.mxu0 0.0
    %1400 = vmatpush1.msra.mxu0 0.0
    %1401 = vmatprep.subr.mxu0 0.0
    %1402 = vmatpush1.msra.mxu0 0.0
    %1403 = vmatprep.subr.mxu0 0.0
    %1404 = vmatpush1.msra.mxu0 0.0
    %1405 = vmatprep.subr.mxu0 0.0
    %1406 = vmatpush1.msra.mxu0 0.0
    %1407 = vmatprep.subr.mxu0 0.0
    %1408 = vmatpush1.msra.mxu0 0.0
    %1409 = vmatprep.subr.mxu0 0.0
    %1410 = vmatpush1.msra.mxu0 0.0
    %1411 = vmatprep.subr.mxu0 0.0
    %1412 = vmatpush1.msra.mxu0 0.0
    %1413 = vmatprep.subr.mxu0 0.0
    %1414 = vmatpush1.msra.mxu0 0.0
    %1415 = vmatprep.subr.mxu0 0.0
    %1416 = vmatpush1.msra.mxu0 0.0
    %1417 = vmatprep.subr.mxu0 0.0
    %1418 = vmatpush1.msra.mxu0 0.0
    %1419 = vmatprep.subr.mxu0 0.0
    %1420 = vmatpush1.msra.mxu0 0.0
    %1421 = vmatprep.subr.mxu0 0.0
    %1422 = vmatpush1.msra.mxu0 0.0
    %1423 = vmatprep.subr.mxu0 0.0
    %1424 = vmatpush1.msra.mxu0 0.0
    %1425 = vmatprep.subr.mxu0 0.0
    %1426 = vmatpush1.msra.mxu0 0.0
    %1427 = vmatprep.subr.mxu0 0.0
    %1428 = vmatpush1.msra.mxu0 0.0
    %1429 = vmatprep.mubr.f32.mxu0 0.0
    %1430 = vmatmul.mubr.f32.gmra.mrb[0].mxu0 %v1363
    %v1431 = vpop.f32.mrb[0].mxu0
    %v1432 = vadd.f32 0.0, %v1431
    %v1433 = vpop.f32.mrb[0].mxu0
    %1434 = vdwg.mxu0
    %v1436 = vsel %vm1171, %v1215, 0
    %1438 = vmatprep.subr.mxu0 0.0
    %1439 = vmatpush1.msra.mxu0 %v865
    %1440 = vmatprep.subr.mxu0 0.0
    %1441 = vmatpush1.msra.mxu0 0.0
    %1442 = vmatprep.subr.mxu0 0.0
    %1443 = vmatpush1.msra.mxu0 0.0
    %1444 = vmatprep.subr.mxu0 0.0
    %1445 = vmatpush1.msra.mxu0 0.0
    %1446 = vmatprep.subr.mxu0 0.0
    %1447 = vmatpush1.msra.mxu0 0.0
    %1448 = vmatprep.subr.mxu0 0.0
    %1449 = vmatpush1.msra.mxu0 0.0
    %1450 = vmatprep.subr.mxu0 0.0
    %1451 = vmatpush1.msra.mxu0 0.0
    %1452 = vmatprep.subr.mxu0 0.0
    %1453 = vmatpush1.msra.mxu0 0.0
    %1454 = vmatprep.subr.mxu0 0.0
    %1455 = vmatpush1.msra.mxu0 0.0
    %1456 = vmatprep.subr.mxu0 0.0
    %1457 = vmatpush1.msra.mxu0 0.0
    %1458 = vmatprep.subr.mxu0 0.0
    %1459 = vmatpush1.msra.mxu0 0.0
    %1460 = vmatprep.subr.mxu0 0.0
    %1461 = vmatpush1.msra.mxu0 0.0
    %1462 = vmatprep.subr.mxu0 0.0
    %1463 = vmatpush1.msra.mxu0 0.0
    %1464 = vmatprep.subr.mxu0 0.0
    %1465 = vmatpush1.msra.mxu0 0.0
    %1466 = vmatprep.subr.mxu0 0.0
    %1467 = vmatpush1.msra.mxu0 0.0
    %1468 = vmatprep.subr.mxu0 0.0
    %1469 = vmatpush1.msra.mxu0 0.0
    %1470 = vmatprep.subr.mxu0 0.0
    %1471 = vmatpush1.msra.mxu0 0.0
    %1472 = vmatprep.subr.mxu0 0.0
    %1473 = vmatpush1.msra.mxu0 0.0
    %1474 = vmatprep.subr.mxu0 0.0
    %1475 = vmatpush1.msra.mxu0 0.0
    %1476 = vmatprep.subr.mxu0 0.0
    %1477 = vmatpush1.msra.mxu0 0.0
    %1478 = vmatprep.subr.mxu0 0.0
    %1479 = vmatpush1.msra.mxu0 0.0
    %1480 = vmatprep.subr.mxu0 0.0
    %1481 = vmatpush1.msra.mxu0 0.0
    %1482 = vmatprep.subr.mxu0 0.0
    %1483 = vmatpush1.msra.mxu0 0.0
    %1484 = vmatprep.subr.mxu0 0.0
    %1485 = vmatpush1.msra.mxu0 0.0
    %1486 = vmatprep.subr.mxu0 0.0
    %1487 = vmatpush1.msra.mxu0 0.0
    %1488 = vmatprep.subr.mxu0 0.0
    %1489 = vmatpush1.msra.mxu0 0.0
    %1490 = vmatprep.subr.mxu0 0.0
    %1491 = vmatpush1.msra.mxu0 0.0
    %1492 = vmatprep.subr.mxu0 0.0
    %1493 = vmatpush1.msra.mxu0 0.0
    %1494 = vmatprep.subr.mxu0 0.0
    %1495 = vmatpush1.msra.mxu0 0.0
    %1496 = vmatprep.subr.mxu0 0.0
    %1497 = vmatpush1.msra.mxu0 0.0
    %1498 = vmatprep.subr.mxu0 0.0
    %1499 = vmatpush1.msra.mxu0 0.0
    %1500 = vmatprep.subr.mxu0 0.0
    %1501 = vmatpush1.msra.mxu0 0.0
    %1502 = vmatprep.mubr.f32.mxu0 0.0
    %1503 = vmatmul.mubr.f32.gmra.mrb[0].mxu0 %v1436
    %v1504 = vpop.f32.mrb[0].mxu0
    %v1505 = vadd.f32 0.0, %v1504
    %v1506 = vpop.f32.mrb[0].mxu0
    %1507 = vdwg.mxu0
    %v1508 = vcombine.high %v1286, 0.0
    %v1510 = vunpack.c.l.s4 1983009808
    %v1511 = vunpack.c.0.s8 %v1510
    %v1512 = vlaneseq
    %v1513 = vshrl.u32 %v1512, 7
    %v1514 = vsub.s32 %v1511, %v1513
    %v1515 = vrot.slane %v1286, %v1514
    %v1517 = vunpack.c.l.s4 1983009808
    %v1518 = vunpack.c.0.s8 %v1517
    %v1519 = vlaneseq
    %v1520 = vshrl.u32 %v1519, 7
    %v1521 = vsub.s32 %v1518, %v1520
    %v1522 = vrot.slane %v1508, %v1521
    %v1523 = vcombine.high %v1359, 0.0
    %v1525 = vunpack.c.l.s4 1983009808
    %v1526 = vunpack.c.0.s8 %v1525
    %v1527 = vlaneseq
    %v1528 = vshrl.u32 %v1527, 7
    %v1529 = vsub.s32 %v1526, %v1528
    %v1530 = vrot.slane %v1359, %v1529
    %v1532 = vunpack.c.l.s4 1983009808
    %v1533 = vunpack.c.0.s8 %v1532
    %v1534 = vlaneseq
    %v1535 = vshrl.u32 %v1534, 7
    %v1536 = vsub.s32 %v1533, %v1535
    %v1537 = vrot.slane %v1523, %v1536
    %v1538 = vcombine.low %v1515, %v1530
    %v1539 = vcombine.high %v1515, %v1530
    %v1541 = vunpack.c.l.s4 1934713408
    %v1542 = vunpack.c.0.s8 %v1541
    %v1543 = vlaneseq
    %v1544 = vshrl.u32 %v1543, 7
    %v1545 = vsub.s32 %v1542, %v1544
    %v1546 = vrot.slane %v1538, %v1545
    %v1548 = vunpack.c.l.s4 1934713408
    %v1549 = vunpack.c.0.s8 %v1548
    %v1550 = vlaneseq
    %v1551 = vshrl.u32 %v1550, 7
    %v1552 = vsub.s32 %v1549, %v1551
    %v1553 = vrot.slane %v1539, %v1552
    %v1554 = vcombine.low %v1522, %v1537
    %v1555 = vcombine.high %v1522, %v1537
    %v1557 = vunpack.c.l.s4 1934713408
    %v1558 = vunpack.c.0.s8 %v1557
    %v1559 = vlaneseq
    %v1560 = vshrl.u32 %v1559, 7
    %v1561 = vsub.s32 %v1558, %v1560
    %v1562 = vrot.slane %v1554, %v1561
    %v1564 = vunpack.c.l.s4 1934713408
    %v1565 = vunpack.c.0.s8 %v1564
    %v1566 = vlaneseq
    %v1567 = vshrl.u32 %v1566, 7
    %v1568 = vsub.s32 %v1565, %v1567
    %v1569 = vrot.slane %v1555, %v1568
    %v1570 = vcombine.high %v1546, 0.0
    %v1571 = vcombine.high %v1553, 0.0
    %v1572 = vcombine.high %v1562, 0.0
    %v1573 = vcombine.high %v1569, 0.0
    %v1574 = vcombine.high %v1432, 0.0
    %v1576 = vunpack.c.l.s4 1983009808
    %v1577 = vunpack.c.0.s8 %v1576
    %v1578 = vlaneseq
    %v1579 = vshrl.u32 %v1578, 7
    %v1580 = vsub.s32 %v1577, %v1579
    %v1581 = vrot.slane %v1432, %v1580
    %v1583 = vunpack.c.l.s4 1983009808
    %v1584 = vunpack.c.0.s8 %v1583
    %v1585 = vlaneseq
    %v1586 = vshrl.u32 %v1585, 7
    %v1587 = vsub.s32 %v1584, %v1586
    %v1588 = vrot.slane %v1574, %v1587
    %v1589 = vcombine.high %v1505, 0.0
    %v1591 = vunpack.c.l.s4 1983009808
    %v1592 = vunpack.c.0.s8 %v1591
    %v1593 = vlaneseq
    %v1594 = vshrl.u32 %v1593, 7
    %v1595 = vsub.s32 %v1592, %v1594
    %v1596 = vrot.slane %v1505, %v1595
    %v1598 = vunpack.c.l.s4 1983009808
    %v1599 = vunpack.c.0.s8 %v1598
    %v1600 = vlaneseq
    %v1601 = vshrl.u32 %v1600, 7
    %v1602 = vsub.s32 %v1599, %v1601
    %v1603 = vrot.slane %v1589, %v1602
    %v1604 = vcombine.low %v1581, %v1596
    %v1605 = vcombine.high %v1581, %v1596
    %v1607 = vunpack.c.l.s4 1934713408
    %v1608 = vunpack.c.0.s8 %v1607
    %v1609 = vlaneseq
    %v1610 = vshrl.u32 %v1609, 7
    %v1611 = vsub.s32 %v1608, %v1610
    %v1612 = vrot.slane %v1604, %v1611
    %v1614 = vunpack.c.l.s4 1934713408
    %v1615 = vunpack.c.0.s8 %v1614
    %v1616 = vlaneseq
    %v1617 = vshrl.u32 %v1616, 7
    %v1618 = vsub.s32 %v1615, %v1617
    %v1619 = vrot.slane %v1605, %v1618
    %v1620 = vcombine.low %v1588, %v1603
    %v1621 = vcombine.high %v1588, %v1603
    %v1623 = vunpack.c.l.s4 1934713408
    %v1624 = vunpack.c.0.s8 %v1623
    %v1625 = vlaneseq
    %v1626 = vshrl.u32 %v1625, 7
    %v1627 = vsub.s32 %v1624, %v1626
    %v1628 = vrot.slane %v1620, %v1627
    %v1630 = vunpack.c.l.s4 1934713408
    %v1631 = vunpack.c.0.s8 %v1630
    %v1632 = vlaneseq
    %v1633 = vshrl.u32 %v1632, 7
    %v1634 = vsub.s32 %v1631, %v1633
    %v1635 = vrot.slane %v1621, %v1634
    %v1636 = vcombine.high %v1612, 0.0
    %v1637 = vcombine.high %v1619, 0.0
    %v1638 = vcombine.high %v1628, 0.0
    %v1639 = vcombine.high %v1635, 0.0
    %v1640 = vcombine.low %v1546, %v1553
    %v1642 = vunpack.c.l.s4 1983009808
    %v1643 = vunpack.c.0.s8 %v1642
    %v1644 = vlaneseq
    %v1645 = vshrl.u32 %v1644, 7
    %v1646 = vsub.s32 %v1643, %v1645
    %v1647 = vrot.slane %v1640, %v1646
    %v1648 = vcombine.low %v1570, %v1571
    %v1650 = vunpack.c.l.s4 1983009808
    %v1651 = vunpack.c.0.s8 %v1650
    %v1652 = vlaneseq
    %v1653 = vshrl.u32 %v1652, 7
    %v1654 = vsub.s32 %v1651, %v1653
    %v1655 = vrot.slane %v1648, %v1654
    %v1656 = vcombine.low %v1562, %v1569
    %v1658 = vunpack.c.l.s4 1983009808
    %v1659 = vunpack.c.0.s8 %v1658
    %v1660 = vlaneseq
    %v1661 = vshrl.u32 %v1660, 7
    %v1662 = vsub.s32 %v1659, %v1661
    %v1663 = vrot.slane %v1656, %v1662
    %v1664 = vcombine.low %v1572, %v1573
    %v1666 = vunpack.c.l.s4 1983009808
    %v1667 = vunpack.c.0.s8 %v1666
    %v1668 = vlaneseq
    %v1669 = vshrl.u32 %v1668, 7
    %v1670 = vsub.s32 %v1667, %v1669
    %v1671 = vrot.slane %v1664, %v1670
    %v1672 = vcombine.low %v1647, %v1655
    %v1674 = vunpack.c.l.s4 1934713408
    %v1675 = vunpack.c.0.s8 %v1674
    %v1676 = vlaneseq
    %v1677 = vshrl.u32 %v1676, 7
    %v1678 = vsub.s32 %v1675, %v1677
    %v1679 = vrot.slane %v1672, %v1678
    %v1680 = vcombine.low %v1663, %v1671
    %v1682 = vunpack.c.l.s4 1934713408
    %v1683 = vunpack.c.0.s8 %v1682
    %v1684 = vlaneseq
    %v1685 = vshrl.u32 %v1684, 7
    %v1686 = vsub.s32 %v1683, %v1685
    %v1687 = vrot.slane %v1680, %v1686
    %v1688 = vcombine.low %v1679, %v1687
    %v1689 = vcombine.high %v1679, %v1687
    %v1690 = vcombine.low %v1612, %v1619
    %v1692 = vunpack.c.l.s4 1983009808
    %v1693 = vunpack.c.0.s8 %v1692
    %v1694 = vlaneseq
    %v1695 = vshrl.u32 %v1694, 7
    %v1696 = vsub.s32 %v1693, %v1695
    %v1697 = vrot.slane %v1690, %v1696
    %v1698 = vcombine.low %v1636, %v1637
    %v1700 = vunpack.c.l.s4 1983009808
    %v1701 = vunpack.c.0.s8 %v1700
    %v1702 = vlaneseq
    %v1703 = vshrl.u32 %v1702, 7
    %v1704 = vsub.s32 %v1701, %v1703
    %v1705 = vrot.slane %v1698, %v1704
    %v1706 = vcombine.low %v1628, %v1635
    %v1708 = vunpack.c.l.s4 1983009808
    %v1709 = vunpack.c.0.s8 %v1708
    %v1710 = vlaneseq
    %v1711 = vshrl.u32 %v1710, 7
    %v1712 = vsub.s32 %v1709, %v1711
    %v1713 = vrot.slane %v1706, %v1712
    %v1714 = vcombine.low %v1638, %v1639
    %v1716 = vunpack.c.l.s4 1983009808
    %v1717 = vunpack.c.0.s8 %v1716
    %v1718 = vlaneseq
    %v1719 = vshrl.u32 %v1718, 7
    %v1720 = vsub.s32 %v1717, %v1719
    %v1721 = vrot.slane %v1714, %v1720
    %v1722 = vcombine.low %v1697, %v1705
    %v1724 = vunpack.c.l.s4 1934713408
    %v1725 = vunpack.c.0.s8 %v1724
    %v1726 = vlaneseq
    %v1727 = vshrl.u32 %v1726, 7
    %v1728 = vsub.s32 %v1725, %v1727
    %v1729 = vrot.slane %v1722, %v1728
    %v1730 = vcombine.low %v1713, %v1721
    %v1732 = vunpack.c.l.s4 1934713408
    %v1733 = vunpack.c.0.s8 %v1732
    %v1734 = vlaneseq
    %v1735 = vshrl.u32 %v1734, 7
    %v1736 = vsub.s32 %v1733, %v1735
    %v1737 = vrot.slane %v1730, %v1736
    %v1738 = vcombine.low %v1729, %v1737
    %v1739 = vcombine.high %v1729, %v1737
    %1742 = vrot.lane.b32.xlu0 %v1689, 16
    %v1743 = vpop.permute.xlu0 %1742
    %1744 = vrot.lane.b32.xlu0 %v1739, 16
    %v1745 = vpop.permute.xlu0 %1744
    %v1748 = vsel %vm866, %v1688, %v1743
    %v1749 = vsel %vm866, %v1738, %v1745
    %v1750 = vpack.c.bf16 %v1749, %v1748
    %s1751 = scalar_lea.vmem [#allocation2], 64
    %v1752 = vld [vmem:[%s1751] sm:$0xf]
    %v1753 = vld [vmem:[%s1751 + $0x4] sm:$0xf]
    %v1754 = vld [vmem:[%s1751 + $0x8] sm:$0xf]
    %v1755 = vld [vmem:[%s1751 + $0xc] sm:$0xf]
    %v1756 = vlaneseq
    %v1757 = vshrl.u32 %v1756, 7
    %v1758 = vsub.s32 0, %v1757
    %v1759 = vrot.slane %v31, %v1758
    %v1764 = vunpack.c.l.b16 %v1752
    %v1765 = vunpack.c.l.b16 %v1753
    %v1766 = vunpack.c.l.b16 %v1754
    %v1767 = vunpack.c.l.b16 %v1755
    %v1768 = vpack.c.b16 %v1765, %v1764
    %v1769 = vpack.c.b16 %v1767, %v1766
    %vm1772 = vcmask 261120
    %v1774 = vsel %vm1772, %v1750, 0
    %1776 = vmatprep.subr.bf16.mxu0 0
    %1777 = vmatpush1.bf16.msra.mxu0 %v1768
    %1778 = vmatprep.subr.bf16.mxu0 0
    %1779 = vmatpush1.bf16.msra.mxu0 %v1769
    %1780 = vmatprep.subr.bf16.mxu0 0
    %1781 = vmatpush1.bf16.msra.mxu0 0
    %1782 = vmatprep.subr.bf16.mxu0 0
    %1783 = vmatpush1.bf16.msra.mxu0 0
    %1784 = vmatprep.subr.bf16.mxu0 0
    %1785 = vmatpush1.bf16.msra.mxu0 0
    %1786 = vmatprep.subr.bf16.mxu0 0
    %1787 = vmatpush1.bf16.msra.mxu0 0
    %1788 = vmatprep.subr.bf16.mxu0 0
    %1789 = vmatpush1.bf16.msra.mxu0 0
    %1790 = vmatprep.subr.bf16.mxu0 0
    %1791 = vmatpush1.bf16.msra.mxu0 0
    %1792 = vmatprep.subr.bf16.mxu0 0
    %1793 = vmatpush1.bf16.msra.mxu0 0
    %1794 = vmatprep.subr.bf16.mxu0 0
    %1795 = vmatpush1.bf16.msra.mxu0 0
    %1796 = vmatprep.subr.bf16.mxu0 0
    %1797 = vmatpush1.bf16.msra.mxu0 0
    %1798 = vmatprep.subr.bf16.mxu0 0
    %1799 = vmatpush1.bf16.msra.mxu0 0
    %1800 = vmatprep.subr.bf16.mxu0 0
    %1801 = vmatpush1.bf16.msra.mxu0 0
    %1802 = vmatprep.subr.bf16.mxu0 0
    %1803 = vmatpush1.bf16.msra.mxu0 0
    %1804 = vmatprep.subr.bf16.mxu0 0
    %1805 = vmatpush1.bf16.msra.mxu0 0
    %1806 = vmatprep.subr.bf16.mxu0 0
    %1807 = vmatpush1.bf16.msra.mxu0 0
    %1808 = vmatprep.mubr.bf16.mxu0 0
    %1809 = vmatmul.mubr.bf16.gmra.mrb[0].mxu0 %v1774
    %v1810 = vpop.f32.mrb[0].mxu0
    %v1811 = vadd.f32 %v1759, %v1810
    %v1812 = vpop.f32.mrb[0].mxu0
    %v1813 = vpop.f32.mrb[0].mxu0
    %v1814 = vadd.f32 %v1759, %v1813
    %v1815 = vpop.f32.mrb[0].mxu0
    %1816 = vdwg.mxu0
    %v1817 = vadd.f32 %v1811, %v29
    %v1818 = vadd.f32 %v1814, %v30
    %1819 = vadd.xlane.f32.xlu0 %v1817
    %v1820 = vpop.xlane.xlu0 %1819
    %1821 = vadd.xlane.f32.xlu0 %v1818
    %v1822 = vpop.xlane.xlu0 %1821
    %v1823 = vmul.f32 %v1820, 0.03125
    %v1824 = vmul.f32 %v1822, 0.03125
    %v1825 = vmul.f32 %v1817, %v1817
    %v1826 = vmul.f32 %v1818, %v1818
    %1827 = vadd.xlane.f32.xlu0 %v1825
    %v1828 = vpop.xlane.xlu0 %1827
    %1829 = vadd.xlane.f32.xlu0 %v1826
    %v1830 = vpop.xlane.xlu0 %1829
    %v1831 = vmul.f32 %v1828, 0.03125
    %v1832 = vmul.f32 %v1830, 0.03125
    %v1833 = vmul.f32 %v1823, %v1823
    %v1834 = vmul.f32 %v1824, %v1824
    %v1835 = vsub.f32 %v1831, %v1833
    %v1836 = vsub.f32 %v1832, %v1834
    %v1837 = vsub.f32 %v1817, %v1823
    %v1838 = vsub.f32 %v1818, %v1824
    %v1839 = vadd.f32 %v1835, 1e-06
    %v1840 = vadd.f32 %v1836, 1e-06
    %v1841 = vrsqrt.pop %v1839
    %v1842 = vrsqrt.pop %v1840
    %v1843 = vmul.f32 %v1837, %v1841
    %v1844 = vmul.f32 %v1838, %v1842
    %v1845 = vlaneseq
    %v1846 = vshrl.u32 %v1845, 7
    %v1847 = vsub.s32 1, %v1846
    %v1848 = vrot.slane %v31, %v1847
    %v1849 = vmul.f32 %v1843, %v1848
    %v1850 = vmul.f32 %v1844, %v1848
    %v1851 = vlaneseq
    %v1852 = vshrl.u32 %v1851, 7
    %v1853 = vsub.s32 2, %v1852
    %v1854 = vrot.slane %v31, %v1853
    %v1855 = vadd.f32 %v1849, %v1854
    %v1856 = vadd.f32 %v1850, %v1854
    %v1857 = vpack.c.bf16 %v1856, %v1855
    %s1858 = scalar_lea.vmem [#allocation2], 128
    %v1859 = vld [vmem:[%s1858] sm:$0xf]
    %v1860 = vld [vmem:[%s1858 + $0x4] sm:$0xf]
    %v1861 = vld [vmem:[%s1858 + $0x8] sm:$0xf]
    %v1862 = vld [vmem:[%s1858 + $0xc] sm:$0xf]
    %v1863 = vld [vmem:[%s1858 + $0x10] sm:$0xf]
    %v1864 = vld [vmem:[%s1858 + $0x14] sm:$0xf]
    %v1865 = vld [vmem:[%s1858 + $0x18] sm:$0xf]
    %v1866 = vld [vmem:[%s1858 + $0x1c] sm:$0xf]
    %v1867 = vld [vmem:[%s1858 + $0x20] sm:$0xf]
    %v1868 = vld [vmem:[%s1858 + $0x24] sm:$0xf]
    %v1869 = vld [vmem:[%s1858 + $0x28] sm:$0xf]
    %v1870 = vld [vmem:[%s1858 + $0x2c] sm:$0xf]
    %v1871 = vld [vmem:[%s1858 + $0x30] sm:$0xf]
    %v1872 = vld [vmem:[%s1858 + $0x34] sm:$0xf]
    %v1873 = vld [vmem:[%s1858 + $0x38] sm:$0xf]
    %v1874 = vld [vmem:[%s1858 + $0x3c] sm:$0xf]
    %v1875 = vlaneseq
    %v1876 = vshrl.u32 %v1875, 7
    %v1877 = vsub.s32 3, %v1876
    %v1878 = vrot.slane %v31, %v1877
    %v1895 = vunpack.c.l.b16 %v1859
    %v1896 = vunpack.c.l.b16 %v1860
    %v1897 = vunpack.c.l.b16 %v1861
    %v1898 = vunpack.c.l.b16 %v1862
    %v1899 = vunpack.c.l.b16 %v1863
    %v1900 = vunpack.c.l.b16 %v1864
    %v1901 = vunpack.c.l.b16 %v1865
    %v1902 = vunpack.c.l.b16 %v1866
    %v1903 = vunpack.c.l.b16 %v1867
    %v1904 = vunpack.c.l.b16 %v1868
    %v1905 = vunpack.c.l.b16 %v1869
    %v1906 = vunpack.c.l.b16 %v1870
    %v1907 = vunpack.c.l.b16 %v1871
    %v1908 = vunpack.c.l.b16 %v1872
    %v1909 = vunpack.c.l.b16 %v1873
    %v1910 = vunpack.c.l.b16 %v1874
    %v1911 = vpack.c.b16 %v1896, %v1895
    %v1912 = vpack.c.b16 %v1898, %v1897
    %v1913 = vpack.c.b16 %v1900, %v1899
    %v1914 = vpack.c.b16 %v1902, %v1901
    %v1915 = vpack.c.b16 %v1904, %v1903
    %v1916 = vpack.c.b16 %v1906, %v1905
    %v1917 = vpack.c.b16 %v1908, %v1907
    %v1918 = vpack.c.b16 %v1910, %v1909
    %1927 = vmatprep.subr.bf16.mxu0 0
    %1928 = vmatpush1.bf16.msra.mxu0 %v1911
    %1929 = vmatprep.subr.bf16.mxu0 0
    %1930 = vmatpush1.bf16.msra.mxu0 %v1912
    %1931 = vmatprep.subr.bf16.mxu0 0
    %1932 = vmatpush1.bf16.msra.mxu0 %v1913
    %1933 = vmatprep.subr.bf16.mxu0 0
    %1934 = vmatpush1.bf16.msra.mxu0 %v1914
    %1935 = vmatprep.subr.bf16.mxu0 0
    %1936 = vmatpush1.bf16.msra.mxu0 %v1915
    %1937 = vmatprep.subr.bf16.mxu0 0
    %1938 = vmatpush1.bf16.msra.mxu0 %v1916
    %1939 = vmatprep.subr.bf16.mxu0 0
    %1940 = vmatpush1.bf16.msra.mxu0 %v1917
    %1941 = vmatprep.subr.bf16.mxu0 0
    %1942 = vmatpush1.bf16.msra.mxu0 %v1918
    %1943 = vmatprep.subr.bf16.mxu0 0
    %1944 = vmatpush1.bf16.msra.mxu0 0
    %1945 = vmatprep.subr.bf16.mxu0 0
    %1946 = vmatpush1.bf16.msra.mxu0 0
    %1947 = vmatprep.subr.bf16.mxu0 0
    %1948 = vmatpush1.bf16.msra.mxu0 0
    %1949 = vmatprep.subr.bf16.mxu0 0
    %1950 = vmatpush1.bf16.msra.mxu0 0
    %1951 = vmatprep.subr.bf16.mxu0 0
    %1952 = vmatpush1.bf16.msra.mxu0 0
    %1953 = vmatprep.subr.bf16.mxu0 0
    %1954 = vmatpush1.bf16.msra.mxu0 0
    %1955 = vmatprep.subr.bf16.mxu0 0
    %1956 = vmatpush1.bf16.msra.mxu0 0
    %1957 = vmatprep.subr.bf16.mxu0 0
    %1958 = vmatpush1.bf16.msra.mxu0 0
    %1959 = vmatprep.mubr.bf16.mxu0 0
    %1960 = vmatmul.mubr.bf16.gmra.mrb[0].mxu0 %v1857
    %v1961 = vpop.f32.mrb[0].mxu0
    %v1962 = vadd.f32 %v1878, %v1961
    %v1963 = vpop.f32.mrb[0].mxu0
    %v1964 = vpop.f32.mrb[0].mxu0
    %v1965 = vadd.f32 %v1878, %v1964
    %v1966 = vpop.f32.mrb[0].mxu0
    %1967 = vdwg.mxu0
    %v1968 = vmax.f32 %v1962, 0.0
    %v1969 = vmax.f32 %v1965, 0.0
    %v1970 = vpack.c.bf16 %v1969, %v1968
    %s1971 = scalar_lea.vmem [#allocation2], 192
    %v1972 = vld [vmem:[%s1971] sm:$0xf]
    %v1973 = vld [vmem:[%s1971 + $0x4] sm:$0xf]
    %v1974 = vld [vmem:[%s1971 + $0x8] sm:$0xf]
    %v1975 = vld [vmem:[%s1971 + $0xc] sm:$0xf]
    %v1976 = vld [vmem:[%s1971 + $0x10] sm:$0xf]
    %v1977 = vld [vmem:[%s1971 + $0x14] sm:$0xf]
    %v1978 = vld [vmem:[%s1971 + $0x18] sm:$0xf]
    %v1979 = vld [vmem:[%s1971 + $0x1c] sm:$0xf]
    %v1980 = vld [vmem:[%s1971 + $0x20] sm:$0xf]
    %v1981 = vld [vmem:[%s1971 + $0x24] sm:$0xf]
    %v1982 = vld [vmem:[%s1971 + $0x28] sm:$0xf]
    %v1983 = vld [vmem:[%s1971 + $0x2c] sm:$0xf]
    %v1984 = vld [vmem:[%s1971 + $0x30] sm:$0xf]
    %v1985 = vld [vmem:[%s1971 + $0x34] sm:$0xf]
    %v1986 = vld [vmem:[%s1971 + $0x38] sm:$0xf]
    %v1987 = vld [vmem:[%s1971 + $0x3c] sm:$0xf]
    %v1988 = vlaneseq
    %v1989 = vshrl.u32 %v1988, 7
    %v1990 = vsub.s32 4, %v1989
    %v1991 = vrot.slane %v31, %v1990
    %v2008 = vunpack.c.l.b16 %v1972
    %v2009 = vunpack.c.l.b16 %v1973
    %v2010 = vunpack.c.l.b16 %v1974
    %v2011 = vunpack.c.l.b16 %v1975
    %v2012 = vunpack.c.l.b16 %v1976
    %v2013 = vunpack.c.l.b16 %v1977
    %v2014 = vunpack.c.l.b16 %v1978
    %v2015 = vunpack.c.l.b16 %v1979
    %v2016 = vunpack.c.l.b16 %v1980
    %v2017 = vunpack.c.l.b16 %v1981
    %v2018 = vunpack.c.l.b16 %v1982
    %v2019 = vunpack.c.l.b16 %v1983
    %v2020 = vunpack.c.l.b16 %v1984
    %v2021 = vunpack.c.l.b16 %v1985
    %v2022 = vunpack.c.l.b16 %v1986
    %v2023 = vunpack.c.l.b16 %v1987
    %v2024 = vpack.c.b16 %v2009, %v2008
    %v2025 = vpack.c.b16 %v2011, %v2010
    %v2026 = vpack.c.b16 %v2013, %v2012
    %v2027 = vpack.c.b16 %v2015, %v2014
    %v2028 = vpack.c.b16 %v2017, %v2016
    %v2029 = vpack.c.b16 %v2019, %v2018
    %v2030 = vpack.c.b16 %v2021, %v2020
    %v2031 = vpack.c.b16 %v2023, %v2022
    %2040 = vmatprep.subr.bf16.mxu0 0
    %2041 = vmatpush1.bf16.msra.mxu0 %v2024
    %2042 = vmatprep.subr.bf16.mxu0 0
    %2043 = vmatpush1.bf16.msra.mxu0 %v2025
    %2044 = vmatprep.subr.bf16.mxu0 0
    %2045 = vmatpush1.bf16.msra.mxu0 %v2026
    %2046 = vmatprep.subr.bf16.mxu0 0
    %2047 = vmatpush1.bf16.msra.mxu0 %v2027
    %2048 = vmatprep.subr.bf16.mxu0 0
    %2049 = vmatpush1.bf16.msra.mxu0 %v2028
    %2050 = vmatprep.subr.bf16.mxu0 0
    %2051 = vmatpush1.bf16.msra.mxu0 %v2029
    %2052 = vmatprep.subr.bf16.mxu0 0
    %2053 = vmatpush1.bf16.msra.mxu0 %v2030
    %2054 = vmatprep.subr.bf16.mxu0 0
    %2055 = vmatpush1.bf16.msra.mxu0 %v2031
    %2056 = vmatprep.subr.bf16.mxu0 0
    %2057 = vmatpush1.bf16.msra.mxu0 0
    %2058 = vmatprep.subr.bf16.mxu0 0
    %2059 = vmatpush1.bf16.msra.mxu0 0
    %2060 = vmatprep.subr.bf16.mxu0 0
    %2061 = vmatpush1.bf16.msra.mxu0 0
    %2062 = vmatprep.subr.bf16.mxu0 0
    %2063 = vmatpush1.bf16.msra.mxu0 0
    %2064 = vmatprep.subr.bf16.mxu0 0
    %2065 = vmatpush1.bf16.msra.mxu0 0
    %2066 = vmatprep.subr.bf16.mxu0 0
    %2067 = vmatpush1.bf16.msra.mxu0 0
    %2068 = vmatprep.subr.bf16.mxu0 0
    %2069 = vmatpush1.bf16.msra.mxu0 0
    %2070 = vmatprep.subr.bf16.mxu0 0
    %2071 = vmatpush1.bf16.msra.mxu0 0
    %2072 = vmatprep.mubr.bf16.mxu0 0
    %2073 = vmatmul.mubr.bf16.gmra.mrb[0].mxu0 %v1970
    %v2074 = vpop.f32.mrb[0].mxu0
    %v2075 = vadd.f32 %v1991, %v2074
    %v2076 = vpop.f32.mrb[0].mxu0
    %v2077 = vpop.f32.mrb[0].mxu0
    %v2078 = vadd.f32 %v1991, %v2077
    %v2079 = vpop.f32.mrb[0].mxu0
    %2080 = vdwg.mxu0
    %v2081 = vadd.f32 %v2075, %v1855
    %v2082 = vadd.f32 %v2078, %v1856
    %2083 = vadd.xlane.f32.xlu0 %v2081
    %v2084 = vpop.xlane.xlu0 %2083
    %2085 = vadd.xlane.f32.xlu0 %v2082
    %v2086 = vpop.xlane.xlu0 %2085
    %v2087 = vmul.f32 %v2084, 0.03125
    %v2088 = vmul.f32 %v2086, 0.03125
    %v2089 = vmul.f32 %v2081, %v2081
    %v2090 = vmul.f32 %v2082, %v2082
    %2091 = vadd.xlane.f32.xlu0 %v2089
    %v2092 = vpop.xlane.xlu0 %2091
    %2093 = vadd.xlane.f32.xlu0 %v2090
    %v2094 = vpop.xlane.xlu0 %2093
    %v2095 = vmul.f32 %v2092, 0.03125
    %v2096 = vmul.f32 %v2094, 0.03125
    %v2097 = vmul.f32 %v2087, %v2087
    %v2098 = vmul.f32 %v2088, %v2088
    %v2099 = vsub.f32 %v2095, %v2097
    %v2100 = vsub.f32 %v2096, %v2098
    %v2101 = vsub.f32 %v2081, %v2087
    %v2102 = vsub.f32 %v2082, %v2088
    %v2103 = vadd.f32 %v2099, 1e-06
    %v2104 = vadd.f32 %v2100, 1e-06
    %v2105 = vrsqrt.pop %v2103
    %v2106 = vrsqrt.pop %v2104
    %v2107 = vmul.f32 %v2101, %v2105
    %v2108 = vmul.f32 %v2102, %v2106
    %v2109 = vlaneseq
    %v2110 = vshrl.u32 %v2109, 7
    %v2111 = vsub.s32 5, %v2110
    %v2112 = vrot.slane %v31, %v2111
    %v2113 = vmul.f32 %v2107, %v2112
    %v2114 = vmul.f32 %v2108, %v2112
    %v2115 = vlaneseq
    %v2116 = vshrl.u32 %v2115, 7
    %v2117 = vsub.s32 6, %v2116
    %v2118 = vrot.slane %v31, %v2117
    %v2119 = vadd.f32 %v2113, %v2118
    %v2120 = vadd.f32 %v2114, %v2118
    %s2121 = scalar_lea.vmem %s2, 8
    %v2122 = vld [vmem:[%s2121] sm:$0xff]
    %v2123 = vpack.c.bf16 %v2120, %v2119
    %s2124 = scalar_lea.vmem [#allocation2], 256
    %v2125 = vld [vmem:[%s2124] sm:$0xf]
    %v2126 = vld [vmem:[%s2124 + $0x4] sm:$0xf]
    %v2127 = vld [vmem:[%s2124 + $0x8] sm:$0xf]
    %v2128 = vld [vmem:[%s2124 + $0xc] sm:$0xf]
    %v2129 = vld [vmem:[%s2124 + $0x10] sm:$0xf]
    %v2130 = vld [vmem:[%s2124 + $0x14] sm:$0xf]
    %v2131 = vld [vmem:[%s2124 + $0x18] sm:$0xf]
    %v2132 = vld [vmem:[%s2124 + $0x1c] sm:$0xf]
    %v2133 = vld [vmem:[%s2124 + $0x20] sm:$0xf]
    %v2134 = vld [vmem:[%s2124 + $0x24] sm:$0xf]
    %v2135 = vld [vmem:[%s2124 + $0x28] sm:$0xf]
    %v2136 = vld [vmem:[%s2124 + $0x2c] sm:$0xf]
    %v2137 = vld [vmem:[%s2124 + $0x30] sm:$0xf]
    %v2138 = vld [vmem:[%s2124 + $0x34] sm:$0xf]
    %v2139 = vld [vmem:[%s2124 + $0x38] sm:$0xf]
    %v2140 = vld [vmem:[%s2124 + $0x3c] sm:$0xf]
    %v2157 = vunpack.c.l.b16 %v2125
    %v2158 = vunpack.c.l.b16 %v2126
    %v2159 = vunpack.c.l.b16 %v2127
    %v2160 = vunpack.c.l.b16 %v2128
    %v2161 = vunpack.c.l.b16 %v2129
    %v2162 = vunpack.c.l.b16 %v2130
    %v2163 = vunpack.c.l.b16 %v2131
    %v2164 = vunpack.c.l.b16 %v2132
    %v2165 = vunpack.c.l.b16 %v2133
    %v2166 = vunpack.c.l.b16 %v2134
    %v2167 = vunpack.c.l.b16 %v2135
    %v2168 = vunpack.c.l.b16 %v2136
    %v2169 = vunpack.c.l.b16 %v2137
    %v2170 = vunpack.c.l.b16 %v2138
    %v2171 = vunpack.c.l.b16 %v2139
    %v2172 = vunpack.c.l.b16 %v2140
    %v2173 = vpack.c.b16 %v2158, %v2157
    %v2174 = vpack.c.b16 %v2160, %v2159
    %v2175 = vpack.c.b16 %v2162, %v2161
    %v2176 = vpack.c.b16 %v2164, %v2163
    %v2177 = vpack.c.b16 %v2166, %v2165
    %v2178 = vpack.c.b16 %v2168, %v2167
    %v2179 = vpack.c.b16 %v2170, %v2169
    %v2180 = vpack.c.b16 %v2172, %v2171
    %2189 = vmatprep.subr.bf16.mxu0 0
    %2190 = vmatpush1.bf16.msra.mxu0 %v2173
    %2191 = vmatprep.subr.bf16.mxu0 0
    %2192 = vmatpush1.bf16.msra.mxu0 %v2174
    %2193 = vmatprep.subr.bf16.mxu0 0
    %2194 = vmatpush1.bf16.msra.mxu0 %v2175
    %2195 = vmatprep.subr.bf16.mxu0 0
    %2196 = vmatpush1.bf16.msra.mxu0 %v2176
    %2197 = vmatprep.subr.bf16.mxu0 0
    %2198 = vmatpush1.bf16.msra.mxu0 %v2177
    %2199 = vmatprep.subr.bf16.mxu0 0
    %2200 = vmatpush1.bf16.msra.mxu0 %v2178
    %2201 = vmatprep.subr.bf16.mxu0 0
    %2202 = vmatpush1.bf16.msra.mxu0 %v2179
    %2203 = vmatprep.subr.bf16.mxu0 0
    %2204 = vmatpush1.bf16.msra.mxu0 %v2180
    %2205 = vmatprep.subr.bf16.mxu0 0
    %2206 = vmatpush1.bf16.msra.mxu0 0
    %2207 = vmatprep.subr.bf16.mxu0 0
    %2208 = vmatpush1.bf16.msra.mxu0 0
    %2209 = vmatprep.subr.bf16.mxu0 0
    %2210 = vmatpush1.bf16.msra.mxu0 0
    %2211 = vmatprep.subr.bf16.mxu0 0
    %2212 = vmatpush1.bf16.msra.mxu0 0
    %2213 = vmatprep.subr.bf16.mxu0 0
    %2214 = vmatpush1.bf16.msra.mxu0 0
    %2215 = vmatprep.subr.bf16.mxu0 0
    %2216 = vmatpush1.bf16.msra.mxu0 0
    %2217 = vmatprep.subr.bf16.mxu0 0
    %2218 = vmatpush1.bf16.msra.mxu0 0
    %2219 = vmatprep.subr.bf16.mxu0 0
    %2220 = vmatpush1.bf16.msra.mxu0 0
    %2221 = vmatprep.mubr.bf16.mxu0 0
    %2222 = vmatmul.mubr.bf16.gmra.mrb[0].mxu0 %v2123
    %v2223 = vpop.f32.mrb[0].mxu0
    %v2224 = vadd.f32 0.0, %v2223
    %v2225 = vpop.f32.mrb[0].mxu0
    %v2226 = vpop.f32.mrb[0].mxu0
    %v2227 = vadd.f32 0.0, %v2226
    %v2228 = vpop.f32.mrb[0].mxu0
    %2229 = vdwg.mxu0
    %2232 = vrot.lane.b32.xlu0 %v2224, 112
    %v2233 = vpop.permute.xlu0 %2232
    %2234 = vrot.lane.b32.xlu0 %v2227, 112
    %v2235 = vpop.permute.xlu0 %2234
    %v2238 = vcombine.high %v2224, 0.0
    %v2240 = vunpack.c.l.s4 1983009808
    %v2241 = vunpack.c.0.s8 %v2240
    %v2242 = vlaneseq
    %v2243 = vshrl.u32 %v2242, 7
    %v2244 = vsub.s32 %v2241, %v2243
    %v2245 = vrot.slane %v2224, %v2244
    %v2247 = vunpack.c.l.s4 1983009808
    %v2248 = vunpack.c.0.s8 %v2247
    %v2249 = vlaneseq
    %v2250 = vshrl.u32 %v2249, 7
    %v2251 = vsub.s32 %v2248, %v2250
    %v2252 = vrot.slane %v2238, %v2251
    %v2253 = vcombine.high %v2233, 0.0
    %v2255 = vunpack.c.l.s4 1983009808
    %v2256 = vunpack.c.0.s8 %v2255
    %v2257 = vlaneseq
    %v2258 = vshrl.u32 %v2257, 7
    %v2259 = vsub.s32 %v2256, %v2258
    %v2260 = vrot.slane %v2233, %v2259
    %v2262 = vunpack.c.l.s4 1983009808
    %v2263 = vunpack.c.0.s8 %v2262
    %v2264 = vlaneseq
    %v2265 = vshrl.u32 %v2264, 7
    %v2266 = vsub.s32 %v2263, %v2265
    %v2267 = vrot.slane %v2253, %v2266
    %v2268 = vcombine.low %v2245, %v2260
    %v2269 = vcombine.high %v2245, %v2260
    %v2271 = vunpack.c.l.s4 1934713408
    %v2272 = vunpack.c.0.s8 %v2271
    %v2273 = vlaneseq
    %v2274 = vshrl.u32 %v2273, 7
    %v2275 = vsub.s32 %v2272, %v2274
    %v2276 = vrot.slane %v2268, %v2275
    %v2278 = vunpack.c.l.s4 1934713408
    %v2279 = vunpack.c.0.s8 %v2278
    %v2280 = vlaneseq
    %v2281 = vshrl.u32 %v2280, 7
    %v2282 = vsub.s32 %v2279, %v2281
    %v2283 = vrot.slane %v2269, %v2282
    %v2284 = vcombine.low %v2252, %v2267
    %v2285 = vcombine.high %v2252, %v2267
    %v2287 = vunpack.c.l.s4 1934713408
    %v2288 = vunpack.c.0.s8 %v2287
    %v2289 = vlaneseq
    %v2290 = vshrl.u32 %v2289, 7
    %v2291 = vsub.s32 %v2288, %v2290
    %v2292 = vrot.slane %v2284, %v2291
    %v2294 = vunpack.c.l.s4 1934713408
    %v2295 = vunpack.c.0.s8 %v2294
    %v2296 = vlaneseq
    %v2297 = vshrl.u32 %v2296, 7
    %v2298 = vsub.s32 %v2295, %v2297
    %v2299 = vrot.slane %v2285, %v2298
    %v2300 = vcombine.high %v2276, 0.0
    %v2301 = vcombine.high %v2283, 0.0
    %v2302 = vcombine.high %v2292, 0.0
    %v2303 = vcombine.high %v2299, 0.0
    %v2304 = vcombine.high %v2227, 0.0
    %v2306 = vunpack.c.l.s4 1983009808
    %v2307 = vunpack.c.0.s8 %v2306
    %v2308 = vlaneseq
    %v2309 = vshrl.u32 %v2308, 7
    %v2310 = vsub.s32 %v2307, %v2309
    %v2311 = vrot.slane %v2227, %v2310
    %v2313 = vunpack.c.l.s4 1983009808
    %v2314 = vunpack.c.0.s8 %v2313
    %v2315 = vlaneseq
    %v2316 = vshrl.u32 %v2315, 7
    %v2317 = vsub.s32 %v2314, %v2316
    %v2318 = vrot.slane %v2304, %v2317
    %v2319 = vcombine.high %v2235, 0.0
    %v2321 = vunpack.c.l.s4 1983009808
    %v2322 = vunpack.c.0.s8 %v2321
    %v2323 = vlaneseq
    %v2324 = vshrl.u32 %v2323, 7
    %v2325 = vsub.s32 %v2322, %v2324
    %v2326 = vrot.slane %v2235, %v2325
    %v2328 = vunpack.c.l.s4 1983009808
    %v2329 = vunpack.c.0.s8 %v2328
    %v2330 = vlaneseq
    %v2331 = vshrl.u32 %v2330, 7
    %v2332 = vsub.s32 %v2329, %v2331
    %v2333 = vrot.slane %v2319, %v2332
    %v2334 = vcombine.low %v2311, %v2326
    %v2335 = vcombine.high %v2311, %v2326
    %v2337 = vunpack.c.l.s4 1934713408
    %v2338 = vunpack.c.0.s8 %v2337
    %v2339 = vlaneseq
    %v2340 = vshrl.u32 %v2339, 7
    %v2341 = vsub.s32 %v2338, %v2340
    %v2342 = vrot.slane %v2334, %v2341
    %v2344 = vunpack.c.l.s4 1934713408
    %v2345 = vunpack.c.0.s8 %v2344
    %v2346 = vlaneseq
    %v2347 = vshrl.u32 %v2346, 7
    %v2348 = vsub.s32 %v2345, %v2347
    %v2349 = vrot.slane %v2335, %v2348
    %v2350 = vcombine.low %v2318, %v2333
    %v2351 = vcombine.high %v2318, %v2333
    %v2353 = vunpack.c.l.s4 1934713408
    %v2354 = vunpack.c.0.s8 %v2353
    %v2355 = vlaneseq
    %v2356 = vshrl.u32 %v2355, 7
    %v2357 = vsub.s32 %v2354, %v2356
    %v2358 = vrot.slane %v2350, %v2357
    %v2360 = vunpack.c.l.s4 1934713408
    %v2361 = vunpack.c.0.s8 %v2360
    %v2362 = vlaneseq
    %v2363 = vshrl.u32 %v2362, 7
    %v2364 = vsub.s32 %v2361, %v2363
    %v2365 = vrot.slane %v2351, %v2364
    %v2366 = vcombine.high %v2342, 0.0
    %v2367 = vcombine.high %v2349, 0.0
    %v2368 = vcombine.high %v2358, 0.0
    %v2369 = vcombine.high %v2365, 0.0
    %v2370 = vcombine.low %v2276, %v2283
    %v2372 = vunpack.c.l.s4 1983009808
    %v2373 = vunpack.c.0.s8 %v2372
    %v2374 = vlaneseq
    %v2375 = vshrl.u32 %v2374, 7
    %v2376 = vsub.s32 %v2373, %v2375
    %v2377 = vrot.slane %v2370, %v2376
    %v2378 = vcombine.low %v2300, %v2301
    %v2380 = vunpack.c.l.s4 1983009808
    %v2381 = vunpack.c.0.s8 %v2380
    %v2382 = vlaneseq
    %v2383 = vshrl.u32 %v2382, 7
    %v2384 = vsub.s32 %v2381, %v2383
    %v2385 = vrot.slane %v2378, %v2384
    %v2386 = vcombine.low %v2292, %v2299
    %v2388 = vunpack.c.l.s4 1983009808
    %v2389 = vunpack.c.0.s8 %v2388
    %v2390 = vlaneseq
    %v2391 = vshrl.u32 %v2390, 7
    %v2392 = vsub.s32 %v2389, %v2391
    %v2393 = vrot.slane %v2386, %v2392
    %v2394 = vcombine.low %v2302, %v2303
    %v2396 = vunpack.c.l.s4 1983009808
    %v2397 = vunpack.c.0.s8 %v2396
    %v2398 = vlaneseq
    %v2399 = vshrl.u32 %v2398, 7
    %v2400 = vsub.s32 %v2397, %v2399
    %v2401 = vrot.slane %v2394, %v2400
    %v2402 = vcombine.low %v2377, %v2385
    %v2404 = vunpack.c.l.s4 1934713408
    %v2405 = vunpack.c.0.s8 %v2404
    %v2406 = vlaneseq
    %v2407 = vshrl.u32 %v2406, 7
    %v2408 = vsub.s32 %v2405, %v2407
    %v2409 = vrot.slane %v2402, %v2408
    %v2410 = vcombine.low %v2393, %v2401
    %v2412 = vunpack.c.l.s4 1934713408
    %v2413 = vunpack.c.0.s8 %v2412
    %v2414 = vlaneseq
    %v2415 = vshrl.u32 %v2414, 7
    %v2416 = vsub.s32 %v2413, %v2415
    %v2417 = vrot.slane %v2410, %v2416
    %v2418 = vcombine.low %v2409, %v2417
    %v2419 = vcombine.high %v2409, %v2417
    %v2420 = vcombine.low %v2342, %v2349
    %v2422 = vunpack.c.l.s4 1983009808
    %v2423 = vunpack.c.0.s8 %v2422
    %v2424 = vlaneseq
    %v2425 = vshrl.u32 %v2424, 7
    %v2426 = vsub.s32 %v2423, %v2425
    %v2427 = vrot.slane %v2420, %v2426
    %v2428 = vcombine.low %v2366, %v2367
    %v2430 = vunpack.c.l.s4 1983009808
    %v2431 = vunpack.c.0.s8 %v2430
    %v2432 = vlaneseq
    %v2433 = vshrl.u32 %v2432, 7
    %v2434 = vsub.s32 %v2431, %v2433
    %v2435 = vrot.slane %v2428, %v2434
    %v2436 = vcombine.low %v2358, %v2365
    %v2438 = vunpack.c.l.s4 1983009808
    %v2439 = vunpack.c.0.s8 %v2438
    %v2440 = vlaneseq
    %v2441 = vshrl.u32 %v2440, 7
    %v2442 = vsub.s32 %v2439, %v2441
    %v2443 = vrot.slane %v2436, %v2442
    %v2444 = vcombine.low %v2368, %v2369
    %v2446 = vunpack.c.l.s4 1983009808
    %v2447 = vunpack.c.0.s8 %v2446
    %v2448 = vlaneseq
    %v2449 = vshrl.u32 %v2448, 7
    %v2450 = vsub.s32 %v2447, %v2449
    %v2451 = vrot.slane %v2444, %v2450
    %v2452 = vcombine.low %v2427, %v2435
    %v2454 = vunpack.c.l.s4 1934713408
    %v2455 = vunpack.c.0.s8 %v2454
    %v2456 = vlaneseq
    %v2457 = vshrl.u32 %v2456, 7
    %v2458 = vsub.s32 %v2455, %v2457
    %v2459 = vrot.slane %v2452, %v2458
    %v2460 = vcombine.low %v2443, %v2451
    %v2462 = vunpack.c.l.s4 1934713408
    %v2463 = vunpack.c.0.s8 %v2462
    %v2464 = vlaneseq
    %v2465 = vshrl.u32 %v2464, 7
    %v2466 = vsub.s32 %v2463, %v2465
    %v2467 = vrot.slane %v2460, %v2466
    %v2468 = vcombine.low %v2459, %v2467
    %v2469 = vcombine.high %v2459, %v2467
    %2470 = vrot.lane.b32.xlu0 %v2224, 96
    %v2471 = vpop.permute.xlu0 %2470
    %2472 = vrot.lane.b32.xlu0 %v2233, 96
    %v2473 = vpop.permute.xlu0 %2472
    %2474 = vrot.lane.b32.xlu0 %v2227, 96
    %v2475 = vpop.permute.xlu0 %2474
    %2476 = vrot.lane.b32.xlu0 %v2235, 96
    %v2477 = vpop.permute.xlu0 %2476
    %v2482 = vcombine.high %v2471, 0.0
    %v2484 = vunpack.c.l.s4 1983009808
    %v2485 = vunpack.c.0.s8 %v2484
    %v2486 = vlaneseq
    %v2487 = vshrl.u32 %v2486, 7
    %v2488 = vsub.s32 %v2485, %v2487
    %v2489 = vrot.slane %v2471, %v2488
    %v2491 = vunpack.c.l.s4 1983009808
    %v2492 = vunpack.c.0.s8 %v2491
    %v2493 = vlaneseq
    %v2494 = vshrl.u32 %v2493, 7
    %v2495 = vsub.s32 %v2492, %v2494
    %v2496 = vrot.slane %v2482, %v2495
    %v2497 = vcombine.high %v2473, 0.0
    %v2499 = vunpack.c.l.s4 1983009808
    %v2500 = vunpack.c.0.s8 %v2499
    %v2501 = vlaneseq
    %v2502 = vshrl.u32 %v2501, 7
    %v2503 = vsub.s32 %v2500, %v2502
    %v2504 = vrot.slane %v2473, %v2503
    %v2506 = vunpack.c.l.s4 1983009808
    %v2507 = vunpack.c.0.s8 %v2506
    %v2508 = vlaneseq
    %v2509 = vshrl.u32 %v2508, 7
    %v2510 = vsub.s32 %v2507, %v2509
    %v2511 = vrot.slane %v2497, %v2510
    %v2512 = vcombine.low %v2489, %v2504
    %v2513 = vcombine.high %v2489, %v2504
    %v2515 = vunpack.c.l.s4 1934713408
    %v2516 = vunpack.c.0.s8 %v2515
    %v2517 = vlaneseq
    %v2518 = vshrl.u32 %v2517, 7
    %v2519 = vsub.s32 %v2516, %v2518
    %v2520 = vrot.slane %v2512, %v2519
    %v2522 = vunpack.c.l.s4 1934713408
    %v2523 = vunpack.c.0.s8 %v2522
    %v2524 = vlaneseq
    %v2525 = vshrl.u32 %v2524, 7
    %v2526 = vsub.s32 %v2523, %v2525
    %v2527 = vrot.slane %v2513, %v2526
    %v2528 = vcombine.low %v2496, %v2511
    %v2529 = vcombine.high %v2496, %v2511
    %v2531 = vunpack.c.l.s4 1934713408
    %v2532 = vunpack.c.0.s8 %v2531
    %v2533 = vlaneseq
    %v2534 = vshrl.u32 %v2533, 7
    %v2535 = vsub.s32 %v2532, %v2534
    %v2536 = vrot.slane %v2528, %v2535
    %v2538 = vunpack.c.l.s4 1934713408
    %v2539 = vunpack.c.0.s8 %v2538
    %v2540 = vlaneseq
    %v2541 = vshrl.u32 %v2540, 7
    %v2542 = vsub.s32 %v2539, %v2541
    %v2543 = vrot.slane %v2529, %v2542
    %v2544 = vcombine.high %v2520, 0.0
    %v2545 = vcombine.high %v2527, 0.0
    %v2546 = vcombine.high %v2536, 0.0
    %v2547 = vcombine.high %v2543, 0.0
    %v2548 = vcombine.high %v2475, 0.0
    %v2550 = vunpack.c.l.s4 1983009808
    %v2551 = vunpack.c.0.s8 %v2550
    %v2552 = vlaneseq
    %v2553 = vshrl.u32 %v2552, 7
    %v2554 = vsub.s32 %v2551, %v2553
    %v2555 = vrot.slane %v2475, %v2554
    %v2557 = vunpack.c.l.s4 1983009808
    %v2558 = vunpack.c.0.s8 %v2557
    %v2559 = vlaneseq
    %v2560 = vshrl.u32 %v2559, 7
    %v2561 = vsub.s32 %v2558, %v2560
    %v2562 = vrot.slane %v2548, %v2561
    %v2563 = vcombine.high %v2477, 0.0
    %v2565 = vunpack.c.l.s4 1983009808
    %v2566 = vunpack.c.0.s8 %v2565
    %v2567 = vlaneseq
    %v2568 = vshrl.u32 %v2567, 7
    %v2569 = vsub.s32 %v2566, %v2568
    %v2570 = vrot.slane %v2477, %v2569
    %v2572 = vunpack.c.l.s4 1983009808
    %v2573 = vunpack.c.0.s8 %v2572
    %v2574 = vlaneseq
    %v2575 = vshrl.u32 %v2574, 7
    %v2576 = vsub.s32 %v2573, %v2575
    %v2577 = vrot.slane %v2563, %v2576
    %v2578 = vcombine.low %v2555, %v2570
    %v2579 = vcombine.high %v2555, %v2570
    %v2581 = vunpack.c.l.s4 1934713408
    %v2582 = vunpack.c.0.s8 %v2581
    %v2583 = vlaneseq
    %v2584 = vshrl.u32 %v2583, 7
    %v2585 = vsub.s32 %v2582, %v2584
    %v2586 = vrot.slane %v2578, %v2585
    %v2588 = vunpack.c.l.s4 1934713408
    %v2589 = vunpack.c.0.s8 %v2588
    %v2590 = vlaneseq
    %v2591 = vshrl.u32 %v2590, 7
    %v2592 = vsub.s32 %v2589, %v2591
    %v2593 = vrot.slane %v2579, %v2592
    %v2594 = vcombine.low %v2562, %v2577
    %v2595 = vcombine.high %v2562, %v2577
    %v2597 = vunpack.c.l.s4 1934713408
    %v2598 = vunpack.c.0.s8 %v2597
    %v2599 = vlaneseq
    %v2600 = vshrl.u32 %v2599, 7
    %v2601 = vsub.s32 %v2598, %v2600
    %v2602 = vrot.slane %v2594, %v2601
    %v2604 = vunpack.c.l.s4 1934713408
    %v2605 = vunpack.c.0.s8 %v2604
    %v2606 = vlaneseq
    %v2607 = vshrl.u32 %v2606, 7
    %v2608 = vsub.s32 %v2605, %v2607
    %v2609 = vrot.slane %v2595, %v2608
    %v2610 = vcombine.high %v2586, 0.0
    %v2611 = vcombine.high %v2593, 0.0
    %v2612 = vcombine.high %v2602, 0.0
    %v2613 = vcombine.high %v2609, 0.0
    %v2614 = vcombine.low %v2520, %v2527
    %v2616 = vunpack.c.l.s4 1983009808
    %v2617 = vunpack.c.0.s8 %v2616
    %v2618 = vlaneseq
    %v2619 = vshrl.u32 %v2618, 7
    %v2620 = vsub.s32 %v2617, %v2619
    %v2621 = vrot.slane %v2614, %v2620
    %v2622 = vcombine.low %v2544, %v2545
    %v2624 = vunpack.c.l.s4 1983009808
    %v2625 = vunpack.c.0.s8 %v2624
    %v2626 = vlaneseq
    %v2627 = vshrl.u32 %v2626, 7
    %v2628 = vsub.s32 %v2625, %v2627
    %v2629 = vrot.slane %v2622, %v2628
    %v2630 = vcombine.low %v2536, %v2543
    %v2632 = vunpack.c.l.s4 1983009808
    %v2633 = vunpack.c.0.s8 %v2632
    %v2634 = vlaneseq
    %v2635 = vshrl.u32 %v2634, 7
    %v2636 = vsub.s32 %v2633, %v2635
    %v2637 = vrot.slane %v2630, %v2636
    %v2638 = vcombine.low %v2546, %v2547
    %v2640 = vunpack.c.l.s4 1983009808
    %v2641 = vunpack.c.0.s8 %v2640
    %v2642 = vlaneseq
    %v2643 = vshrl.u32 %v2642, 7
    %v2644 = vsub.s32 %v2641, %v2643
    %v2645 = vrot.slane %v2638, %v2644
    %v2646 = vcombine.low %v2621, %v2629
    %v2648 = vunpack.c.l.s4 1934713408
    %v2649 = vunpack.c.0.s8 %v2648
    %v2650 = vlaneseq
    %v2651 = vshrl.u32 %v2650, 7
    %v2652 = vsub.s32 %v2649, %v2651
    %v2653 = vrot.slane %v2646, %v2652
    %v2654 = vcombine.low %v2637, %v2645
    %v2656 = vunpack.c.l.s4 1934713408
    %v2657 = vunpack.c.0.s8 %v2656
    %v2658 = vlaneseq
    %v2659 = vshrl.u32 %v2658, 7
    %v2660 = vsub.s32 %v2657, %v2659
    %v2661 = vrot.slane %v2654, %v2660
    %v2662 = vcombine.low %v2653, %v2661
    %v2663 = vcombine.high %v2653, %v2661
    %v2664 = vcombine.low %v2586, %v2593
    %v2666 = vunpack.c.l.s4 1983009808
    %v2667 = vunpack.c.0.s8 %v2666
    %v2668 = vlaneseq
    %v2669 = vshrl.u32 %v2668, 7
    %v2670 = vsub.s32 %v2667, %v2669
    %v2671 = vrot.slane %v2664, %v2670
    %v2672 = vcombine.low %v2610, %v2611
    %v2674 = vunpack.c.l.s4 1983009808
    %v2675 = vunpack.c.0.s8 %v2674
    %v2676 = vlaneseq
    %v2677 = vshrl.u32 %v2676, 7
    %v2678 = vsub.s32 %v2675, %v2677
    %v2679 = vrot.slane %v2672, %v2678
    %v2680 = vcombine.low %v2602, %v2609
    %v2682 = vunpack.c.l.s4 1983009808
    %v2683 = vunpack.c.0.s8 %v2682
    %v2684 = vlaneseq
    %v2685 = vshrl.u32 %v2684, 7
    %v2686 = vsub.s32 %v2683, %v2685
    %v2687 = vrot.slane %v2680, %v2686
    %v2688 = vcombine.low %v2612, %v2613
    %v2690 = vunpack.c.l.s4 1983009808
    %v2691 = vunpack.c.0.s8 %v2690
    %v2692 = vlaneseq
    %v2693 = vshrl.u32 %v2692, 7
    %v2694 = vsub.s32 %v2691, %v2693
    %v2695 = vrot.slane %v2688, %v2694
    %v2696 = vcombine.low %v2671, %v2679
    %v2698 = vunpack.c.l.s4 1934713408
    %v2699 = vunpack.c.0.s8 %v2698
    %v2700 = vlaneseq
    %v2701 = vshrl.u32 %v2700, 7
    %v2702 = vsub.s32 %v2699, %v2701
    %v2703 = vrot.slane %v2696, %v2702
    %v2704 = vcombine.low %v2687, %v2695
    %v2706 = vunpack.c.l.s4 1934713408
    %v2707 = vunpack.c.0.s8 %v2706
    %v2708 = vlaneseq
    %v2709 = vshrl.u32 %v2708, 7
    %v2710 = vsub.s32 %v2707, %v2709
    %v2711 = vrot.slane %v2704, %v2710
    %v2712 = vcombine.low %v2703, %v2711
    %v2713 = vcombine.high %v2703, %v2711
    %2714 = vrot.lane.b32.xlu0 %v2224, 64
    %v2715 = vpop.permute.xlu0 %2714
    %2716 = vrot.lane.b32.xlu0 %v2233, 64
    %v2717 = vpop.permute.xlu0 %2716
    %2718 = vrot.lane.b32.xlu0 %v2227, 64
    %v2719 = vpop.permute.xlu0 %2718
    %2720 = vrot.lane.b32.xlu0 %v2235, 64
    %v2721 = vpop.permute.xlu0 %2720
    %v2726 = vcombine.high %v2715, 0.0
    %v2728 = vunpack.c.l.s4 1983009808
    %v2729 = vunpack.c.0.s8 %v2728
    %v2730 = vlaneseq
    %v2731 = vshrl.u32 %v2730, 7
    %v2732 = vsub.s32 %v2729, %v2731
    %v2733 = vrot.slane %v2715, %v2732
    %v2735 = vunpack.c.l.s4 1983009808
    %v2736 = vunpack.c.0.s8 %v2735
    %v2737 = vlaneseq
    %v2738 = vshrl.u32 %v2737, 7
    %v2739 = vsub.s32 %v2736, %v2738
    %v2740 = vrot.slane %v2726, %v2739
    %v2741 = vcombine.high %v2717, 0.0
    %v2743 = vunpack.c.l.s4 1983009808
    %v2744 = vunpack.c.0.s8 %v2743
    %v2745 = vlaneseq
    %v2746 = vshrl.u32 %v2745, 7
    %v2747 = vsub.s32 %v2744, %v2746
    %v2748 = vrot.slane %v2717, %v2747
    %v2750 = vunpack.c.l.s4 1983009808
    %v2751 = vunpack.c.0.s8 %v2750
    %v2752 = vlaneseq
    %v2753 = vshrl.u32 %v2752, 7
    %v2754 = vsub.s32 %v2751, %v2753
    %v2755 = vrot.slane %v2741, %v2754
    %v2756 = vcombine.low %v2733, %v2748
    %v2757 = vcombine.high %v2733, %v2748
    %v2759 = vunpack.c.l.s4 1934713408
    %v2760 = vunpack.c.0.s8 %v2759
    %v2761 = vlaneseq
    %v2762 = vshrl.u32 %v2761, 7
    %v2763 = vsub.s32 %v2760, %v2762
    %v2764 = vrot.slane %v2756, %v2763
    %v2766 = vunpack.c.l.s4 1934713408
    %v2767 = vunpack.c.0.s8 %v2766
    %v2768 = vlaneseq
    %v2769 = vshrl.u32 %v2768, 7
    %v2770 = vsub.s32 %v2767, %v2769
    %v2771 = vrot.slane %v2757, %v2770
    %v2772 = vcombine.low %v2740, %v2755
    %v2773 = vcombine.high %v2740, %v2755
    %v2775 = vunpack.c.l.s4 1934713408
    %v2776 = vunpack.c.0.s8 %v2775
    %v2777 = vlaneseq
    %v2778 = vshrl.u32 %v2777, 7
    %v2779 = vsub.s32 %v2776, %v2778
    %v2780 = vrot.slane %v2772, %v2779
    %v2782 = vunpack.c.l.s4 1934713408
    %v2783 = vunpack.c.0.s8 %v2782
    %v2784 = vlaneseq
    %v2785 = vshrl.u32 %v2784, 7
    %v2786 = vsub.s32 %v2783, %v2785
    %v2787 = vrot.slane %v2773, %v2786
    %v2788 = vcombine.high %v2764, 0.0
    %v2789 = vcombine.high %v2771, 0.0
    %v2790 = vcombine.high %v2780, 0.0
    %v2791 = vcombine.high %v2787, 0.0
    %v2792 = vcombine.high %v2719, 0.0
    %v2794 = vunpack.c.l.s4 1983009808
    %v2795 = vunpack.c.0.s8 %v2794
    %v2796 = vlaneseq
    %v2797 = vshrl.u32 %v2796, 7
    %v2798 = vsub.s32 %v2795, %v2797
    %v2799 = vrot.slane %v2719, %v2798
    %v2801 = vunpack.c.l.s4 1983009808
    %v2802 = vunpack.c.0.s8 %v2801
    %v2803 = vlaneseq
    %v2804 = vshrl.u32 %v2803, 7
    %v2805 = vsub.s32 %v2802, %v2804
    %v2806 = vrot.slane %v2792, %v2805
    %v2807 = vcombine.high %v2721, 0.0
    %v2809 = vunpack.c.l.s4 1983009808
    %v2810 = vunpack.c.0.s8 %v2809
    %v2811 = vlaneseq
    %v2812 = vshrl.u32 %v2811, 7
    %v2813 = vsub.s32 %v2810, %v2812
    %v2814 = vrot.slane %v2721, %v2813
    %v2816 = vunpack.c.l.s4 1983009808
    %v2817 = vunpack.c.0.s8 %v2816
    %v2818 = vlaneseq
    %v2819 = vshrl.u32 %v2818, 7
    %v2820 = vsub.s32 %v2817, %v2819
    %v2821 = vrot.slane %v2807, %v2820
    %v2822 = vcombine.low %v2799, %v2814
    %v2823 = vcombine.high %v2799, %v2814
    %v2825 = vunpack.c.l.s4 1934713408
    %v2826 = vunpack.c.0.s8 %v2825
    %v2827 = vlaneseq
    %v2828 = vshrl.u32 %v2827, 7
    %v2829 = vsub.s32 %v2826, %v2828
    %v2830 = vrot.slane %v2822, %v2829
    %v2832 = vunpack.c.l.s4 1934713408
    %v2833 = vunpack.c.0.s8 %v2832
    %v2834 = vlaneseq
    %v2835 = vshrl.u32 %v2834, 7
    %v2836 = vsub.s32 %v2833, %v2835
    %v2837 = vrot.slane %v2823, %v2836
    %v2838 = vcombine.low %v2806, %v2821
    %v2839 = vcombine.high %v2806, %v2821
    %v2841 = vunpack.c.l.s4 1934713408
    %v2842 = vunpack.c.0.s8 %v2841
    %v2843 = vlaneseq
    %v2844 = vshrl.u32 %v2843, 7
    %v2845 = vsub.s32 %v2842, %v2844
    %v2846 = vrot.slane %v2838, %v2845
    %v2848 = vunpack.c.l.s4 1934713408
    %v2849 = vunpack.c.0.s8 %v2848
    %v2850 = vlaneseq
    %v2851 = vshrl.u32 %v2850, 7
    %v2852 = vsub.s32 %v2849, %v2851
    %v2853 = vrot.slane %v2839, %v2852
    %v2854 = vcombine.high %v2830, 0.0
    %v2855 = vcombine.high %v2837, 0.0
    %v2856 = vcombine.high %v2846, 0.0
    %v2857 = vcombine.high %v2853, 0.0
    %v2858 = vcombine.low %v2764, %v2771
    %v2860 = vunpack.c.l.s4 1983009808
    %v2861 = vunpack.c.0.s8 %v2860
    %v2862 = vlaneseq
    %v2863 = vshrl.u32 %v2862, 7
    %v2864 = vsub.s32 %v2861, %v2863
    %v2865 = vrot.slane %v2858, %v2864
    %v2866 = vcombine.low %v2788, %v2789
    %v2868 = vunpack.c.l.s4 1983009808
    %v2869 = vunpack.c.0.s8 %v2868
    %v2870 = vlaneseq
    %v2871 = vshrl.u32 %v2870, 7
    %v2872 = vsub.s32 %v2869, %v2871
    %v2873 = vrot.slane %v2866, %v2872
    %v2874 = vcombine.low %v2780, %v2787
    %v2876 = vunpack.c.l.s4 1983009808
    %v2877 = vunpack.c.0.s8 %v2876
    %v2878 = vlaneseq
    %v2879 = vshrl.u32 %v2878, 7
    %v2880 = vsub.s32 %v2877, %v2879
    %v2881 = vrot.slane %v2874, %v2880
    %v2882 = vcombine.low %v2790, %v2791
    %v2884 = vunpack.c.l.s4 1983009808
    %v2885 = vunpack.c.0.s8 %v2884
    %v2886 = vlaneseq
    %v2887 = vshrl.u32 %v2886, 7
    %v2888 = vsub.s32 %v2885, %v2887
    %v2889 = vrot.slane %v2882, %v2888
    %v2890 = vcombine.low %v2865, %v2873
    %v2892 = vunpack.c.l.s4 1934713408
    %v2893 = vunpack.c.0.s8 %v2892
    %v2894 = vlaneseq
    %v2895 = vshrl.u32 %v2894, 7
    %v2896 = vsub.s32 %v2893, %v2895
    %v2897 = vrot.slane %v2890, %v2896
    %v2898 = vcombine.low %v2881, %v2889
    %v2900 = vunpack.c.l.s4 1934713408
    %v2901 = vunpack.c.0.s8 %v2900
    %v2902 = vlaneseq
    %v2903 = vshrl.u32 %v2902, 7
    %v2904 = vsub.s32 %v2901, %v2903
    %v2905 = vrot.slane %v2898, %v2904
    %v2906 = vcombine.low %v2897, %v2905
    %v2907 = vcombine.high %v2897, %v2905
    %v2908 = vcombine.low %v2830, %v2837
    %v2910 = vunpack.c.l.s4 1983009808
    %v2911 = vunpack.c.0.s8 %v2910
    %v2912 = vlaneseq
    %v2913 = vshrl.u32 %v2912, 7
    %v2914 = vsub.s32 %v2911, %v2913
    %v2915 = vrot.slane %v2908, %v2914
    %v2916 = vcombine.low %v2854, %v2855
    %v2918 = vunpack.c.l.s4 1983009808
    %v2919 = vunpack.c.0.s8 %v2918
    %v2920 = vlaneseq
    %v2921 = vshrl.u32 %v2920, 7
    %v2922 = vsub.s32 %v2919, %v2921
    %v2923 = vrot.slane %v2916, %v2922
    %v2924 = vcombine.low %v2846, %v2853
    %v2926 = vunpack.c.l.s4 1983009808
    %v2927 = vunpack.c.0.s8 %v2926
    %v2928 = vlaneseq
    %v2929 = vshrl.u32 %v2928, 7
    %v2930 = vsub.s32 %v2927, %v2929
    %v2931 = vrot.slane %v2924, %v2930
    %v2932 = vcombine.low %v2856, %v2857
    %v2934 = vunpack.c.l.s4 1983009808
    %v2935 = vunpack.c.0.s8 %v2934
    %v2936 = vlaneseq
    %v2937 = vshrl.u32 %v2936, 7
    %v2938 = vsub.s32 %v2935, %v2937
    %v2939 = vrot.slane %v2932, %v2938
    %v2940 = vcombine.low %v2915, %v2923
    %v2942 = vunpack.c.l.s4 1934713408
    %v2943 = vunpack.c.0.s8 %v2942
    %v2944 = vlaneseq
    %v2945 = vshrl.u32 %v2944, 7
    %v2946 = vsub.s32 %v2943, %v2945
    %v2947 = vrot.slane %v2940, %v2946
    %v2948 = vcombine.low %v2931, %v2939
    %v2950 = vunpack.c.l.s4 1934713408
    %v2951 = vunpack.c.0.s8 %v2950
    %v2952 = vlaneseq
    %v2953 = vshrl.u32 %v2952, 7
    %v2954 = vsub.s32 %v2951, %v2953
    %v2955 = vrot.slane %v2948, %v2954
    %v2956 = vcombine.low %v2947, %v2955
    %v2957 = vcombine.high %v2947, %v2955
    %v2959 = vsel %vm866, %v2418, 0
    %v2962 = vsel %vm866, %v2662, 0
    %2964 = vmatprep.subr.mxu0 0.0
    %2965 = vmatpush1.xpose.msra.mxu0 %v2962
    %2966 = vmatprep.subr.mxu0 0.0
    %2967 = vmatpush1.xpose.msra.mxu0 0.0
    %2968 = vmatprep.subr.mxu0 0.0
    %2969 = vmatpush1.xpose.msra.mxu0 0.0
    %2970 = vmatprep.subr.mxu0 0.0
    %2971 = vmatpush1.xpose.msra.mxu0 0.0
    %2972 = vmatprep.subr.mxu0 0.0
    %2973 = vmatpush1.xpose.msra.mxu0 0.0
    %2974 = vmatprep.subr.mxu0 0.0
    %2975 = vmatpush1.xpose.msra.mxu0 0.0
    %2976 = vmatprep.subr.mxu0 0.0
    %2977 = vmatpush1.xpose.msra.mxu0 0.0
    %2978 = vmatprep.subr.mxu0 0.0
    %2979 = vmatpush1.xpose.msra.mxu0 0.0
    %2980 = vmatprep.subr.mxu0 0.0
    %2981 = vmatpush1.xpose.msra.mxu0 0.0
    %2982 = vmatprep.subr.mxu0 0.0
    %2983 = vmatpush1.xpose.msra.mxu0 0.0
    %2984 = vmatprep.subr.mxu0 0.0
    %2985 = vmatpush1.xpose.msra.mxu0 0.0
    %2986 = vmatprep.subr.mxu0 0.0
    %2987 = vmatpush1.xpose.msra.mxu0 0.0
    %2988 = vmatprep.subr.mxu0 0.0
    %2989 = vmatpush1.xpose.msra.mxu0 0.0
    %2990 = vmatprep.subr.mxu0 0.0
    %2991 = vmatpush1.xpose.msra.mxu0 0.0
    %2992 = vmatprep.subr.mxu0 0.0
    %2993 = vmatpush1.xpose.msra.mxu0 0.0
    %2994 = vmatprep.subr.mxu0 0.0
    %2995 = vmatpush1.xpose.msra.mxu0 0.0
    %2996 = vmatprep.subr.mxu0 0.0
    %2997 = vmatpush1.xpose.msra.mxu0 0.0
    %2998 = vmatprep.subr.mxu0 0.0
    %2999 = vmatpush1.xpose.msra.mxu0 0.0
    %3000 = vmatprep.subr.mxu0 0.0
    %3001 = vmatpush1.xpose.msra.mxu0 0.0
    %3002 = vmatprep.subr.mxu0 0.0
    %3003 = vmatpush1.xpose.msra.mxu0 0.0
    %3004 = vmatprep.subr.mxu0 0.0
    %3005 = vmatpush1.xpose.msra.mxu0 0.0
    %3006 = vmatprep.subr.mxu0 0.0
    %3007 = vmatpush1.xpose.msra.mxu0 0.0
    %3008 = vmatprep.subr.mxu0 0.0
    %3009 = vmatpush1.xpose.msra.mxu0 0.0
    %3010 = vmatprep.subr.mxu0 0.0
    %3011 = vmatpush1.xpose.msra.mxu0 0.0
    %3012 = vmatprep.subr.mxu0 0.0
    %3013 = vmatpush1.xpose.msra.mxu0 0.0
    %3014 = vmatprep.subr.mxu0 0.0
    %3015 = vmatpush1.xpose.msra.mxu0 0.0
    %3016 = vmatprep.subr.mxu0 0.0
    %3017 = vmatpush1.xpose.msra.mxu0 0.0
    %3018 = vmatprep.subr.mxu0 0.0
    %3019 = vmatpush1.xpose.msra.mxu0 0.0
    %3020 = vmatprep.subr.mxu0 0.0
    %3021 = vmatpush1.xpose.msra.mxu0 0.0
    %3022 = vmatprep.subr.mxu0 0.0
    %3023 = vmatpush1.xpose.msra.mxu0 0.0
    %3024 = vmatprep.subr.mxu0 0.0
    %3025 = vmatpush1.xpose.msra.mxu0 0.0
    %3026 = vmatprep.subr.mxu0 0.0
    %3027 = vmatpush1.xpose.msra.mxu0 0.0
    %3028 = vmatprep.mubr.f32.mxu0 0.0
    %3029 = vmatmul.mubr.f32.gmra.mrb[0].mxu0 %v2959
    %v3030 = vpop.f32.mrb[0].mxu0
    %v3031 = vadd.f32 0.0, %v3030
    %v3032 = vpop.f32.mrb[0].mxu0
    %3033 = vdwg.mxu0
    %v3035 = vsel %vm866, %v2419, 0
    %v3038 = vsel %vm866, %v2663, 0
    %3040 = vmatprep.subr.mxu0 0.0
    %3041 = vmatpush1.xpose.msra.mxu0 %v3038
    %3042 = vmatprep.subr.mxu0 0.0
    %3043 = vmatpush1.xpose.msra.mxu0 0.0
    %3044 = vmatprep.subr.mxu0 0.0
    %3045 = vmatpush1.xpose.msra.mxu0 0.0
    %3046 = vmatprep.subr.mxu0 0.0
    %3047 = vmatpush1.xpose.msra.mxu0 0.0
    %3048 = vmatprep.subr.mxu0 0.0
    %3049 = vmatpush1.xpose.msra.mxu0 0.0
    %3050 = vmatprep.subr.mxu0 0.0
    %3051 = vmatpush1.xpose.msra.mxu0 0.0
    %3052 = vmatprep.subr.mxu0 0.0
    %3053 = vmatpush1.xpose.msra.mxu0 0.0
    %3054 = vmatprep.subr.mxu0 0.0
    %3055 = vmatpush1.xpose.msra.mxu0 0.0
    %3056 = vmatprep.subr.mxu0 0.0
    %3057 = vmatpush1.xpose.msra.mxu0 0.0
    %3058 = vmatprep.subr.mxu0 0.0
    %3059 = vmatpush1.xpose.msra.mxu0 0.0
    %3060 = vmatprep.subr.mxu0 0.0
    %3061 = vmatpush1.xpose.msra.mxu0 0.0
    %3062 = vmatprep.subr.mxu0 0.0
    %3063 = vmatpush1.xpose.msra.mxu0 0.0
    %3064 = vmatprep.subr.mxu0 0.0
    %3065 = vmatpush1.xpose.msra.mxu0 0.0
    %3066 = vmatprep.subr.mxu0 0.0
    %3067 = vmatpush1.xpose.msra.mxu0 0.0
    %3068 = vmatprep.subr.mxu0 0.0
    %3069 = vmatpush1.xpose.msra.mxu0 0.0
    %3070 = vmatprep.subr.mxu0 0.0
    %3071 = vmatpush1.xpose.msra.mxu0 0.0
    %3072 = vmatprep.subr.mxu0 0.0
    %3073 = vmatpush1.xpose.msra.mxu0 0.0
    %3074 = vmatprep.subr.mxu0 0.0
    %3075 = vmatpush1.xpose.msra.mxu0 0.0
    %3076 = vmatprep.subr.mxu0 0.0
    %3077 = vmatpush1.xpose.msra.mxu0 0.0
    %3078 = vmatprep.subr.mxu0 0.0
    %3079 = vmatpush1.xpose.msra.mxu0 0.0
    %3080 = vmatprep.subr.mxu0 0.0
    %3081 = vmatpush1.xpose.msra.mxu0 0.0
    %3082 = vmatprep.subr.mxu0 0.0
    %3083 = vmatpush1.xpose.msra.mxu0 0.0
    %3084 = vmatprep.subr.mxu0 0.0
    %3085 = vmatpush1.xpose.msra.mxu0 0.0
    %3086 = vmatprep.subr.mxu0 0.0
    %3087 = vmatpush1.xpose.msra.mxu0 0.0
    %3088 = vmatprep.subr.mxu0 0.0
    %3089 = vmatpush1.xpose.msra.mxu0 0.0
    %3090 = vmatprep.subr.mxu0 0.0
    %3091 = vmatpush1.xpose.msra.mxu0 0.0
    %3092 = vmatprep.subr.mxu0 0.0
    %3093 = vmatpush1.xpose.msra.mxu0 0.0
    %3094 = vmatprep.subr.mxu0 0.0
    %3095 = vmatpush1.xpose.msra.mxu0 0.0
    %3096 = vmatprep.subr.mxu0 0.0
    %3097 = vmatpush1.xpose.msra.mxu0 0.0
    %3098 = vmatprep.subr.mxu0 0.0
    %3099 = vmatpush1.xpose.msra.mxu0 0.0
    %3100 = vmatprep.subr.mxu0 0.0
    %3101 = vmatpush1.xpose.msra.mxu0 0.0
    %3102 = vmatprep.subr.mxu0 0.0
    %3103 = vmatpush1.xpose.msra.mxu0 0.0
    %3104 = vmatprep.mubr.f32.mxu0 0.0
    %3105 = vmatmul.mubr.f32.gmra.mrb[0].mxu0 %v3035
    %v3106 = vpop.f32.mrb[0].mxu0
    %v3107 = vadd.f32 0.0, %v3106
    %v3108 = vpop.f32.mrb[0].mxu0
    %3109 = vdwg.mxu0
    %v3111 = vsel %vm866, %v2468, 0
    %v3114 = vsel %vm866, %v2712, 0
    %3116 = vmatprep.subr.mxu0 0.0
    %3117 = vmatpush1.xpose.msra.mxu0 %v3114
    %3118 = vmatprep.subr.mxu0 0.0
    %3119 = vmatpush1.xpose.msra.mxu0 0.0
    %3120 = vmatprep.subr.mxu0 0.0
    %3121 = vmatpush1.xpose.msra.mxu0 0.0
    %3122 = vmatprep.subr.mxu0 0.0
    %3123 = vmatpush1.xpose.msra.mxu0 0.0
    %3124 = vmatprep.subr.mxu0 0.0
    %3125 = vmatpush1.xpose.msra.mxu0 0.0
    %3126 = vmatprep.subr.mxu0 0.0
    %3127 = vmatpush1.xpose.msra.mxu0 0.0
    %3128 = vmatprep.subr.mxu0 0.0
    %3129 = vmatpush1.xpose.msra.mxu0 0.0
    %3130 = vmatprep.subr.mxu0 0.0
    %3131 = vmatpush1.xpose.msra.mxu0 0.0
    %3132 = vmatprep.subr.mxu0 0.0
    %3133 = vmatpush1.xpose.msra.mxu0 0.0
    %3134 = vmatprep.subr.mxu0 0.0
    %3135 = vmatpush1.xpose.msra.mxu0 0.0
    %3136 = vmatprep.subr.mxu0 0.0
    %3137 = vmatpush1.xpose.msra.mxu0 0.0
    %3138 = vmatprep.subr.mxu0 0.0
    %3139 = vmatpush1.xpose.msra.mxu0 0.0
    %3140 = vmatprep.subr.mxu0 0.0
    %3141 = vmatpush1.xpose.msra.mxu0 0.0
    %3142 = vmatprep.subr.mxu0 0.0
    %3143 = vmatpush1.xpose.msra.mxu0 0.0
    %3144 = vmatprep.subr.mxu0 0.0
    %3145 = vmatpush1.xpose.msra.mxu0 0.0
    %3146 = vmatprep.subr.mxu0 0.0
    %3147 = vmatpush1.xpose.msra.mxu0 0.0
    %3148 = vmatprep.subr.mxu0 0.0
    %3149 = vmatpush1.xpose.msra.mxu0 0.0
    %3150 = vmatprep.subr.mxu0 0.0
    %3151 = vmatpush1.xpose.msra.mxu0 0.0
    %3152 = vmatprep.subr.mxu0 0.0
    %3153 = vmatpush1.xpose.msra.mxu0 0.0
    %3154 = vmatprep.subr.mxu0 0.0
    %3155 = vmatpush1.xpose.msra.mxu0 0.0
    %3156 = vmatprep.subr.mxu0 0.0
    %3157 = vmatpush1.xpose.msra.mxu0 0.0
    %3158 = vmatprep.subr.mxu0 0.0
    %3159 = vmatpush1.xpose.msra.mxu0 0.0
    %3160 = vmatprep.subr.mxu0 0.0
    %3161 = vmatpush1.xpose.msra.mxu0 0.0
    %3162 = vmatprep.subr.mxu0 0.0
    %3163 = vmatpush1.xpose.msra.mxu0 0.0
    %3164 = vmatprep.subr.mxu0 0.0
    %3165 = vmatpush1.xpose.msra.mxu0 0.0
    %3166 = vmatprep.subr.mxu0 0.0
    %3167 = vmatpush1.xpose.msra.mxu0 0.0
    %3168 = vmatprep.subr.mxu0 0.0
    %3169 = vmatpush1.xpose.msra.mxu0 0.0
    %3170 = vmatprep.subr.mxu0 0.0
    %3171 = vmatpush1.xpose.msra.mxu0 0.0
    %3172 = vmatprep.subr.mxu0 0.0
    %3173 = vmatpush1.xpose.msra.mxu0 0.0
    %3174 = vmatprep.subr.mxu0 0.0
    %3175 = vmatpush1.xpose.msra.mxu0 0.0
    %3176 = vmatprep.subr.mxu0 0.0
    %3177 = vmatpush1.xpose.msra.mxu0 0.0
    %3178 = vmatprep.subr.mxu0 0.0
    %3179 = vmatpush1.xpose.msra.mxu0 0.0
    %3180 = vmatprep.mubr.f32.mxu0 0.0
    %3181 = vmatmul.mubr.f32.gmra.mrb[0].mxu0 %v3111
    %v3182 = vpop.f32.mrb[0].mxu0
    %v3183 = vadd.f32 0.0, %v3182
    %v3184 = vpop.f32.mrb[0].mxu0
    %3185 = vdwg.mxu0
    %v3187 = vsel %vm866, %v2469, 0
    %v3190 = vsel %vm866, %v2713, 0
    %3192 = vmatprep.subr.mxu0 0.0
    %3193 = vmatpush1.xpose.msra.mxu0 %v3190
    %3194 = vmatprep.subr.mxu0 0.0
    %3195 = vmatpush1.xpose.msra.mxu0 0.0
    %3196 = vmatprep.subr.mxu0 0.0
    %3197 = vmatpush1.xpose.msra.mxu0 0.0
    %3198 = vmatprep.subr.mxu0 0.0
    %3199 = vmatpush1.xpose.msra.mxu0 0.0
    %3200 = vmatprep.subr.mxu0 0.0
    %3201 = vmatpush1.xpose.msra.mxu0 0.0
    %3202 = vmatprep.subr.mxu0 0.0
    %3203 = vmatpush1.xpose.msra.mxu0 0.0
    %3204 = vmatprep.subr.mxu0 0.0
    %3205 = vmatpush1.xpose.msra.mxu0 0.0
    %3206 = vmatprep.subr.mxu0 0.0
    %3207 = vmatpush1.xpose.msra.mxu0 0.0
    %3208 = vmatprep.subr.mxu0 0.0
    %3209 = vmatpush1.xpose.msra.mxu0 0.0
    %3210 = vmatprep.subr.mxu0 0.0
    %3211 = vmatpush1.xpose.msra.mxu0 0.0
    %3212 = vmatprep.subr.mxu0 0.0
    %3213 = vmatpush1.xpose.msra.mxu0 0.0
    %3214 = vmatprep.subr.mxu0 0.0
    %3215 = vmatpush1.xpose.msra.mxu0 0.0
    %3216 = vmatprep.subr.mxu0 0.0
    %3217 = vmatpush1.xpose.msra.mxu0 0.0
    %3218 = vmatprep.subr.mxu0 0.0
    %3219 = vmatpush1.xpose.msra.mxu0 0.0
    %3220 = vmatprep.subr.mxu0 0.0
    %3221 = vmatpush1.xpose.msra.mxu0 0.0
    %3222 = vmatprep.subr.mxu0 0.0
    %3223 = vmatpush1.xpose.msra.mxu0 0.0
    %3224 = vmatprep.subr.mxu0 0.0
    %3225 = vmatpush1.xpose.msra.mxu0 0.0
    %3226 = vmatprep.subr.mxu0 0.0
    %3227 = vmatpush1.xpose.msra.mxu0 0.0
    %3228 = vmatprep.subr.mxu0 0.0
    %3229 = vmatpush1.xpose.msra.mxu0 0.0
    %3230 = vmatprep.subr.mxu0 0.0
    %3231 = vmatpush1.xpose.msra.mxu0 0.0
    %3232 = vmatprep.subr.mxu0 0.0
    %3233 = vmatpush1.xpose.msra.mxu0 0.0
    %3234 = vmatprep.subr.mxu0 0.0
    %3235 = vmatpush1.xpose.msra.mxu0 0.0
    %3236 = vmatprep.subr.mxu0 0.0
    %3237 = vmatpush1.xpose.msra.mxu0 0.0
    %3238 = vmatprep.subr.mxu0 0.0
    %3239 = vmatpush1.xpose.msra.mxu0 0.0
    %3240 = vmatprep.subr.mxu0 0.0
    %3241 = vmatpush1.xpose.msra.mxu0 0.0
    %3242 = vmatprep.subr.mxu0 0.0
    %3243 = vmatpush1.xpose.msra.mxu0 0.0
    %3244 = vmatprep.subr.mxu0 0.0
    %3245 = vmatpush1.xpose.msra.mxu0 0.0
    %3246 = vmatprep.subr.mxu0 0.0
    %3247 = vmatpush1.xpose.msra.mxu0 0.0
    %3248 = vmatprep.subr.mxu0 0.0
    %3249 = vmatpush1.xpose.msra.mxu0 0.0
    %3250 = vmatprep.subr.mxu0 0.0
    %3251 = vmatpush1.xpose.msra.mxu0 0.0
    %3252 = vmatprep.subr.mxu0 0.0
    %3253 = vmatpush1.xpose.msra.mxu0 0.0
    %3254 = vmatprep.subr.mxu0 0.0
    %3255 = vmatpush1.xpose.msra.mxu0 0.0
    %3256 = vmatprep.mubr.f32.mxu0 0.0
    %3257 = vmatmul.mubr.f32.gmra.mrb[0].mxu0 %v3187
    %v3258 = vpop.f32.mrb[0].mxu0
    %v3259 = vadd.f32 0.0, %v3258
    %v3260 = vpop.f32.mrb[0].mxu0
    %3261 = vdwg.mxu0
    %v3262 = vsel %vm1171, %v3031, -inf
    %3263 = vmax.xlane.f32.xlu0 %v3262
    %v3264 = vpop.xlane.xlu0 %3263
    %v3265 = vsel %vm1171, %v3107, -inf
    %3266 = vmax.xlane.f32.xlu0 %v3265
    %v3267 = vpop.xlane.xlu0 %3266
    %v3268 = vsel %vm1171, %v3183, -inf
    %3269 = vmax.xlane.f32.xlu0 %v3268
    %v3270 = vpop.xlane.xlu0 %3269
    %v3271 = vsel %vm1171, %v3259, -inf
    %3272 = vmax.xlane.f32.xlu0 %v3271
    %v3273 = vpop.xlane.xlu0 %3272
    %v3274 = vsub.f32 %v3031, %v3264
    %v3275 = vsub.f32 %v3107, %v3267
    %v3276 = vsub.f32 %v3183, %v3270
    %v3277 = vsub.f32 %v3259, %v3273
    %v3278 = vmul.f32 %v3274, 1.442695
    %v3279 = vpow.pop %v3278
    %v3280 = vmul.f32 %v3275, 1.442695
    %v3281 = vpow.pop %v3280
    %v3282 = vmul.f32 %v3276, 1.442695
    %v3283 = vpow.pop %v3282
    %v3284 = vmul.f32 %v3277, 1.442695
    %v3285 = vpow.pop %v3284
    %v3286 = vsel %vm1171, %v3279, 0.0
    %3287 = vadd.xlane.f32.xlu0 %v3286
    %v3288 = vpop.xlane.xlu0 %3287
    %v3289 = vsel %vm1171, %v3281, 0.0
    %3290 = vadd.xlane.f32.xlu0 %v3289
    %v3291 = vpop.xlane.xlu0 %3290
    %v3292 = vsel %vm1171, %v3283, 0.0
    %3293 = vadd.xlane.f32.xlu0 %v3292
    %v3294 = vpop.xlane.xlu0 %3293
    %v3295 = vsel %vm1171, %v3285, 0.0
    %3296 = vadd.xlane.f32.xlu0 %v3295
    %v3297 = vpop.xlane.xlu0 %3296
    %v3298 = vrcp.pop %v3288
    %v3299 = vrcp.pop %v3291
    %v3300 = vrcp.pop %v3294
    %v3301 = vrcp.pop %v3297
    %v3302 = vmul.f32 %v3279, %v3298
    %v3303 = vmul.f32 %v3281, %v3299
    %v3304 = vmul.f32 %v3283, %v3300
    %v3305 = vmul.f32 %v3285, %v3301
    %v3307 = vsel %vm1171, %v3302, 0
    %3309 = vmatprep.subr.mxu0 0.0
    %3310 = vmatpush1.msra.mxu0 %v2906
    %3311 = vmatprep.subr.mxu0 0.0
    %3312 = vmatpush1.msra.mxu0 0.0
    %3313 = vmatprep.subr.mxu0 0.0
    %3314 = vmatpush1.msra.mxu0 0.0
    %3315 = vmatprep.subr.mxu0 0.0
    %3316 = vmatpush1.msra.mxu0 0.0
    %3317 = vmatprep.subr.mxu0 0.0
    %3318 = vmatpush1.msra.mxu0 0.0
    %3319 = vmatprep.subr.mxu0 0.0
    %3320 = vmatpush1.msra.mxu0 0.0
    %3321 = vmatprep.subr.mxu0 0.0
    %3322 = vmatpush1.msra.mxu0 0.0
    %3323 = vmatprep.subr.mxu0 0.0
    %3324 = vmatpush1.msra.mxu0 0.0
    %3325 = vmatprep.subr.mxu0 0.0
    %3326 = vmatpush1.msra.mxu0 0.0
    %3327 = vmatprep.subr.mxu0 0.0
    %3328 = vmatpush1.msra.mxu0 0.0
    %3329 = vmatprep.subr.mxu0 0.0
    %3330 = vmatpush1.msra.mxu0 0.0
    %3331 = vmatprep.subr.mxu0 0.0
    %3332 = vmatpush1.msra.mxu0 0.0
    %3333 = vmatprep.subr.mxu0 0.0
    %3334 = vmatpush1.msra.mxu0 0.0
    %3335 = vmatprep.subr.mxu0 0.0
    %3336 = vmatpush1.msra.mxu0 0.0
    %3337 = vmatprep.subr.mxu0 0.0
    %3338 = vmatpush1.msra.mxu0 0.0
    %3339 = vmatprep.subr.mxu0 0.0
    %3340 = vmatpush1.msra.mxu0 0.0
    %3341 = vmatprep.subr.mxu0 0.0
    %3342 = vmatpush1.msra.mxu0 0.0
    %3343 = vmatprep.subr.mxu0 0.0
    %3344 = vmatpush1.msra.mxu0 0.0
    %3345 = vmatprep.subr.mxu0 0.0
    %3346 = vmatpush1.msra.mxu0 0.0
    %3347 = vmatprep.subr.mxu0 0.0
    %3348 = vmatpush1.msra.mxu0 0.0
    %3349 = vmatprep.subr.mxu0 0.0
    %3350 = vmatpush1.msra.mxu0 0.0
    %3351 = vmatprep.subr.mxu0 0.0
    %3352 = vmatpush1.msra.mxu0 0.0
    %3353 = vmatprep.subr.mxu0 0.0
    %3354 = vmatpush1.msra.mxu0 0.0
    %3355 = vmatprep.subr.mxu0 0.0
    %3356 = vmatpush1.msra.mxu0 0.0
    %3357 = vmatprep.subr.mxu0 0.0
    %3358 = vmatpush1.msra.mxu0 0.0
    %3359 = vmatprep.subr.mxu0 0.0
    %3360 = vmatpush1.msra.mxu0 0.0
    %3361 = vmatprep.subr.mxu0 0.0
    %3362 = vmatpush1.msra.mxu0 0.0
    %3363 = vmatprep.subr.mxu0 0.0
    %3364 = vmatpush1.msra.mxu0 0.0
    %3365 = vmatprep.subr.mxu0 0.0
    %3366 = vmatpush1.msra.mxu0 0.0
    %3367 = vmatprep.subr.mxu0 0.0
    %3368 = vmatpush1.msra.mxu0 0.0
    %3369 = vmatprep.subr.mxu0 0.0
    %3370 = vmatpush1.msra.mxu0 0.0
    %3371 = vmatprep.subr.mxu0 0.0
    %3372 = vmatpush1.msra.mxu0 0.0
    %3373 = vmatprep.mubr.f32.mxu0 0.0
    %3374 = vmatmul.mubr.f32.gmra.mrb[0].mxu0 %v3307
    %v3375 = vpop.f32.mrb[0].mxu0
    %v3376 = vadd.f32 0.0, %v3375
    %v3377 = vpop.f32.mrb[0].mxu0
    %3378 = vdwg.mxu0
    %v3380 = vsel %vm1171, %v3303, 0
    %3382 = vmatprep.subr.mxu0 0.0
    %3383 = vmatpush1.msra.mxu0 %v2907
    %3384 = vmatprep.subr.mxu0 0.0
    %3385 = vmatpush1.msra.mxu0 0.0
    %3386 = vmatprep.subr.mxu0 0.0
    %3387 = vmatpush1.msra.mxu0 0.0
    %3388 = vmatprep.subr.mxu0 0.0
    %3389 = vmatpush1.msra.mxu0 0.0
    %3390 = vmatprep.subr.mxu0 0.0
    %3391 = vmatpush1.msra.mxu0 0.0
    %3392 = vmatprep.subr.mxu0 0.0
    %3393 = vmatpush1.msra.mxu0 0.0
    %3394 = vmatprep.subr.mxu0 0.0
    %3395 = vmatpush1.msra.mxu0 0.0
    %3396 = vmatprep.subr.mxu0 0.0
    %3397 = vmatpush1.msra.mxu0 0.0
    %3398 = vmatprep.subr.mxu0 0.0
    %3399 = vmatpush1.msra.mxu0 0.0
    %3400 = vmatprep.subr.mxu0 0.0
    %3401 = vmatpush1.msra.mxu0 0.0
    %3402 = vmatprep.subr.mxu0 0.0
    %3403 = vmatpush1.msra.mxu0 0.0
    %3404 = vmatprep.subr.mxu0 0.0
    %3405 = vmatpush1.msra.mxu0 0.0
    %3406 = vmatprep.subr.mxu0 0.0
    %3407 = vmatpush1.msra.mxu0 0.0
    %3408 = vmatprep.subr.mxu0 0.0
    %3409 = vmatpush1.msra.mxu0 0.0
    %3410 = vmatprep.subr.mxu0 0.0
    %3411 = vmatpush1.msra.mxu0 0.0
    %3412 = vmatprep.subr.mxu0 0.0
    %3413 = vmatpush1.msra.mxu0 0.0
    %3414 = vmatprep.subr.mxu0 0.0
    %3415 = vmatpush1.msra.mxu0 0.0
    %3416 = vmatprep.subr.mxu0 0.0
    %3417 = vmatpush1.msra.mxu0 0.0
    %3418 = vmatprep.subr.mxu0 0.0
    %3419 = vmatpush1.msra.mxu0 0.0
    %3420 = vmatprep.subr.mxu0 0.0
    %3421 = vmatpush1.msra.mxu0 0.0
    %3422 = vmatprep.subr.mxu0 0.0
    %3423 = vmatpush1.msra.mxu0 0.0
    %3424 = vmatprep.subr.mxu0 0.0
    %3425 = vmatpush1.msra.mxu0 0.0
    %3426 = vmatprep.subr.mxu0 0.0
    %3427 = vmatpush1.msra.mxu0 0.0
    %3428 = vmatprep.subr.mxu0 0.0
    %3429 = vmatpush1.msra.mxu0 0.0
    %3430 = vmatprep.subr.mxu0 0.0
    %3431 = vmatpush1.msra.mxu0 0.0
    %3432 = vmatprep.subr.mxu0 0.0
    %3433 = vmatpush1.msra.mxu0 0.0
    %3434 = vmatprep.subr.mxu0 0.0
    %3435 = vmatpush1.msra.mxu0 0.0
    %3436 = vmatprep.subr.mxu0 0.0
    %3437 = vmatpush1.msra.mxu0 0.0
    %3438 = vmatprep.subr.mxu0 0.0
    %3439 = vmatpush1.msra.mxu0 0.0
    %3440 = vmatprep.subr.mxu0 0.0
    %3441 = vmatpush1.msra.mxu0 0.0
    %3442 = vmatprep.subr.mxu0 0.0
    %3443 = vmatpush1.msra.mxu0 0.0
    %3444 = vmatprep.subr.mxu0 0.0
    %3445 = vmatpush1.msra.mxu0 0.0
    %3446 = vmatprep.mubr.f32.mxu0 0.0
    %3447 = vmatmul.mubr.f32.gmra.mrb[0].mxu0 %v3380
    %v3448 = vpop.f32.mrb[0].mxu0
    %v3449 = vadd.f32 0.0, %v3448
    %v3450 = vpop.f32.mrb[0].mxu0
    %3451 = vdwg.mxu0
    %v3453 = vsel %vm1171, %v3304, 0
    %3455 = vmatprep.subr.mxu0 0.0
    %3456 = vmatpush1.msra.mxu0 %v2956
    %3457 = vmatprep.subr.mxu0 0.0
    %3458 = vmatpush1.msra.mxu0 0.0
    %3459 = vmatprep.subr.mxu0 0.0
    %3460 = vmatpush1.msra.mxu0 0.0
    %3461 = vmatprep.subr.mxu0 0.0
    %3462 = vmatpush1.msra.mxu0 0.0
    %3463 = vmatprep.subr.mxu0 0.0
    %3464 = vmatpush1.msra.mxu0 0.0
    %3465 = vmatprep.subr.mxu0 0.0
    %3466 = vmatpush1.msra.mxu0 0.0
    %3467 = vmatprep.subr.mxu0 0.0
    %3468 = vmatpush1.msra.mxu0 0.0
    %3469 = vmatprep.subr.mxu0 0.0
    %3470 = vmatpush1.msra.mxu0 0.0
    %3471 = vmatprep.subr.mxu0 0.0
    %3472 = vmatpush1.msra.mxu0 0.0
    %3473 = vmatprep.subr.mxu0 0.0
    %3474 = vmatpush1.msra.mxu0 0.0
    %3475 = vmatprep.subr.mxu0 0.0
    %3476 = vmatpush1.msra.mxu0 0.0
    %3477 = vmatprep.subr.mxu0 0.0
    %3478 = vmatpush1.msra.mxu0 0.0
    %3479 = vmatprep.subr.mxu0 0.0
    %3480 = vmatpush1.msra.mxu0 0.0
    %3481 = vmatprep.subr.mxu0 0.0
    %3482 = vmatpush1.msra.mxu0 0.0
    %3483 = vmatprep.subr.mxu0 0.0
    %3484 = vmatpush1.msra.mxu0 0.0
    %3485 = vmatprep.subr.mxu0 0.0
    %3486 = vmatpush1.msra.mxu0 0.0
    %3487 = vmatprep.subr.mxu0 0.0
    %3488 = vmatpush1.msra.mxu0 0.0
    %3489 = vmatprep.subr.mxu0 0.0
    %3490 = vmatpush1.msra.mxu0 0.0
    %3491 = vmatprep.subr.mxu0 0.0
    %3492 = vmatpush1.msra.mxu0 0.0
    %3493 = vmatprep.subr.mxu0 0.0
    %3494 = vmatpush1.msra.mxu0 0.0
    %3495 = vmatprep.subr.mxu0 0.0
    %3496 = vmatpush1.msra.mxu0 0.0
    %3497 = vmatprep.subr.mxu0 0.0
    %3498 = vmatpush1.msra.mxu0 0.0
    %3499 = vmatprep.subr.mxu0 0.0
    %3500 = vmatpush1.msra.mxu0 0.0
    %3501 = vmatprep.subr.mxu0 0.0
    %3502 = vmatpush1.msra.mxu0 0.0
    %3503 = vmatprep.subr.mxu0 0.0
    %3504 = vmatpush1.msra.mxu0 0.0
    %3505 = vmatprep.subr.mxu0 0.0
    %3506 = vmatpush1.msra.mxu0 0.0
    %3507 = vmatprep.subr.mxu0 0.0
    %3508 = vmatpush1.msra.mxu0 0.0
    %3509 = vmatprep.subr.mxu0 0.0
    %3510 = vmatpush1.msra.mxu0 0.0
    %3511 = vmatprep.subr.mxu0 0.0
    %3512 = vmatpush1.msra.mxu0 0.0
    %3513 = vmatprep.subr.mxu0 0.0
    %3514 = vmatpush1.msra.mxu0 0.0
    %3515 = vmatprep.subr.mxu0 0.0
    %3516 = vmatpush1.msra.mxu0 0.0
    %3517 = vmatprep.subr.mxu0 0.0
    %3518 = vmatpush1.msra.mxu0 0.0
    %3519 = vmatprep.mubr.f32.mxu0 0.0
    %3520 = vmatmul.mubr.f32.gmra.mrb[0].mxu0 %v3453
    %v3521 = vpop.f32.mrb[0].mxu0
    %v3522 = vadd.f32 0.0, %v3521
    %v3523 = vpop.f32.mrb[0].mxu0
    %3524 = vdwg.mxu0
    %v3526 = vsel %vm1171, %v3305, 0
    %3528 = vmatprep.subr.mxu0 0.0
    %3529 = vmatpush1.msra.mxu0 %v2957
    %3530 = vmatprep.subr.mxu0 0.0
    %3531 = vmatpush1.msra.mxu0 0.0
    %3532 = vmatprep.subr.mxu0 0.0
    %3533 = vmatpush1.msra.mxu0 0.0
    %3534 = vmatprep.subr.mxu0 0.0
    %3535 = vmatpush1.msra.mxu0 0.0
    %3536 = vmatprep.subr.mxu0 0.0
    %3537 = vmatpush1.msra.mxu0 0.0
    %3538 = vmatprep.subr.mxu0 0.0
    %3539 = vmatpush1.msra.mxu0 0.0
    %3540 = vmatprep.subr.mxu0 0.0
    %3541 = vmatpush1.msra.mxu0 0.0
    %3542 = vmatprep.subr.mxu0 0.0
    %3543 = vmatpush1.msra.mxu0 0.0
    %3544 = vmatprep.subr.mxu0 0.0
    %3545 = vmatpush1.msra.mxu0 0.0
    %3546 = vmatprep.subr.mxu0 0.0
    %3547 = vmatpush1.msra.mxu0 0.0
    %3548 = vmatprep.subr.mxu0 0.0
    %3549 = vmatpush1.msra.mxu0 0.0
    %3550 = vmatprep.subr.mxu0 0.0
    %3551 = vmatpush1.msra.mxu0 0.0
    %3552 = vmatprep.subr.mxu0 0.0
    %3553 = vmatpush1.msra.mxu0 0.0
    %3554 = vmatprep.subr.mxu0 0.0
    %3555 = vmatpush1.msra.mxu0 0.0
    %3556 = vmatprep.subr.mxu0 0.0
    %3557 = vmatpush1.msra.mxu0 0.0
    %3558 = vmatprep.subr.mxu0 0.0
    %3559 = vmatpush1.msra.mxu0 0.0
    %3560 = vmatprep.subr.mxu0 0.0
    %3561 = vmatpush1.msra.mxu0 0.0
    %3562 = vmatprep.subr.mxu0 0.0
    %3563 = vmatpush1.msra.mxu0 0.0
    %3564 = vmatprep.subr.mxu0 0.0
    %3565 = vmatpush1.msra.mxu0 0.0
    %3566 = vmatprep.subr.mxu0 0.0
    %3567 = vmatpush1.msra.mxu0 0.0
    %3568 = vmatprep.subr.mxu0 0.0
    %3569 = vmatpush1.msra.mxu0 0.0
    %3570 = vmatprep.subr.mxu0 0.0
    %3571 = vmatpush1.msra.mxu0 0.0
    %3572 = vmatprep.subr.mxu0 0.0
    %3573 = vmatpush1.msra.mxu0 0.0
    %3574 = vmatprep.subr.mxu0 0.0
    %3575 = vmatpush1.msra.mxu0 0.0
    %3576 = vmatprep.subr.mxu0 0.0
    %3577 = vmatpush1.msra.mxu0 0.0
    %3578 = vmatprep.subr.mxu0 0.0
    %3579 = vmatpush1.msra.mxu0 0.0
    %3580 = vmatprep.subr.mxu0 0.0
    %3581 = vmatpush1.msra.mxu0 0.0
    %3582 = vmatprep.subr.mxu0 0.0
    %3583 = vmatpush1.msra.mxu0 0.0
    %3584 = vmatprep.subr.mxu0 0.0
    %3585 = vmatpush1.msra.mxu0 0.0
    %3586 = vmatprep.subr.mxu0 0.0
    %3587 = vmatpush1.msra.mxu0 0.0
    %3588 = vmatprep.subr.mxu0 0.0
    %3589 = vmatpush1.msra.mxu0 0.0
    %3590 = vmatprep.subr.mxu0 0.0
    %3591 = vmatpush1.msra.mxu0 0.0
    %3592 = vmatprep.mubr.f32.mxu0 0.0
    %3593 = vmatmul.mubr.f32.gmra.mrb[0].mxu0 %v3526
    %v3594 = vpop.f32.mrb[0].mxu0
    %v3595 = vadd.f32 0.0, %v3594
    %v3596 = vpop.f32.mrb[0].mxu0
    %3597 = vdwg.mxu0
    %v3598 = vcombine.high %v3376, 0.0
    %v3600 = vunpack.c.l.s4 1983009808
    %v3601 = vunpack.c.0.s8 %v3600
    %v3602 = vlaneseq
    %v3603 = vshrl.u32 %v3602, 7
    %v3604 = vsub.s32 %v3601, %v3603
    %v3605 = vrot.slane %v3376, %v3604
    %v3607 = vunpack.c.l.s4 1983009808
    %v3608 = vunpack.c.0.s8 %v3607
    %v3609 = vlaneseq
    %v3610 = vshrl.u32 %v3609, 7
    %v3611 = vsub.s32 %v3608, %v3610
    %v3612 = vrot.slane %v3598, %v3611
    %v3613 = vcombine.high %v3449, 0.0
    %v3615 = vunpack.c.l.s4 1983009808
    %v3616 = vunpack.c.0.s8 %v3615
    %v3617 = vlaneseq
    %v3618 = vshrl.u32 %v3617, 7
    %v3619 = vsub.s32 %v3616, %v3618
    %v3620 = vrot.slane %v3449, %v3619
    %v3622 = vunpack.c.l.s4 1983009808
    %v3623 = vunpack.c.0.s8 %v3622
    %v3624 = vlaneseq
    %v3625 = vshrl.u32 %v3624, 7
    %v3626 = vsub.s32 %v3623, %v3625
    %v3627 = vrot.slane %v3613, %v3626
    %v3628 = vcombine.low %v3605, %v3620
    %v3629 = vcombine.high %v3605, %v3620
    %v3631 = vunpack.c.l.s4 1934713408
    %v3632 = vunpack.c.0.s8 %v3631
    %v3633 = vlaneseq
    %v3634 = vshrl.u32 %v3633, 7
    %v3635 = vsub.s32 %v3632, %v3634
    %v3636 = vrot.slane %v3628, %v3635
    %v3638 = vunpack.c.l.s4 1934713408
    %v3639 = vunpack.c.0.s8 %v3638
    %v3640 = vlaneseq
    %v3641 = vshrl.u32 %v3640, 7
    %v3642 = vsub.s32 %v3639, %v3641
    %v3643 = vrot.slane %v3629, %v3642
    %v3644 = vcombine.low %v3612, %v3627
    %v3645 = vcombine.high %v3612, %v3627
    %v3647 = vunpack.c.l.s4 1934713408
    %v3648 = vunpack.c.0.s8 %v3647
    %v3649 = vlaneseq
    %v3650 = vshrl.u32 %v3649, 7
    %v3651 = vsub.s32 %v3648, %v3650
    %v3652 = vrot.slane %v3644, %v3651
    %v3654 = vunpack.c.l.s4 1934713408
    %v3655 = vunpack.c.0.s8 %v3654
    %v3656 = vlaneseq
    %v3657 = vshrl.u32 %v3656, 7
    %v3658 = vsub.s32 %v3655, %v3657
    %v3659 = vrot.slane %v3645, %v3658
    %v3660 = vcombine.high %v3636, 0.0
    %v3661 = vcombine.high %v3643, 0.0
    %v3662 = vcombine.high %v3652, 0.0
    %v3663 = vcombine.high %v3659, 0.0
    %v3664 = vcombine.high %v3522, 0.0
    %v3666 = vunpack.c.l.s4 1983009808
    %v3667 = vunpack.c.0.s8 %v3666
    %v3668 = vlaneseq
    %v3669 = vshrl.u32 %v3668, 7
    %v3670 = vsub.s32 %v3667, %v3669
    %v3671 = vrot.slane %v3522, %v3670
    %v3673 = vunpack.c.l.s4 1983009808
    %v3674 = vunpack.c.0.s8 %v3673
    %v3675 = vlaneseq
    %v3676 = vshrl.u32 %v3675, 7
    %v3677 = vsub.s32 %v3674, %v3676
    %v3678 = vrot.slane %v3664, %v3677
    %v3679 = vcombine.high %v3595, 0.0
    %v3681 = vunpack.c.l.s4 1983009808
    %v3682 = vunpack.c.0.s8 %v3681
    %v3683 = vlaneseq
    %v3684 = vshrl.u32 %v3683, 7
    %v3685 = vsub.s32 %v3682, %v3684
    %v3686 = vrot.slane %v3595, %v3685
    %v3688 = vunpack.c.l.s4 1983009808
    %v3689 = vunpack.c.0.s8 %v3688
    %v3690 = vlaneseq
    %v3691 = vshrl.u32 %v3690, 7
    %v3692 = vsub.s32 %v3689, %v3691
    %v3693 = vrot.slane %v3679, %v3692
    %v3694 = vcombine.low %v3671, %v3686
    %v3695 = vcombine.high %v3671, %v3686
    %v3697 = vunpack.c.l.s4 1934713408
    %v3698 = vunpack.c.0.s8 %v3697
    %v3699 = vlaneseq
    %v3700 = vshrl.u32 %v3699, 7
    %v3701 = vsub.s32 %v3698, %v3700
    %v3702 = vrot.slane %v3694, %v3701
    %v3704 = vunpack.c.l.s4 1934713408
    %v3705 = vunpack.c.0.s8 %v3704
    %v3706 = vlaneseq
    %v3707 = vshrl.u32 %v3706, 7
    %v3708 = vsub.s32 %v3705, %v3707
    %v3709 = vrot.slane %v3695, %v3708
    %v3710 = vcombine.low %v3678, %v3693
    %v3711 = vcombine.high %v3678, %v3693
    %v3713 = vunpack.c.l.s4 1934713408
    %v3714 = vunpack.c.0.s8 %v3713
    %v3715 = vlaneseq
    %v3716 = vshrl.u32 %v3715, 7
    %v3717 = vsub.s32 %v3714, %v3716
    %v3718 = vrot.slane %v3710, %v3717
    %v3720 = vunpack.c.l.s4 1934713408
    %v3721 = vunpack.c.0.s8 %v3720
    %v3722 = vlaneseq
    %v3723 = vshrl.u32 %v3722, 7
    %v3724 = vsub.s32 %v3721, %v3723
    %v3725 = vrot.slane %v3711, %v3724
    %v3726 = vcombine.high %v3702, 0.0
    %v3727 = vcombine.high %v3709, 0.0
    %v3728 = vcombine.high %v3718, 0.0
    %v3729 = vcombine.high %v3725, 0.0
    %v3730 = vcombine.low %v3636, %v3643
    %v3732 = vunpack.c.l.s4 1983009808
    %v3733 = vunpack.c.0.s8 %v3732
    %v3734 = vlaneseq
    %v3735 = vshrl.u32 %v3734, 7
    %v3736 = vsub.s32 %v3733, %v3735
    %v3737 = vrot.slane %v3730, %v3736
    %v3738 = vcombine.low %v3660, %v3661
    %v3740 = vunpack.c.l.s4 1983009808
    %v3741 = vunpack.c.0.s8 %v3740
    %v3742 = vlaneseq
    %v3743 = vshrl.u32 %v3742, 7
    %v3744 = vsub.s32 %v3741, %v3743
    %v3745 = vrot.slane %v3738, %v3744
    %v3746 = vcombine.low %v3652, %v3659
    %v3748 = vunpack.c.l.s4 1983009808
    %v3749 = vunpack.c.0.s8 %v3748
    %v3750 = vlaneseq
    %v3751 = vshrl.u32 %v3750, 7
    %v3752 = vsub.s32 %v3749, %v3751
    %v3753 = vrot.slane %v3746, %v3752
    %v3754 = vcombine.low %v3662, %v3663
    %v3756 = vunpack.c.l.s4 1983009808
    %v3757 = vunpack.c.0.s8 %v3756
    %v3758 = vlaneseq
    %v3759 = vshrl.u32 %v3758, 7
    %v3760 = vsub.s32 %v3757, %v3759
    %v3761 = vrot.slane %v3754, %v3760
    %v3762 = vcombine.low %v3737, %v3745
    %v3764 = vunpack.c.l.s4 1934713408
    %v3765 = vunpack.c.0.s8 %v3764
    %v3766 = vlaneseq
    %v3767 = vshrl.u32 %v3766, 7
    %v3768 = vsub.s32 %v3765, %v3767
    %v3769 = vrot.slane %v3762, %v3768
    %v3770 = vcombine.low %v3753, %v3761
    %v3772 = vunpack.c.l.s4 1934713408
    %v3773 = vunpack.c.0.s8 %v3772
    %v3774 = vlaneseq
    %v3775 = vshrl.u32 %v3774, 7
    %v3776 = vsub.s32 %v3773, %v3775
    %v3777 = vrot.slane %v3770, %v3776
    %v3778 = vcombine.low %v3769, %v3777
    %v3779 = vcombine.high %v3769, %v3777
    %v3780 = vcombine.low %v3702, %v3709
    %v3782 = vunpack.c.l.s4 1983009808
    %v3783 = vunpack.c.0.s8 %v3782
    %v3784 = vlaneseq
    %v3785 = vshrl.u32 %v3784, 7
    %v3786 = vsub.s32 %v3783, %v3785
    %v3787 = vrot.slane %v3780, %v3786
    %v3788 = vcombine.low %v3726, %v3727
    %v3790 = vunpack.c.l.s4 1983009808
    %v3791 = vunpack.c.0.s8 %v3790
    %v3792 = vlaneseq
    %v3793 = vshrl.u32 %v3792, 7
    %v3794 = vsub.s32 %v3791, %v3793
    %v3795 = vrot.slane %v3788, %v3794
    %v3796 = vcombine.low %v3718, %v3725
    %v3798 = vunpack.c.l.s4 1983009808
    %v3799 = vunpack.c.0.s8 %v3798
    %v3800 = vlaneseq
    %v3801 = vshrl.u32 %v3800, 7
    %v3802 = vsub.s32 %v3799, %v3801
    %v3803 = vrot.slane %v3796, %v3802
    %v3804 = vcombine.low %v3728, %v3729
    %v3806 = vunpack.c.l.s4 1983009808
    %v3807 = vunpack.c.0.s8 %v3806
    %v3808 = vlaneseq
    %v3809 = vshrl.u32 %v3808, 7
    %v3810 = vsub.s32 %v3807, %v3809
    %v3811 = vrot.slane %v3804, %v3810
    %v3812 = vcombine.low %v3787, %v3795
    %v3814 = vunpack.c.l.s4 1934713408
    %v3815 = vunpack.c.0.s8 %v3814
    %v3816 = vlaneseq
    %v3817 = vshrl.u32 %v3816, 7
    %v3818 = vsub.s32 %v3815, %v3817
    %v3819 = vrot.slane %v3812, %v3818
    %v3820 = vcombine.low %v3803, %v3811
    %v3822 = vunpack.c.l.s4 1934713408
    %v3823 = vunpack.c.0.s8 %v3822
    %v3824 = vlaneseq
    %v3825 = vshrl.u32 %v3824, 7
    %v3826 = vsub.s32 %v3823, %v3825
    %v3827 = vrot.slane %v3820, %v3826
    %v3828 = vcombine.low %v3819, %v3827
    %v3829 = vcombine.high %v3819, %v3827
    %3832 = vrot.lane.b32.xlu0 %v3779, 16
    %v3833 = vpop.permute.xlu0 %3832
    %3834 = vrot.lane.b32.xlu0 %v3829, 16
    %v3835 = vpop.permute.xlu0 %3834
    %v3838 = vsel %vm866, %v3778, %v3833
    %v3839 = vsel %vm866, %v3828, %v3835
    %v3840 = vpack.c.bf16 %v3839, %v3838
    %s3841 = scalar_lea.vmem [#allocation2], 320
    %v3842 = vld [vmem:[%s3841] sm:$0xf]
    %v3843 = vld [vmem:[%s3841 + $0x4] sm:$0xf]
    %v3844 = vld [vmem:[%s3841 + $0x8] sm:$0xf]
    %v3845 = vld [vmem:[%s3841 + $0xc] sm:$0xf]
    %v3846 = vlaneseq
    %v3847 = vshrl.u32 %v3846, 7
    %v3848 = vsub.s32 0, %v3847
    %v3849 = vrot.slane %v2122, %v3848
    %v3854 = vunpack.c.l.b16 %v3842
    %v3855 = vunpack.c.l.b16 %v3843
    %v3856 = vunpack.c.l.b16 %v3844
    %v3857 = vunpack.c.l.b16 %v3845
    %v3858 = vpack.c.b16 %v3855, %v3854
    %v3859 = vpack.c.b16 %v3857, %v3856
    %v3863 = vsel %vm1772, %v3840, 0
    %3865 = vmatprep.subr.bf16.mxu0 0
    %3866 = vmatpush1.bf16.msra.mxu0 %v3858
    %3867 = vmatprep.subr.bf16.mxu0 0
    %3868 = vmatpush1.bf16.msra.mxu0 %v3859
    %3869 = vmatprep.subr.bf16.mxu0 0
    %3870 = vmatpush1.bf16.msra.mxu0 0
    %3871 = vmatprep.subr.bf16.mxu0 0
    %3872 = vmatpush1.bf16.msra.mxu0 0
    %3873 = vmatprep.subr.bf16.mxu0 0
    %3874 = vmatpush1.bf16.msra.mxu0 0
    %3875 = vmatprep.subr.bf16.mxu0 0
    %3876 = vmatpush1.bf16.msra.mxu0 0
    %3877 = vmatprep.subr.bf16.mxu0 0
    %3878 = vmatpush1.bf16.msra.mxu0 0
    %3879 = vmatprep.subr.bf16.mxu0 0
    %3880 = vmatpush1.bf16.msra.mxu0 0
    %3881 = vmatprep.subr.bf16.mxu0 0
    %3882 = vmatpush1.bf16.msra.mxu0 0
    %3883 = vmatprep.subr.bf16.mxu0 0
    %3884 = vmatpush1.bf16.msra.mxu0 0
    %3885 = vmatprep.subr.bf16.mxu0 0
    %3886 = vmatpush1.bf16.msra.mxu0 0
    %3887 = vmatprep.subr.bf16.mxu0 0
    %3888 = vmatpush1.bf16.msra.mxu0 0
    %3889 = vmatprep.subr.bf16.mxu0 0
    %3890 = vmatpush1.bf16.msra.mxu0 0
    %3891 = vmatprep.subr.bf16.mxu0 0
    %3892 = vmatpush1.bf16.msra.mxu0 0
    %3893 = vmatprep.subr.bf16.mxu0 0
    %3894 = vmatpush1.bf16.msra.mxu0 0
    %3895 = vmatprep.subr.bf16.mxu0 0
    %3896 = vmatpush1.bf16.msra.mxu0 0
    %3897 = vmatprep.mubr.bf16.mxu0 0
    %3898 = vmatmul.mubr.bf16.gmra.mrb[0].mxu0 %v3863
    %v3899 = vpop.f32.mrb[0].mxu0
    %v3900 = vadd.f32 %v3849, %v3899
    %v3901 = vpop.f32.mrb[0].mxu0
    %v3902 = vpop.f32.mrb[0].mxu0
    %v3903 = vadd.f32 %v3849, %v3902
    %v3904 = vpop.f32.mrb[0].mxu0
    %3905 = vdwg.mxu0
    %v3906 = vadd.f32 %v3900, %v2119
    %v3907 = vadd.f32 %v3903, %v2120
    %3908 = vadd.xlane.f32.xlu0 %v3906
    %v3909 = vpop.xlane.xlu0 %3908
    %3910 = vadd.xlane.f32.xlu0 %v3907
    %v3911 = vpop.xlane.xlu0 %3910
    %v3912 = vmul.f32 %v3909, 0.03125
    %v3913 = vmul.f32 %v3911, 0.03125
    %v3914 = vmul.f32 %v3906, %v3906
    %v3915 = vmul.f32 %v3907, %v3907
    %3916 = vadd.xlane.f32.xlu0 %v3914
    %v3917 = vpop.xlane.xlu0 %3916
    %3918 = vadd.xlane.f32.xlu0 %v3915
    %v3919 = vpop.xlane.xlu0 %3918
    %v3920 = vmul.f32 %v3917, 0.03125
    %v3921 = vmul.f32 %v3919, 0.03125
    %v3922 = vmul.f32 %v3912, %v3912
    %v3923 = vmul.f32 %v3913, %v3913
    %v3924 = vsub.f32 %v3920, %v3922
    %v3925 = vsub.f32 %v3921, %v3923
    %v3926 = vsub.f32 %v3906, %v3912
    %v3927 = vsub.f32 %v3907, %v3913
    %v3928 = vadd.f32 %v3924, 1e-06
    %v3929 = vadd.f32 %v3925, 1e-06
    %v3930 = vrsqrt.pop %v3928
    %v3931 = vrsqrt.pop %v3929
    %v3932 = vmul.f32 %v3926, %v3930
    %v3933 = vmul.f32 %v3927, %v3931
    %v3934 = vlaneseq
    %v3935 = vshrl.u32 %v3934, 7
    %v3936 = vsub.s32 1, %v3935
    %v3937 = vrot.slane %v2122, %v3936
    %v3938 = vmul.f32 %v3932, %v3937
    %v3939 = vmul.f32 %v3933, %v3937
    %v3940 = vlaneseq
    %v3941 = vshrl.u32 %v3940, 7
    %v3942 = vsub.s32 2, %v3941
    %v3943 = vrot.slane %v2122, %v3942
    %v3944 = vadd.f32 %v3938, %v3943
    %v3945 = vadd.f32 %v3939, %v3943
    %v3946 = vpack.c.bf16 %v3945, %v3944
    %s3947 = scalar_lea.vmem [#allocation2], 384
    %v3948 = vld [vmem:[%s3947] sm:$0xf]
    %v3949 = vld [vmem:[%s3947 + $0x4] sm:$0xf]
    %v3950 = vld [vmem:[%s3947 + $0x8] sm:$0xf]
    %v3951 = vld [vmem:[%s3947 + $0xc] sm:$0xf]
    %v3952 = vld [vmem:[%s3947 + $0x10] sm:$0xf]
    %v3953 = vld [vmem:[%s3947 + $0x14] sm:$0xf]
    %v3954 = vld [vmem:[%s3947 + $0x18] sm:$0xf]
    %v3955 = vld [vmem:[%s3947 + $0x1c] sm:$0xf]
    %v3956 = vld [vmem:[%s3947 + $0x20] sm:$0xf]
    %v3957 = vld [vmem:[%s3947 + $0x24] sm:$0xf]
    %v3958 = vld [vmem:[%s3947 + $0x28] sm:$0xf]
    %v3959 = vld [vmem:[%s3947 + $0x2c] sm:$0xf]
    %v3960 = vld [vmem:[%s3947 + $0x30] sm:$0xf]
    %v3961 = vld [vmem:[%s3947 + $0x34] sm:$0xf]
    %v3962 = vld [vmem:[%s3947 + $0x38] sm:$0xf]
    %v3963 = vld [vmem:[%s3947 + $0x3c] sm:$0xf]
    %v3964 = vlaneseq
    %v3965 = vshrl.u32 %v3964, 7
    %v3966 = vsub.s32 3, %v3965
    %v3967 = vrot.slane %v2122, %v3966
    %v3984 = vunpack.c.l.b16 %v3948
    %v3985 = vunpack.c.l.b16 %v3949
    %v3986 = vunpack.c.l.b16 %v3950
    %v3987 = vunpack.c.l.b16 %v3951
    %v3988 = vunpack.c.l.b16 %v3952
    %v3989 = vunpack.c.l.b16 %v3953
    %v3990 = vunpack.c.l.b16 %v3954
    %v3991 = vunpack.c.l.b16 %v3955
    %v3992 = vunpack.c.l.b16 %v3956
    %v3993 = vunpack.c.l.b16 %v3957
    %v3994 = vunpack.c.l.b16 %v3958
    %v3995 = vunpack.c.l.b16 %v3959
    %v3996 = vunpack.c.l.b16 %v3960
    %v3997 = vunpack.c.l.b16 %v3961
    %v3998 = vunpack.c.l.b16 %v3962
    %v3999 = vunpack.c.l.b16 %v3963
    %v4000 = vpack.c.b16 %v3985, %v3984
    %v4001 = vpack.c.b16 %v3987, %v3986
    %v4002 = vpack.c.b16 %v3989, %v3988
    %v4003 = vpack.c.b16 %v3991, %v3990
    %v4004 = vpack.c.b16 %v3993, %v3992
    %v4005 = vpack.c.b16 %v3995, %v3994
    %v4006 = vpack.c.b16 %v3997, %v3996
    %v4007 = vpack.c.b16 %v3999, %v3998
    %4016 = vmatprep.subr.bf16.mxu0 0
    %4017 = vmatpush1.bf16.msra.mxu0 %v4000
    %4018 = vmatprep.subr.bf16.mxu0 0
    %4019 = vmatpush1.bf16.msra.mxu0 %v4001
    %4020 = vmatprep.subr.bf16.mxu0 0
    %4021 = vmatpush1.bf16.msra.mxu0 %v4002
    %4022 = vmatprep.subr.bf16.mxu0 0
    %4023 = vmatpush1.bf16.msra.mxu0 %v4003
    %4024 = vmatprep.subr.bf16.mxu0 0
    %4025 = vmatpush1.bf16.msra.mxu0 %v4004
    %4026 = vmatprep.subr.bf16.mxu0 0
    %4027 = vmatpush1.bf16.msra.mxu0 %v4005
    %4028 = vmatprep.subr.bf16.mxu0 0
    %4029 = vmatpush1.bf16.msra.mxu0 %v4006
    %4030 = vmatprep.subr.bf16.mxu0 0
    %4031 = vmatpush1.bf16.msra.mxu0 %v4007
    %4032 = vmatprep.subr.bf16.mxu0 0
    %4033 = vmatpush1.bf16.msra.mxu0 0
    %4034 = vmatprep.subr.bf16.mxu0 0
    %4035 = vmatpush1.bf16.msra.mxu0 0
    %4036 = vmatprep.subr.bf16.mxu0 0
    %4037 = vmatpush1.bf16.msra.mxu0 0
    %4038 = vmatprep.subr.bf16.mxu0 0
    %4039 = vmatpush1.bf16.msra.mxu0 0
    %4040 = vmatprep.subr.bf16.mxu0 0
    %4041 = vmatpush1.bf16.msra.mxu0 0
    %4042 = vmatprep.subr.bf16.mxu0 0
    %4043 = vmatpush1.bf16.msra.mxu0 0
    %4044 = vmatprep.subr.bf16.mxu0 0
    %4045 = vmatpush1.bf16.msra.mxu0 0
    %4046 = vmatprep.subr.bf16.mxu0 0
    %4047 = vmatpush1.bf16.msra.mxu0 0
    %4048 = vmatprep.mubr.bf16.mxu0 0
    %4049 = vmatmul.mubr.bf16.gmra.mrb[0].mxu0 %v3946
    %v4050 = vpop.f32.mrb[0].mxu0
    %v4051 = vadd.f32 %v3967, %v4050
    %v4052 = vpop.f32.mrb[0].mxu0
    %v4053 = vpop.f32.mrb[0].mxu0
    %v4054 = vadd.f32 %v3967, %v4053
    %v4055 = vpop.f32.mrb[0].mxu0
    %4056 = vdwg.mxu0
    %v4057 = vmax.f32 %v4051, 0.0
    %v4058 = vmax.f32 %v4054, 0.0
    %v4059 = vpack.c.bf16 %v4058, %v4057
    %s4060 = scalar_lea.vmem [#allocation2], 448
    %v4061 = vld [vmem:[%s4060] sm:$0xf]
    %v4062 = vld [vmem:[%s4060 + $0x4] sm:$0xf]
    %v4063 = vld [vmem:[%s4060 + $0x8] sm:$0xf]
    %v4064 = vld [vmem:[%s4060 + $0xc] sm:$0xf]
    %v4065 = vld [vmem:[%s4060 + $0x10] sm:$0xf]
    %v4066 = vld [vmem:[%s4060 + $0x14] sm:$0xf]
    %v4067 = vld [vmem:[%s4060 + $0x18] sm:$0xf]
    %v4068 = vld [vmem:[%s4060 + $0x1c] sm:$0xf]
    %v4069 = vld [vmem:[%s4060 + $0x20] sm:$0xf]
    %v4070 = vld [vmem:[%s4060 + $0x24] sm:$0xf]
    %v4071 = vld [vmem:[%s4060 + $0x28] sm:$0xf]
    %v4072 = vld [vmem:[%s4060 + $0x2c] sm:$0xf]
    %v4073 = vld [vmem:[%s4060 + $0x30] sm:$0xf]
    %v4074 = vld [vmem:[%s4060 + $0x34] sm:$0xf]
    %v4075 = vld [vmem:[%s4060 + $0x38] sm:$0xf]
    %v4076 = vld [vmem:[%s4060 + $0x3c] sm:$0xf]
    %v4077 = vlaneseq
    %v4078 = vshrl.u32 %v4077, 7
    %v4079 = vsub.s32 4, %v4078
    %v4080 = vrot.slane %v2122, %v4079
    %v4097 = vunpack.c.l.b16 %v4061
    %v4098 = vunpack.c.l.b16 %v4062
    %v4099 = vunpack.c.l.b16 %v4063
    %v4100 = vunpack.c.l.b16 %v4064
    %v4101 = vunpack.c.l.b16 %v4065
    %v4102 = vunpack.c.l.b16 %v4066
    %v4103 = vunpack.c.l.b16 %v4067
    %v4104 = vunpack.c.l.b16 %v4068
    %v4105 = vunpack.c.l.b16 %v4069
    %v4106 = vunpack.c.l.b16 %v4070
    %v4107 = vunpack.c.l.b16 %v4071
    %v4108 = vunpack.c.l.b16 %v4072
    %v4109 = vunpack.c.l.b16 %v4073
    %v4110 = vunpack.c.l.b16 %v4074
    %v4111 = vunpack.c.l.b16 %v4075
    %v4112 = vunpack.c.l.b16 %v4076
    %v4113 = vpack.c.b16 %v4098, %v4097
    %v4114 = vpack.c.b16 %v4100, %v4099
    %v4115 = vpack.c.b16 %v4102, %v4101
    %v4116 = vpack.c.b16 %v4104, %v4103
    %v4117 = vpack.c.b16 %v4106, %v4105
    %v4118 = vpack.c.b16 %v4108, %v4107
    %v4119 = vpack.c.b16 %v4110, %v4109
    %v4120 = vpack.c.b16 %v4112, %v4111
    %4129 = vmatprep.subr.bf16.mxu0 0
    %4130 = vmatpush1.bf16.msra.mxu0 %v4113
    %4131 = vmatprep.subr.bf16.mxu0 0
    %4132 = vmatpush1.bf16.msra.mxu0 %v4114
    %4133 = vmatprep.subr.bf16.mxu0 0
    %4134 = vmatpush1.bf16.msra.mxu0 %v4115
    %4135 = vmatprep.subr.bf16.mxu0 0
    %4136 = vmatpush1.bf16.msra.mxu0 %v4116
    %4137 = vmatprep.subr.bf16.mxu0 0
    %4138 = vmatpush1.bf16.msra.mxu0 %v4117
    %4139 = vmatprep.subr.bf16.mxu0 0
    %4140 = vmatpush1.bf16.msra.mxu0 %v4118
    %4141 = vmatprep.subr.bf16.mxu0 0
    %4142 = vmatpush1.bf16.msra.mxu0 %v4119
    %4143 = vmatprep.subr.bf16.mxu0 0
    %4144 = vmatpush1.bf16.msra.mxu0 %v4120
    %4145 = vmatprep.subr.bf16.mxu0 0
    %4146 = vmatpush1.bf16.msra.mxu0 0
    %4147 = vmatprep.subr.bf16.mxu0 0
    %4148 = vmatpush1.bf16.msra.mxu0 0
    %4149 = vmatprep.subr.bf16.mxu0 0
    %4150 = vmatpush1.bf16.msra.mxu0 0
    %4151 = vmatprep.subr.bf16.mxu0 0
    %4152 = vmatpush1.bf16.msra.mxu0 0
    %4153 = vmatprep.subr.bf16.mxu0 0
    %4154 = vmatpush1.bf16.msra.mxu0 0
    %4155 = vmatprep.subr.bf16.mxu0 0
    %4156 = vmatpush1.bf16.msra.mxu0 0
    %4157 = vmatprep.subr.bf16.mxu0 0
    %4158 = vmatpush1.bf16.msra.mxu0 0
    %4159 = vmatprep.subr.bf16.mxu0 0
    %4160 = vmatpush1.bf16.msra.mxu0 0
    %4161 = vmatprep.mubr.bf16.mxu0 0
    %4162 = vmatmul.mubr.bf16.gmra.mrb[0].mxu0 %v4059
    %v4163 = vpop.f32.mrb[0].mxu0
    %v4164 = vadd.f32 %v4080, %v4163
    %v4165 = vpop.f32.mrb[0].mxu0
    %v4166 = vpop.f32.mrb[0].mxu0
    %v4167 = vadd.f32 %v4080, %v4166
    %v4168 = vpop.f32.mrb[0].mxu0
    %4169 = vdwg.mxu0
    %v4170 = vadd.f32 %v4164, %v3944
    %v4171 = vadd.f32 %v4167, %v3945
    %4172 = vadd.xlane.f32.xlu0 %v4170
    %v4173 = vpop.xlane.xlu0 %4172
    %4174 = vadd.xlane.f32.xlu0 %v4171
    %v4175 = vpop.xlane.xlu0 %4174
    %v4176 = vmul.f32 %v4173, 0.03125
    %v4177 = vmul.f32 %v4175, 0.03125
    %v4178 = vmul.f32 %v4170, %v4170
    %v4179 = vmul.f32 %v4171, %v4171
    %4180 = vadd.xlane.f32.xlu0 %v4178
    %v4181 = vpop.xlane.xlu0 %4180
    %4182 = vadd.xlane.f32.xlu0 %v4179
    %v4183 = vpop.xlane.xlu0 %4182
    %v4184 = vmul.f32 %v4181, 0.03125
    %v4185 = vmul.f32 %v4183, 0.03125
    %v4186 = vmul.f32 %v4176, %v4176
    %v4187 = vmul.f32 %v4177, %v4177
    %v4188 = vsub.f32 %v4184, %v4186
    %v4189 = vsub.f32 %v4185, %v4187
    %v4190 = vsub.f32 %v4170, %v4176
    %v4191 = vsub.f32 %v4171, %v4177
    %v4192 = vadd.f32 %v4188, 1e-06
    %v4193 = vadd.f32 %v4189, 1e-06
    %v4194 = vrsqrt.pop %v4192
    %v4195 = vrsqrt.pop %v4193
    %v4196 = vmul.f32 %v4190, %v4194
    %v4197 = vmul.f32 %v4191, %v4195
    %v4198 = vlaneseq
    %v4199 = vshrl.u32 %v4198, 7
    %v4200 = vsub.s32 5, %v4199
    %v4201 = vrot.slane %v2122, %v4200
    %v4202 = vmul.f32 %v4196, %v4201
    %v4203 = vmul.f32 %v4197, %v4201
    %v4204 = vlaneseq
    %v4205 = vshrl.u32 %v4204, 7
    %v4206 = vsub.s32 6, %v4205
    %v4207 = vrot.slane %v2122, %v4206
    %v4208 = vadd.f32 %v4202, %v4207
    %v4209 = vadd.f32 %v4203, %v4207
    %4210 = vst [vmem:[%s3] sm:$0xff] %v4208
    %4211 = vst [vmem:[%s3 + $0x8] sm:$0xff] %v4209
    // Predicated region
    $region18: #{encoder_forward.1} parent=1 // pred_check
      _
    $region19: #{encoder_forward.1} parent=1 // pred_check_branch
      %4213 = sbr.rel (0) target = $region21
    $region20: #{encoder_forward.1} parent=1 // pred_region
      _
    $region21: #{encoder_forward.1} parent=1 // pred_fallthru
      _
    // Predicated region
    $region22: #{encoder_forward.1} parent=1 // pred_check
      _
    $region23: #{encoder_forward.1} parent=1 // pred_check_branch
      %4215 = sbr.rel (0) target = $region25
    $region24: #{encoder_forward.1} parent=1 // pred_region
      _
    $region25: #{encoder_forward.1} parent=1 // pred_fallthru
      _
    %4216 = vsyncpa [#allocation3], 1

</llo_original>
